<compile_context>
chip_gen: v7x
topology: tpu7x:2x2x1
jax: 0.10.0
libtpu: 0.0.40
codegen_flags: <defaults>
</compile_context>

<pallas_src>
import functools
import math

import jax
import jax.numpy as jnp
from jax import lax
from jax.experimental import pallas as pl
from jax.experimental.pallas import tpu as pltpu


# ----------------------------------------------------------------------------
# Generation-aware VMEM budget / tiling helpers
# ----------------------------------------------------------------------------
_VMEM_CFG = None


def _vmem_config():
    """(vmem_limit_bytes, large_vmem).  v5e/v6e: 128 MiB VMEM, v7x: 64 MiB."""
    global _VMEM_CFG
    if _VMEM_CFG is None:
        try:
            cap = int(pltpu.get_tpu_info().vmem_capacity_bytes)
        except Exception:
            cap = 64 * 1024 * 1024                     # conservative (v7x-sized)
        limit = min((cap * 3) // 4, 100 * 1024 * 1024)  # ~96 MiB v5e/v6e, 48 MiB v7x
        _VMEM_CFG = (limit, cap >= 96 * 1024 * 1024)
    return _VMEM_CFG


def _round_up(x, m):
    return (x + m - 1) // m * m


def _pick_tile(dim, prefs):
    """Largest preferred tile that evenly divides `dim`, else the full dim
    (block == array extent is always layout-legal)."""
    for p in prefs:
        if dim >= p and dim % p == 0:
            return p
    return dim


def _choose_row_tile(dim, prefs):
    """Row (sublane) tile; pad rows up instead of degenerating to one giant
    full-extent block.  Returns (tile, padded_dim)."""
    for p in prefs:
        if dim >= p and dim % p == 0:
            return p, dim
    for p in prefs:
        if dim >= p:
            return p, _round_up(dim, p)
    pad = _round_up(max(dim, 8), 8)
    return pad, pad


# ----------------------------------------------------------------------------
# Tiled linear:  y = x @ w_t + b   (bf16 MXU inputs; f32 accumulate)
# ----------------------------------------------------------------------------
def _linear_kernel(x_ref, w_ref, b_ref, o_ref, acc_ref):
    k = pl.program_id(2)

    @pl.when(k == 0)
    def _init():
        acc_ref[...] = jnp.zeros(acc_ref.shape, acc_ref.dtype)

    acc_ref[...] += jnp.dot(x_ref[...], w_ref[...],
                            preferred_element_type=jnp.float32)

    @pl.when(k == pl.num_programs(2) - 1)
    def _finalize():
        # bias add kept in f32 (cheap epilogue, v5e-friendly), cast on store.
        o_ref[...] = (acc_ref[...] + b_ref[...]).astype(o_ref.dtype)


def _linear(x2d, w_t, b, out_dtype):
    """x2d: (M, K), w_t: (K, N), b: (1, N) f32  ->  (M, N) out_dtype."""
    M, K = x2d.shape
    N = w_t.shape[1]
    vmem_limit, large_vmem = _vmem_config()
    tm_prefs = ((1024, 512, 256, 128, 64, 32, 16, 8) if large_vmem
                else (512, 256, 128, 64, 32, 16, 8))
    tn_prefs = (512, 256, 128)
    tk_prefs = (512, 256, 128)

    tm, m_pad = _choose_row_tile(M, tm_prefs)
    if m_pad != M:
        x2d = jnp.pad(x2d, ((0, m_pad - M), (0, 0)))
    tn = _pick_tile(N, tn_prefs)
    tk = _pick_tile(K, tk_prefs)
    grid = (m_pad // tm, N // tn, K // tk)

    out = pl.pallas_call(
        _linear_kernel,
        out_shape=jax.ShapeDtypeStruct((m_pad, N), out_dtype),
        grid_spec=pltpu.PrefetchScalarGridSpec(
            num_scalar_prefetch=0,
            grid=grid,
            in_specs=[
                pl.BlockSpec((tm, tk), lambda i, j, k: (i, k)),
                pl.BlockSpec((tk, tn), lambda i, j, k: (k, j)),
                pl.BlockSpec((1, tn), lambda i, j, k: (0, j)),
            ],
            out_specs=pl.BlockSpec((tm, tn), lambda i, j, k: (i, j)),
            scratch_shapes=[pltpu.VMEM((tm, tn), jnp.float32)],
        ),
        compiler_params=pltpu.CompilerParams(
            dimension_semantics=("parallel", "parallel", "arbitrary"),
            vmem_limit_bytes=vmem_limit,
        ),
    )(x2d, w_t, b)
    return out[:M] if m_pad != M else out


# ----------------------------------------------------------------------------
# Grouped flash-style attention reading straight from the fused QKV buffer.
#
# qkv layout: (B*T, C + 2*kv_dim), columns = [Q(head-major) | K | V].
# For kv head g:
#   Q cols  [g*G*Dh, (g+1)*G*Dh)           (contiguous group of G query heads)
#   K cols  [C + g*Dh, C + (g+1)*Dh)
#   V cols  [C + kv_dim + g*Dh, ...)
# Output is written directly in (B*T, C) layout with lane-dense (tq, G*Dh)
# blocks.  Q is already pre-scaled by 1/sqrt(Dh) (folded into Wq).
# ----------------------------------------------------------------------------
def _gqa_flash_kernel(q_ref, k_ref, v_ref, o_ref, m_sc, l_sc, acc_sc, *,
                      group, head_dim):
    s_idx = pl.program_id(3)

    @pl.when(s_idx == 0)
    def _init():
        m_sc[...] = jnp.full(m_sc.shape, -jnp.inf, m_sc.dtype)
        l_sc[...] = jnp.zeros(l_sc.shape, l_sc.dtype)
        acc_sc[...] = jnp.zeros(acc_sc.shape, acc_sc.dtype)

    k = k_ref[...]                       # (tkv, Dh) bf16
    v = v_ref[...]                       # (tkv, Dh) bf16

    # Static loop over the query heads of this kv group (G is small).
    for j in range(group):
        lo, hi = j * head_dim, (j + 1) * head_dim
        qj = q_ref[:, lo:hi]             # (tq, Dh) bf16
        # Contract the last dim of both operands (trans-B on the MXU):
        # no in-kernel K transpose through the XLU.
        s = lax.dot_general(qj, k, (((1,), (1,)), ((), ())),
                            preferred_element_type=jnp.float32)   # (tq, tkv)
        m_prev = m_sc[j]                                          # (tq, 1)
        m_new = jnp.maximum(m_prev, jnp.max(s, axis=-1, keepdims=True))
        alpha = jnp.exp(m_prev - m_new)
        p = jnp.exp(s - m_new)
        l_sc[j] = alpha * l_sc[j] + jnp.sum(p, axis=-1, keepdims=True)
        acc_sc[:, lo:hi] = alpha * acc_sc[:, lo:hi] + jnp.dot(
            p.astype(v.dtype), v, preferred_element_type=jnp.float32)
        m_sc[j] = m_new

    @pl.when(s_idx == pl.num_programs(3) - 1)
    def _finalize():
        for j in range(group):
            lo, hi = j * head_dim, (j + 1) * head_dim
            inv = pl.reciprocal(l_sc[j], approx=True)             # (tq, 1)
            o_ref[:, lo:hi] = (acc_sc[:, lo:hi] * inv).astype(o_ref.dtype)


def _attn_footprint(tq, tkv, gdh, dh):
    q = 2 * tq * gdh * 2
    kv = 2 * 2 * 2 * tkv * dh * 2
    out = 2 * tq * gdh * 2
    acc = tq * gdh * 4
    ml = 2 * (gdh // dh) * tq * 128 * 4      # (G, tq, 1) scratch, lane-padded
    scores = tq * tkv * 4
    return q + kv + out + acc + ml + scores


def _attention_fused(qkv, B, T, C, KVH, G, Dh):
    """qkv: (B*T, C + 2*KVH*Dh) bf16 -> attention output (B*T, C) bf16."""
    H = KVH * G
    gdh = G * Dh
    vmem_limit, _ = _vmem_config()

    tq = _pick_tile(T, (512, 256, 128))
    tkv = _pick_tile(T, (512, 256, 128))
    # Keep the per-step working set well inside the scoped VMEM budget
    # (matters on v7x's 64 MiB VMEM with large G).
    while _attn_footprint(tq, tkv, gdh, Dh) > vmem_limit // 2:
        if tq >= tkv and tq >= 16 and tq % 2 == 0:
            tq //= 2
        elif tkv >= 16 and tkv % 2 == 0:
            tkv //= 2
        else:
            break
    nq, nkv = T // tq, T // tkv
    grid = (B, KVH, nq, nkv)

    q_spec = pl.BlockSpec((tq, gdh), lambda b, g, qi, s: (b * nq + qi, g))
    k_spec = pl.BlockSpec((tkv, Dh), lambda b, g, qi, s: (b * nkv + s, H + g))
    v_spec = pl.BlockSpec((tkv, Dh), lambda b, g, qi, s: (b * nkv + s, H + KVH + g))
    o_spec = pl.BlockSpec((tq, gdh), lambda b, g, qi, s: (b * nq + qi, g))

    kernel = functools.partial(_gqa_flash_kernel, group=G, head_dim=Dh)

    return pl.pallas_call(
        kernel,
        out_shape=jax.ShapeDtypeStruct((B * T, C), jnp.bfloat16),
        grid_spec=pltpu.PrefetchScalarGridSpec(
            num_scalar_prefetch=0,
            grid=grid,
            in_specs=[q_spec, k_spec, v_spec],
            out_specs=o_spec,
            scratch_shapes=[
                pltpu.VMEM((G, tq, 1), jnp.float32),    # running row max (per head)
                pltpu.VMEM((G, tq, 1), jnp.float32),    # running denom (per head)
                pltpu.VMEM((tq, gdh), jnp.float32),     # running PV accumulator
            ],
        ),
        compiler_params=pltpu.CompilerParams(
            dimension_semantics=("parallel", "parallel", "parallel", "arbitrary"),
            vmem_limit_bytes=vmem_limit,
        ),
    )(qkv, qkv, qkv)


def _attention_xla_fallback(qkv, B, T, C, KVH, G, Dh):
    # TODO(synk): head_dim not a multiple of 128 (or T not a multiple of 8) would
    # violate the (8,128) lane constraint of the column-sliced BlockSpecs; fall
    # back to plain XLA attention for those shapes (scale already folded into Wq).
    H = KVH * G
    kv_dim = KVH * Dh
    q = qkv[:, :C].reshape(B, T, H, Dh).transpose(0, 2, 1, 3)
    k = qkv[:, C:C + kv_dim].reshape(B, T, KVH, Dh).transpose(0, 2, 1, 3)
    v = qkv[:, C + kv_dim:].reshape(B, T, KVH, Dh).transpose(0, 2, 1, 3)
    k = jnp.repeat(k, G, axis=1)
    v = jnp.repeat(v, G, axis=1)
    s = jnp.einsum("bhqd,bhkd->bhqk", q, k, preferred_element_type=jnp.float32)
    w = jax.nn.softmax(s, axis=-1)
    o = jnp.einsum("bhqk,bhkd->bhqd", w.astype(q.dtype), v,
                   preferred_element_type=jnp.float32)
    return o.transpose(0, 2, 1, 3).reshape(B * T, C).astype(jnp.bfloat16)


# ----------------------------------------------------------------------------
# GQA module (parameters + forward glue)
# ----------------------------------------------------------------------------
class GQAPallas:
    def __init__(self, embed_dim, num_heads, num_key_value_groups=2, *, key):
        assert embed_dim % num_heads == 0
        assert num_heads % num_key_value_groups == 0
        self.embed_dim = embed_dim
        self.num_heads = num_heads
        self.kv_heads = num_key_value_groups
        self.head_dim = embed_dim // num_heads
        self.kv_dim = self.kv_heads * self.head_dim
        self.group = num_heads // self.kv_heads

        keys = jax.random.split(key, 8)

        def linear_params(kw, kb, in_f, out_f):
            bound = 1.0 / math.sqrt(in_f)
            w = jax.random.uniform(kw, (out_f, in_f), jnp.float32, -bound, bound)
            b = jax.random.uniform(kb, (out_f,), jnp.float32, -bound, bound)
            return w, b

        # f32 "PyTorch layout" parameters (kept for the reference check).
        self.q_w, self.q_b = linear_params(keys[0], keys[1], embed_dim, embed_dim)
        self.k_w, self.k_b = linear_params(keys[2], keys[3], embed_dim, self.kv_dim)
        self.v_w, self.v_b = linear_params(keys[4], keys[5], embed_dim, self.kv_dim)
        self.o_w, self.o_b = linear_params(keys[6], keys[7], embed_dim, embed_dim)

        # Kernel-side parameters, prepared once:
        #  - pre-transposed to (in, out), Q/K/V fused along the output dim
        #  - 1/sqrt(head_dim) folded into the Q weights + bias
        #  - bf16 MXU inputs; biases stay f32 for the f32 epilogue.
        scale = 1.0 / math.sqrt(self.head_dim)
        self.wqkv_t = jnp.concatenate(
            [self.q_w.T * scale, self.k_w.T, self.v_w.T], axis=1
        ).astype(jnp.bfloat16)
        self.bqkv = jnp.concatenate(
            [self.q_b * scale, self.k_b, self.v_b]
        )[None, :].astype(jnp.float32)
        self.wo_t = self.o_w.T.astype(jnp.bfloat16)
        self.bo = self.o_b[None, :].astype(jnp.float32)

    def __call__(self, x, attention_mask=None):
        if attention_mask is not None:
            # TODO(synk): additive attention_mask not implemented (would also need a
            # finite floor on m_new in the online softmax for fully-masked tiles).
            raise NotImplementedError("attention_mask is not supported")

        B, T, C = x.shape
        KVH, Dh, G = self.kv_heads, self.head_dim, self.group

        xb = x.astype(jnp.bfloat16).reshape(B * T, C)

        # Fused Q/K/V projection: x read from HBM once, one tiled bf16 matmul.
        qkv = _linear(xb, self.wqkv_t, self.bqkv, jnp.bfloat16)   # (B*T, C+2*kv_dim)

        # Attention reads Q/K/V directly out of the fused qkv buffer (column-sliced
        # BlockSpecs) and writes its output directly in (B*T, C) layout: no XLA
        # transpose round-trips through HBM.
        if Dh % 128 == 0 and T % 8 == 0:
            attn2d = _attention_fused(qkv, B, T, C, KVH, G, Dh)
        else:
            attn2d = _attention_xla_fallback(qkv, B, T, C, KVH, G, Dh)

        # f32 output matches the nn.Linear/f32 contract of the reference module.
        # (Emit bf16 here instead if the downstream consumer tolerates it.)
        out = _linear(attn2d, self.wo_t, self.bo, jnp.float32)
        return out.reshape(B, T, C)


# ----------------------------------------------------------------------------
# References for the sanity check
# ----------------------------------------------------------------------------
def gqa_reference_f32(mod: GQAPallas, x):
    """Exact mirror of the PyTorch forward in f32 (unfused weights)."""
    B, T, C = x.shape
    q = x @ mod.q_w.T + mod.q_b
    k = x @ mod.k_w.T + mod.k_b
    v = x @ mod.v_w.T + mod.v_b
    q = q.reshape(B, T, mod.num_heads, mod.head_dim).transpose(0, 2, 1, 3)
    k = k.reshape(B, T, mod.kv_heads, mod.head_dim).transpose(0, 2, 1, 3)
    v = v.reshape(B, T, mod.kv_heads, mod.head_dim).transpose(0, 2, 1, 3)
    k = jnp.repeat(k, mod.group, axis=1)
    v = jnp.repeat(v, mod.group, axis=1)
    s = jnp.einsum("bhqd,bhkd->bhqk", q, k) / math.sqrt(mod.head_dim)
    w = jax.nn.softmax(s, axis=-1)
    o = jnp.einsum("bhqk,bhkd->bhqd", w, v)
    o = o.transpose(0, 2, 1, 3).reshape(B, T, C)
    return o @ mod.o_w.T + mod.o_b


def gqa_reference_bf16(mod: GQAPallas, x):
    """Mirrors the kernel's dtype pipeline (bf16 MXU inputs, f32 accum/softmax)."""
    B, T, C = x.shape
    H, KVH, Dh, G = mod.num_heads, mod.kv_heads, mod.head_dim, mod.group
    xb = x.astype(jnp.bfloat16).reshape(B * T, C)
    qkv = (jnp.dot(xb, mod.wqkv_t, preferred_element_type=jnp.float32)
           + mod.bqkv).astype(jnp.bfloat16)
    q = qkv[:, :C].reshape(B, T, H, Dh).transpose(0, 2, 1, 3)
    k = qkv[:, C:C + mod.kv_dim].reshape(B, T, KVH, Dh).transpose(0, 2, 1, 3)
    v = qkv[:, C + mod.kv_dim:].reshape(B, T, KVH, Dh).transpose(0, 2, 1, 3)
    k = jnp.repeat(k, G, axis=1)
    v = jnp.repeat(v, G, axis=1)
    s = jnp.einsum("bhqd,bhkd->bhqk", q, k,
                   preferred_element_type=jnp.float32)  # scale folded into Wq
    w = jax.nn.softmax(s, axis=-1)
    o = jnp.einsum("bhqk,bhkd->bhqd", w.astype(jnp.bfloat16), v,
                   preferred_element_type=jnp.float32).astype(jnp.bfloat16)
    o2d = o.transpose(0, 2, 1, 3).reshape(B * T, C)
    out = jnp.dot(o2d, mod.wo_t, preferred_element_type=jnp.float32) + mod.bo
    return out.reshape(B, T, C)


if __name__ == "__main__":
    key = jax.random.PRNGKey(0)
    k_params, k_x = jax.random.split(key)

    # Small but lane-aligned shapes: head_dim=128 so the fused-layout attention
    # path (column-sliced BlockSpecs, trans-B QK^T, Q-tiling) is exercised, and
    # T=1024 so the online softmax runs over multiple KV tiles and Q tiles.
    B, T, C = 2, 1024, 512
    num_heads, kv_groups = 4, 2     # head_dim=128, kv_dim=256, group=2

    mod = GQAPallas(C, num_heads, kv_groups, key=k_params)
    x = jax.random.normal(k_x, (B, T, C), dtype=jnp.float32)

    out = jax.block_until_ready(mod(x))
    assert out.shape == (B, T, C)
    assert out.dtype == jnp.float32

    # Tight check vs a reference that mirrors the kernel's bf16/f32 pipeline.
    ref_bf16 = gqa_reference_bf16(mod, x)
    assert jnp.allclose(out, ref_bf16, atol=2e-2, rtol=2e-2), \
        "mismatch vs bf16-matched reference"

    # Looser semantic check vs the exact f32 PyTorch-equivalent forward.
    ref_f32 = gqa_reference_f32(mod, x)
    assert jnp.allclose(out, ref_f32, atol=5e-2, rtol=5e-2), \
        "mismatch vs f32 reference"

    print("KERNEL_OK")
</pallas_src>

<mosaic_0001>
module attributes {stable_mosaic.version = 11 : i64} {
  func.func @_linear_kernel(%arg0: i32, %arg1: i32, %arg2: i32, %arg3: memref<512x512xbf16, #tpu.memory_space<vmem>>, %arg4: memref<512x512xbf16, #tpu.memory_space<vmem>>, %arg5: memref<1x512xf32, #tpu.memory_space<vmem>>, %arg6: memref<512x512xbf16, #tpu.memory_space<vmem>>, %arg7: memref<512x512xf32, #tpu.memory_space<vmem>>) attributes {dimension_semantics = [#tpu.dimension_semantics<parallel>, #tpu.dimension_semantics<parallel>, #tpu.dimension_semantics<arbitrary>], iteration_bounds = array<i64: 4, 2, 1>, scalar_prefetch = 0 : i64, scratch_operands = 1 : i64, tpu.core_type = #tpu.core_type<tc>, window_params = [{transform_indices = @transform_0, window_bounds = array<i64: 512, 512>}, {transform_indices = @transform_1, window_bounds = array<i64: 512, 512>}, {transform_indices = @transform_2, window_bounds = array<i64: 1, 512>}, {transform_indices = @transform_3, window_bounds = array<i64: 512, 512>}]} {
    %c0_i32 = arith.constant 0 : i32
    %0 = arith.cmpi eq, %arg2, %c0_i32 : i32
    %1 = arith.extui %0 : i1 to i32
    %c0_i32_0 = arith.constant 0 : i32
    %2 = arith.cmpi ne, %1, %c0_i32_0 : i32
    scf.if %2 {
      %cst_10 = arith.constant 0.000000e+00 : f32
      %12 = vector.broadcast %cst_10 : f32 to vector<512x512xf32>
      %c0_11 = arith.constant 0 : index
      %c0_12 = arith.constant 0 : index
      %13 = vector.load %arg7[%c0_11, %c0_12] : memref<512x512xf32, #tpu.memory_space<vmem>>, vector<512x512xf32>
      tpu.vector_store %arg7[%c0_11, %c0_12], %12 {strides = array<i32>} : memref<512x512xf32, #tpu.memory_space<vmem>>, vector<512x512xf32>,
    } else {
    }
    %c0 = arith.constant 0 : index
    %c0_1 = arith.constant 0 : index
    %3 = vector.load %arg7[%c0, %c0_1] : memref<512x512xf32, #tpu.memory_space<vmem>>, vector<512x512xf32>
    %c0_2 = arith.constant 0 : index
    %c0_3 = arith.constant 0 : index
    %4 = vector.load %arg3[%c0_2, %c0_3] : memref<512x512xbf16, #tpu.memory_space<vmem>>, vector<512x512xbf16>
    %c0_4 = arith.constant 0 : index
    %c0_5 = arith.constant 0 : index
    %5 = vector.load %arg4[%c0_4, %c0_5] : memref<512x512xbf16, #tpu.memory_space<vmem>>, vector<512x512xbf16>
    %cst = arith.constant dense<0.000000e+00> : vector<512x512xf32>
    %6 = tpu.matmul %4, %5, %cst {dimension_numbers = #tpu.dot_dimension_numbers<[1], [0], [0], [1], [0, 0, 1, 1], [], []>} : vector<512x512xbf16>, vector<512x512xbf16>, vector<512x512xf32> -> vector<512x512xf32>
    %7 = arith.addf %3, %6 : vector<512x512xf32>
    %c0_6 = arith.constant 0 : index
    %c0_7 = arith.constant 0 : index
    %8 = vector.load %arg7[%c0_6, %c0_7] : memref<512x512xf32, #tpu.memory_space<vmem>>, vector<512x512xf32>
    tpu.vector_store %arg7[%c0_6, %c0_7], %7 {strides = array<i32>} : memref<512x512xf32, #tpu.memory_space<vmem>>, vector<512x512xf32>,
    %c0_i32_8 = arith.constant 0 : i32
    %9 = arith.cmpi eq, %arg2, %c0_i32_8 : i32
    %10 = arith.extui %9 : i1 to i32
    %c0_i32_9 = arith.constant 0 : i32
    %11 = arith.cmpi ne, %10, %c0_i32_9 : i32
    scf.if %11 {
      %c0_10 = arith.constant 0 : index
      %c0_11 = arith.constant 0 : index
      %12 = vector.load %arg7[%c0_10, %c0_11] : memref<512x512xf32, #tpu.memory_space<vmem>>, vector<512x512xf32>
      %c0_12 = arith.constant 0 : index
      %c0_13 = arith.constant 0 : index
      %13 = vector.load %arg5[%c0_12, %c0_13] : memref<1x512xf32, #tpu.memory_space<vmem>>, vector<1x512xf32>
      %14 = vector.broadcast %13 : vector<1x512xf32> to vector<512x512xf32>
      %15 = arith.addf %12, %14 : vector<512x512xf32>
      %16 = arith.truncf %15 : vector<512x512xf32> to vector<512x512xbf16>
      %c0_14 = arith.constant 0 : index
      %c0_15 = arith.constant 0 : index
      %17 = vector.load %arg6[%c0_14, %c0_15] : memref<512x512xbf16, #tpu.memory_space<vmem>>, vector<512x512xbf16>
      tpu.vector_store %arg6[%c0_14, %c0_15], %16 {strides = array<i32>} : memref<512x512xbf16, #tpu.memory_space<vmem>>, vector<512x512xbf16>,
    } else {
    }
    return
  }
  func.func @transform_0(%arg0: i32, %arg1: i32, %arg2: i32) -> (i32, i32) {
    %c0_i32 = arith.constant 0 : i32
    return %arg0, %arg2 : i32, i32
  }
  func.func @transform_1(%arg0: i32, %arg1: i32, %arg2: i32) -> (i32, i32) {
    %c0_i32 = arith.constant 0 : i32
    return %arg2, %arg1 : i32, i32
  }
  func.func @transform_2(%arg0: i32, %arg1: i32, %arg2: i32) -> (i32, i32) {
    %c0_i32 = arith.constant 0 : i32
    %c0_i32_0 = arith.constant 0 : i32
    return %c0_i32, %arg1 : i32, i32
  }
  func.func @transform_3(%arg0: i32, %arg1: i32, %arg2: i32) -> (i32, i32) {
    %c0_i32 = arith.constant 0 : i32
    return %arg0, %arg1 : i32, i32
  }
}

</mosaic_0001>

<llo_original>
// kernel: tpu_custom_call.1
$region0: #{tpu_custom_call.1}
  #allocation0 [shape = 'u32[]', space=smem, size = 0x4, offset = 0x4, fixed_abs, tag = 'smem constant byte address 0x4 - core index']
  #allocation1 [shape = 'u32[144,128]{1,0:T(1,128)}', space=vmem, size = 0x12000, scoped, tag = 'internal scratch']
  #allocation2 [shape = 'f32[512,512]{1,0:T(8,128)}', space=vmem, size = 0x100000, scoped, tag = 'scratch operand']
  %s0 = inlined_call_operand.hbm [shape: bf16[2048,512], index: 0, kind: input, shape index: {}]
  %s1 = inlined_call_operand.hbm [shape: bf16[512,1024], index: 1, kind: input, shape index: {}]
  %s2 = inlined_call_operand.hbm [shape: f32[1,1024], index: 2, kind: input, shape index: {}]
  %s3 = inlined_call_operand.hbm [shape: bf16[2048,1024], index: 3, kind: output, shape index: {}]
  %s4 = sld [smem:[#allocation0]]
  $region65: #{tpu_custom_call.1} parent=0
    _
  %s6 = ssub.s32 1, %s4
  %s7 = scalar_select 0, %s6, %s4
  $region1: #{tpu_custom_call.1} parent=0
    #allocation3 [shape = 'u8[1048576]{0}', space=vmem, size = 0x100000, scoped, tag = 'input window, operand 0']
    #allocation4 [shape = 's32[2]{0}', space=sflag, size = 0x8, scoped, tag = 'scoped memory for tpu_custom_call.1']
    #allocation5 [shape = 's32[2]{0}', space=sflag, size = 0x8, scoped, tag = 'scoped memory for tpu_custom_call.1']
    #allocation6 [shape = 'u8[1048576]{0}', space=vmem, size = 0x100000, scoped, tag = 'input window, operand 1']
    #allocation7 [shape = 's32[2]{0}', space=sflag, size = 0x8, scoped, tag = 'scoped memory for tpu_custom_call.1']
    #allocation8 [shape = 'u8[4096]{0}', space=vmem, size = 0x1000, scoped, tag = 'input window, operand 2']
    #allocation9 [shape = 'u8[1048576]{0}', space=vmem, size = 0x100000, scoped, tag = 'output window, operand 0']
    %8 = vsyncpa [#allocation4], 0
    %s9 = scalar_lea.sflag [#allocation4], 1
    %10 = vsyncpa %s9, 0
    %11 = vsyncpa [#allocation7], 0
    %s12 = scalar_lea.sflag [#allocation7], 1
    %13 = vsyncpa %s12, 0
    %14 = vsyncpa [#allocation5], 0
    %s15 = scalar_lea.sflag [#allocation5], 1
    %16 = vsyncpa %s15, 0
    loop: start=0, step=1, limit=10
    $region2: #{tpu_custom_call.1} parent=1 // loop_pre_header
      _
    $region3: #{tpu_custom_call.1} parent=1 // loop_header
      %s18 = sphi 0, %s22
      %p19 = scmp.ge.s32.totalorder %s18, 10
      %s25 = sphi 0, %s44
      %s26 = sphi 0, %s40
      %s27 = sphi 0, %s36
      %s28 = sphi 0, %s25
      %s29 = sphi 0, %s26
      %s30 = sphi 0, %s27
      %s31 = sphi 0, %s28
      %s32 = sphi 0, %s29
      %s33 = sphi 0, %s30
      %s49 = sphi 0, %s51
      %s52 = sphi 0, %s49
      %s53 = sphi 0, %s52
      %s69 = sphi 0, %s53
      %s77 = sphi 0, %s79
      %s80 = sphi 0, %s77
      %s81 = sphi 0, %s80
      %s97 = sphi 0, %s81
      %s103 = sphi 0, %s105
      %s106 = sphi 0, %s103
      %s107 = sphi 0, %s106
      %s123 = sphi 0, %s107
      %s131 = sphi 0, %s133
      %s134 = sphi 0, %s131
      %s135 = sphi 0, %s134
      %s151 = sphi 0, %s135
    $region4: #{tpu_custom_call.1} parent=1 // loop_header_branch
      %21 = sbr.rel (%p19) target = $region8
    $region5: #{tpu_custom_call.1} parent=1 // loop_body
      %s23 = ssub.s32 %s18, 1
      %s24 = ssub.s32 %s18, 2
      %s34 = sadd.s32 1, %s27
      %p35 = scmp.ge.s32.totalorder %s34, 1
      %s36 = scalar_select %p35, 0, %s34
      %s37 = sadd.s32 1, %s26
      %s38 = scalar_select %p35, %s37, %s26
      %p39 = scmp.ge.s32.totalorder %s38, 2
      %s40 = scalar_select %p39, 0, %s38
      %s41 = sadd.s32 1, %s25
      %s42 = scalar_select %p39, %s41, %s25
      %p43 = scmp.ge.s32.totalorder %s42, 4
      %s44 = scalar_select %p43, 0, %s42
      %s45 = ssub.s32 %s25, %s44
      %s46 = ssub.s32 %s27, %s36
      %s47 = sor.u32 %s45, %s46
      %p48 = scmp.eq.s32.totalorder %s47, 0
      %s50 = sadd.s32 %s49, 1
      %s51 = scalar_select %p48, %s49, %s50
      %p54 = pneg %p48
      %p55 = scmp.eq.s32.totalorder %s18, 7
      %p56 = por %p54, %p55
      %p57 = scmp.ne.s32.totalorder %s49, %s52
      %p58 = scmp.eq.s32.totalorder %s18, 0
      %p59 = por %p57, %p58
      %p60 = scmp.ne.s32.totalorder %s49, %s52
      %p61 = scmp.eq.s32.totalorder %s23, 7
      %p62 = por %p60, %p61
      %p63 = scmp.ne.s32.totalorder %s52, %s53
      %p64 = scmp.eq.s32.totalorder %s23, 0
      %p65 = por %p63, %p64
      %p66 = scmp.ne.s32.totalorder %s52, %s53
      %p67 = scmp.eq.s32.totalorder %s24, 7
      %p68 = por %p66, %p67
      %p70 = scmp.ne.s32.totalorder %s53, %s69
      %p71 = scmp.eq.s32.totalorder %s24, 0
      %p72 = por %p70, %p71
      %s73 = ssub.s32 %s27, %s36
      %s74 = ssub.s32 %s26, %s40
      %s75 = sor.u32 %s73, %s74
      %p76 = scmp.eq.s32.totalorder %s75, 0
      %s78 = sadd.s32 %s77, 1
      %s79 = scalar_select %p76, %s77, %s78
      %p82 = pneg %p76
      %p83 = scmp.eq.s32.totalorder %s18, 7
      %p84 = por %p82, %p83
      %p85 = scmp.ne.s32.totalorder %s77, %s80
      %p86 = scmp.eq.s32.totalorder %s18, 0
      %p87 = por %p85, %p86
      %p88 = scmp.ne.s32.totalorder %s77, %s80
      %p89 = scmp.eq.s32.totalorder %s23, 7
      %p90 = por %p88, %p89
      %p91 = scmp.ne.s32.totalorder %s80, %s81
      %p92 = scmp.eq.s32.totalorder %s23, 0
      %p93 = por %p91, %p92
      %p94 = scmp.ne.s32.totalorder %s80, %s81
      %p95 = scmp.eq.s32.totalorder %s24, 7
      %p96 = por %p94, %p95
      %p98 = scmp.ne.s32.totalorder %s81, %s97
      %p99 = scmp.eq.s32.totalorder %s24, 0
      %p100 = por %p98, %p99
      %s101 = ssub.s32 %s26, %s40
      %p102 = scmp.eq.s32.totalorder %s101, 0
      %s104 = sadd.s32 %s103, 1
      %s105 = scalar_select %p102, %s103, %s104
      %p108 = pneg %p102
      %p109 = scmp.eq.s32.totalorder %s18, 7
      %p110 = por %p108, %p109
      %p111 = scmp.ne.s32.totalorder %s103, %s106
      %p112 = scmp.eq.s32.totalorder %s18, 0
      %p113 = por %p111, %p112
      %p114 = scmp.ne.s32.totalorder %s103, %s106
      %p115 = scmp.eq.s32.totalorder %s23, 7
      %p116 = por %p114, %p115
      %p117 = scmp.ne.s32.totalorder %s106, %s107
      %p118 = scmp.eq.s32.totalorder %s23, 0
      %p119 = por %p117, %p118
      %p120 = scmp.ne.s32.totalorder %s106, %s107
      %p121 = scmp.eq.s32.totalorder %s24, 7
      %p122 = por %p120, %p121
      %p124 = scmp.ne.s32.totalorder %s107, %s123
      %p125 = scmp.eq.s32.totalorder %s24, 0
      %p126 = por %p124, %p125
      %s127 = ssub.s32 %s25, %s44
      %s128 = ssub.s32 %s26, %s40
      %s129 = sor.u32 %s127, %s128
      %p130 = scmp.eq.s32.totalorder %s129, 0
      %s132 = sadd.s32 %s131, 1
      %s133 = scalar_select %p130, %s131, %s132
      %p136 = pneg %p130
      %p137 = scmp.eq.s32.totalorder %s18, 7
      %p138 = por %p136, %p137
      %p139 = scmp.ne.s32.totalorder %s131, %s134
      %p140 = scmp.eq.s32.totalorder %s18, 0
      %p141 = por %p139, %p140
      %p142 = scmp.ne.s32.totalorder %s131, %s134
      %p143 = scmp.eq.s32.totalorder %s23, 7
      %p144 = por %p142, %p143
      %p145 = scmp.ne.s32.totalorder %s134, %s135
      %p146 = scmp.eq.s32.totalorder %s23, 0
      %p147 = por %p145, %p146
      %p148 = scmp.ne.s32.totalorder %s134, %s135
      %p149 = scmp.eq.s32.totalorder %s24, 7
      %p150 = por %p148, %p149
      %p152 = scmp.ne.s32.totalorder %s135, %s151
      %p153 = scmp.eq.s32.totalorder %s24, 0
      %p154 = por %p152, %p153
      %p155 = scmp.le.s32.totalorder 1, %s18
      %p156 = scmp.lt.s32.totalorder %s18, 9
      %p157 = pnand %p155, %p156
      %p158 = pneg %p157
      // Predicated region
      $region9: #{tpu_custom_call.1} parent=5 // pred_check
        _
      $region10: #{tpu_custom_call.1} parent=5 // pred_check_branch
        %160 = sbr.rel (%p157) target = $region12
      $region11: #{tpu_custom_call.1} parent=5 // pred_region
        %s161 = ssub.s32 %s18, 1
      $region12: #{tpu_custom_call.1} parent=5 // pred_fallthru
        _
      %p162 = scmp.lt.s32.totalorder %s18, 8
      // Predicated region
      $region13: #{tpu_custom_call.1} parent=5 // pred_check
        %p163 = pneg %p162
      $region14: #{tpu_custom_call.1} parent=5 // pred_check_branch
        %165 = sbr.rel (%p163) target = $region16
      $region15: #{tpu_custom_call.1} parent=5 // pred_region
        // Predicated region
        $region17: #{tpu_custom_call.1} parent=15 // pred_check
          %p166 = pneg %p59
        $region18: #{tpu_custom_call.1} parent=15 // pred_check_branch
          %168 = sbr.rel (%p166) target = $region20
        $region19: #{tpu_custom_call.1} parent=15 // pred_region
          %s169 = sand.u32 %s49, 1
          %s170 = scalar_lea.sflag [#allocation4], %s169
          %s171 = sand.u32 %s49, 1
          %s172 = smul.addr %s171, 1024
          %s173 = scalar_lea.vmem [#allocation3], %s172
          %s174 = smul.u32 64, %s25
          %s175 = smul.u32 4, %s27
          %s177 = ssub.s32 16384, 16384
          %178 = vsyncadd %s170, %s177
          %s179 = smul.addr %s174, 4
          %s180 = sadd.s32 %s175, %s179
          %s181 = smul.addr %s180, 64
          %s182 = scalar_lea.hbm %s0, %s181
          %s183 = sshll.u32 %s173, 4
          %s184 = int_to_ptr.vmem [resolvable:$true] %s183
          %189 = dma.hbm_to_vmem [thread:$0]  %s182, 16384, %s184, %s170, 256, 256, 16
        $region20: #{tpu_custom_call.1} parent=15 // pred_fallthru
          _
        // Predicated region
        $region21: #{tpu_custom_call.1} parent=15 // pred_check
          %p190 = pneg %p87
        $region22: #{tpu_custom_call.1} parent=15 // pred_check_branch
          %192 = sbr.rel (%p190) target = $region24
        $region23: #{tpu_custom_call.1} parent=15 // pred_region
          %s193 = sand.u32 %s18, 1
          %s194 = scalar_lea.sflag [#allocation7], %s193
          %s195 = sand.u32 %s77, 1
          %s196 = smul.addr %s195, 1024
          %s197 = scalar_lea.vmem [#allocation6], %s196
          %s198 = smul.u32 64, %s27
          %s199 = smul.u32 4, %s26
          %s201 = ssub.s32 16384, 16384
          %202 = vsyncadd %s194, %s201
          %s203 = smul.addr %s198, 8
          %s204 = sadd.s32 %s199, %s203
          %s205 = smul.addr %s204, 64
          %s206 = scalar_lea.hbm %s1, %s205
          %s207 = sshll.u32 %s197, 4
          %s208 = int_to_ptr.vmem [resolvable:$true] %s207
          %213 = dma.hbm_to_vmem [thread:$0]  %s206, 16384, %s208, %s194, 512, 256, 16
        $region24: #{tpu_custom_call.1} parent=15 // pred_fallthru
          _
        // Predicated region
        $region25: #{tpu_custom_call.1} parent=15 // pred_check
          %p214 = pneg %p113
        $region26: #{tpu_custom_call.1} parent=15 // pred_check_branch
          %216 = sbr.rel (%p214) target = $region28
        $region27: #{tpu_custom_call.1} parent=15 // pred_region
          %s217 = sand.u32 %s18, 1
          %s218 = scalar_lea.sflag [#allocation7], %s217
          %s219 = sand.u32 %s103, 1
          %s220 = smul.addr %s219, 4
          %s221 = scalar_lea.vmem [#allocation8], %s220
          %s222 = smul.u32 4, %s26
          %s224 = ssub.s32 64, 64
          %225 = vsyncadd %s218, %s224
          %s226 = smul.addr %s222, 16
          %s227 = scalar_lea.hbm %s2, %s226
          %s229 = sshll.u32 %s221, 4
          %s230 = int_to_ptr.vmem [resolvable:$true] %s229
          %232 = dma.hbm_to_vmem [thread:$0]  %s227, 64, %s230, %s218
        $region28: #{tpu_custom_call.1} parent=15 // pred_fallthru
          _
      $region16: #{tpu_custom_call.1} parent=5 // pred_fallthru
        _
      %p233 = scmp.le.s32.totalorder 1, %s18
      %p234 = scmp.lt.s32.totalorder %s18, 9
      %p235 = pnand %p233, %p234
      %p236 = pneg %p235
      // Predicated region
      $region29: #{tpu_custom_call.1} parent=5 // pred_check
        _
      $region30: #{tpu_custom_call.1} parent=5 // pred_check_branch
        %238 = sbr.rel (%p235) target = $region32
      $region31: #{tpu_custom_call.1} parent=5 // pred_region
        %s239 = ssub.s32 %s18, 1
        %s240 = sand.u32 %s52, 1
        %s241 = scalar_lea.sflag [#allocation4], %s240
        %s242 = sand.u32 %s52, 1
        %s243 = smul.addr %s242, 1024
        %s244 = scalar_lea.vmem [#allocation3], %s243
        // Predicated region
        $region33: #{tpu_custom_call.1} parent=31 // pred_check
          %p245 = pneg %p65
        $region34: #{tpu_custom_call.1} parent=31 // pred_check_branch
          %247 = sbr.rel (%p245) target = $region36
        $region35: #{tpu_custom_call.1} parent=31 // pred_region
          %248 = dma.done %s241, 16384
        $region36: #{tpu_custom_call.1} parent=31 // pred_fallthru
          _
        %s249 = sand.u32 %s23, 1
        %s250 = scalar_lea.sflag [#allocation7], %s249
        %s251 = sand.u32 %s80, 1
        %s252 = smul.addr %s251, 1024
        %s253 = scalar_lea.vmem [#allocation6], %s252
        // Predicated region
        $region37: #{tpu_custom_call.1} parent=31 // pred_check
          %p254 = pneg %p93
        $region38: #{tpu_custom_call.1} parent=31 // pred_check_branch
          %256 = sbr.rel (%p254) target = $region40
        $region39: #{tpu_custom_call.1} parent=31 // pred_region
          %257 = dma.done %s250, 16384
        $region40: #{tpu_custom_call.1} parent=31 // pred_fallthru
          _
        %s258 = sand.u32 %s23, 1
        %s259 = scalar_lea.sflag [#allocation7], %s258
        %s260 = sand.u32 %s106, 1
        %s261 = smul.addr %s260, 4
        %s262 = scalar_lea.vmem [#allocation8], %s261
        // Predicated region
        $region41: #{tpu_custom_call.1} parent=31 // pred_check
          %p263 = pneg %p119
        $region42: #{tpu_custom_call.1} parent=31 // pred_check_branch
          %265 = sbr.rel (%p263) target = $region44
        $region43: #{tpu_custom_call.1} parent=31 // pred_region
          %266 = dma.done %s259, 64
        $region44: #{tpu_custom_call.1} parent=31 // pred_fallthru
          _
        %s267 = sand.u32 %s52, 1
        %s268 = scalar_lea.sflag [#allocation4], %s267
        %s269 = sand.u32 %s52, 1
        %s270 = smul.addr %s269, 1024
        %s271 = scalar_lea.vmem [#allocation3], %s270
        %p272 = pneg %p65
        %p273 = pneg %p62
        %s274 = sand.u32 %s23, 1
        %s275 = scalar_lea.sflag [#allocation7], %s274
        %s276 = sand.u32 %s80, 1
        %s277 = smul.addr %s276, 1024
        %s278 = scalar_lea.vmem [#allocation6], %s277
        %p279 = pneg %p93
        %p280 = pneg %p90
        %s281 = sand.u32 %s23, 1
        %s282 = scalar_lea.sflag [#allocation7], %s281
        %s283 = sand.u32 %s106, 1
        %s284 = smul.addr %s283, 4
        %s285 = scalar_lea.vmem [#allocation8], %s284
        %p286 = pneg %p119
        %p287 = pneg %p116
        %p288 = pneg %p147
        %p289 = pneg %p144
        %s290 = sand.u32 %s134, 1
        %s291 = scalar_lea.sflag [#allocation5], %s290
        %s292 = sand.u32 %s134, 1
        %s293 = smul.addr %s292, 1024
        %s294 = scalar_lea.vmem [#allocation9], %s293
        %s295 = smul.u32 64, %s28
        %s296 = smul.u32 4, %s30
        %s297 = smul.u32 64, %s30
        %s298 = smul.u32 4, %s29
        %s299 = smul.u32 4, %s29
        %s300 = smul.u32 64, %s28
        %s301 = smul.u32 4, %s29
        %p302 = scmp.eq.s32.totalorder %s30, 0
        // Predicated region
        $region45: #{tpu_custom_call.1} parent=31 // pred_check
          %p303 = pneg %p302
        $region46: #{tpu_custom_call.1} parent=31 // pred_check_branch
          %305 = sbr.rel (%p303) target = $region48
        $region47: #{tpu_custom_call.1} parent=31 // pred_region
          %306 = vst [vmem:[#allocation2] sm:$0xff] 0.0
          %307 = vst [vmem:[#allocation2 + $0x8] sm:$0xff] 0.0
          %308 = vst [vmem:[#allocation2 + $0x10] sm:$0xff] 0.0
          %309 = vst [vmem:[#allocation2 + $0x18] sm:$0xff] 0.0
          %310 = vst [vmem:[#allocation2 + $0x20] sm:$0xff] 0.0
          %311 = vst [vmem:[#allocation2 + $0x28] sm:$0xff] 0.0
          %312 = vst [vmem:[#allocation2 + $0x30] sm:$0xff] 0.0
          %313 = vst [vmem:[#allocation2 + $0x38] sm:$0xff] 0.0
          %314 = vst [vmem:[#allocation2 + $0x40] sm:$0xff] 0.0
          %315 = vst [vmem:[#allocation2 + $0x48] sm:$0xff] 0.0
          %316 = vst [vmem:[#allocation2 + $0x50] sm:$0xff] 0.0
          %317 = vst [vmem:[#allocation2 + $0x58] sm:$0xff] 0.0
          %318 = vst [vmem:[#allocation2 + $0x60] sm:$0xff] 0.0
          %319 = vst [vmem:[#allocation2 + $0x68] sm:$0xff] 0.0
          %320 = vst [vmem:[#allocation2 + $0x70] sm:$0xff] 0.0
          %321 = vst [vmem:[#allocation2 + $0x78] sm:$0xff] 0.0
          %322 = vst [vmem:[#allocation2 + $0x80] sm:$0xff] 0.0
          %323 = vst [vmem:[#allocation2 + $0x88] sm:$0xff] 0.0
          %324 = vst [vmem:[#allocation2 + $0x90] sm:$0xff] 0.0
          %325 = vst [vmem:[#allocation2 + $0x98] sm:$0xff] 0.0
          %326 = vst [vmem:[#allocation2 + $0xa0] sm:$0xff] 0.0
          %327 = vst [vmem:[#allocation2 + $0xa8] sm:$0xff] 0.0
          %328 = vst [vmem:[#allocation2 + $0xb0] sm:$0xff] 0.0
          %329 = vst [vmem:[#allocation2 + $0xb8] sm:$0xff] 0.0
          %330 = vst [vmem:[#allocation2 + $0xc0] sm:$0xff] 0.0
          %331 = vst [vmem:[#allocation2 + $0xc8] sm:$0xff] 0.0
          %332 = vst [vmem:[#allocation2 + $0xd0] sm:$0xff] 0.0
          %333 = vst [vmem:[#allocation2 + $0xd8] sm:$0xff] 0.0
          %334 = vst [vmem:[#allocation2 + $0xe0] sm:$0xff] 0.0
          %335 = vst [vmem:[#allocation2 + $0xe8] sm:$0xff] 0.0
          %336 = vst [vmem:[#allocation2 + $0xf0] sm:$0xff] 0.0
          %337 = vst [vmem:[#allocation2 + $0xf8] sm:$0xff] 0.0
          %338 = vst [vmem:[#allocation2 + $0x100] sm:$0xff] 0.0
          %339 = vst [vmem:[#allocation2 + $0x108] sm:$0xff] 0.0
          %340 = vst [vmem:[#allocation2 + $0x110] sm:$0xff] 0.0
          %341 = vst [vmem:[#allocation2 + $0x118] sm:$0xff] 0.0
          %342 = vst [vmem:[#allocation2 + $0x120] sm:$0xff] 0.0
          %343 = vst [vmem:[#allocation2 + $0x128] sm:$0xff] 0.0
          %344 = vst [vmem:[#allocation2 + $0x130] sm:$0xff] 0.0
          %345 = vst [vmem:[#allocation2 + $0x138] sm:$0xff] 0.0
          %346 = vst [vmem:[#allocation2 + $0x140] sm:$0xff] 0.0
          %347 = vst [vmem:[#allocation2 + $0x148] sm:$0xff] 0.0
          %348 = vst [vmem:[#allocation2 + $0x150] sm:$0xff] 0.0
          %349 = vst [vmem:[#allocation2 + $0x158] sm:$0xff] 0.0
          %350 = vst [vmem:[#allocation2 + $0x160] sm:$0xff] 0.0
          %351 = vst [vmem:[#allocation2 + $0x168] sm:$0xff] 0.0
          %352 = vst [vmem:[#allocation2 + $0x170] sm:$0xff] 0.0
          %353 = vst [vmem:[#allocation2 + $0x178] sm:$0xff] 0.0
          %354 = vst [vmem:[#allocation2 + $0x180] sm:$0xff] 0.0
          %355 = vst [vmem:[#allocation2 + $0x188] sm:$0xff] 0.0
          %356 = vst [vmem:[#allocation2 + $0x190] sm:$0xff] 0.0
          %357 = vst [vmem:[#allocation2 + $0x198] sm:$0xff] 0.0
          %358 = vst [vmem:[#allocation2 + $0x1a0] sm:$0xff] 0.0
          %359 = vst [vmem:[#allocation2 + $0x1a8] sm:$0xff] 0.0
          %360 = vst [vmem:[#allocation2 + $0x1b0] sm:$0xff] 0.0
          %361 = vst [vmem:[#allocation2 + $0x1b8] sm:$0xff] 0.0
          %362 = vst [vmem:[#allocation2 + $0x1c0] sm:$0xff] 0.0
          %363 = vst [vmem:[#allocation2 + $0x1c8] sm:$0xff] 0.0
          %364 = vst [vmem:[#allocation2 + $0x1d0] sm:$0xff] 0.0
          %365 = vst [vmem:[#allocation2 + $0x1d8] sm:$0xff] 0.0
          %366 = vst [vmem:[#allocation2 + $0x1e0] sm:$0xff] 0.0
          %367 = vst [vmem:[#allocation2 + $0x1e8] sm:$0xff] 0.0
          %368 = vst [vmem:[#allocation2 + $0x1f0] sm:$0xff] 0.0
          %369 = vst [vmem:[#allocation2 + $0x1f8] sm:$0xff] 0.0
          %370 = vst [vmem:[#allocation2 + $0x200] sm:$0xff] 0.0
          %371 = vst [vmem:[#allocation2 + $0x208] sm:$0xff] 0.0
          %372 = vst [vmem:[#allocation2 + $0x210] sm:$0xff] 0.0
          %373 = vst [vmem:[#allocation2 + $0x218] sm:$0xff] 0.0
          %374 = vst [vmem:[#allocation2 + $0x220] sm:$0xff] 0.0
          %375 = vst [vmem:[#allocation2 + $0x228] sm:$0xff] 0.0
          %376 = vst [vmem:[#allocation2 + $0x230] sm:$0xff] 0.0
          %377 = vst [vmem:[#allocation2 + $0x238] sm:$0xff] 0.0
          %378 = vst [vmem:[#allocation2 + $0x240] sm:$0xff] 0.0
          %379 = vst [vmem:[#allocation2 + $0x248] sm:$0xff] 0.0
          %380 = vst [vmem:[#allocation2 + $0x250] sm:$0xff] 0.0
          %381 = vst [vmem:[#allocation2 + $0x258] sm:$0xff] 0.0
          %382 = vst [vmem:[#allocation2 + $0x260] sm:$0xff] 0.0
          %383 = vst [vmem:[#allocation2 + $0x268] sm:$0xff] 0.0
          %384 = vst [vmem:[#allocation2 + $0x270] sm:$0xff] 0.0
          %385 = vst [vmem:[#allocation2 + $0x278] sm:$0xff] 0.0
          %386 = vst [vmem:[#allocation2 + $0x280] sm:$0xff] 0.0
          %387 = vst [vmem:[#allocation2 + $0x288] sm:$0xff] 0.0
          %388 = vst [vmem:[#allocation2 + $0x290] sm:$0xff] 0.0
          %389 = vst [vmem:[#allocation2 + $0x298] sm:$0xff] 0.0
          %390 = vst [vmem:[#allocation2 + $0x2a0] sm:$0xff] 0.0
          %391 = vst [vmem:[#allocation2 + $0x2a8] sm:$0xff] 0.0
          %392 = vst [vmem:[#allocation2 + $0x2b0] sm:$0xff] 0.0
          %393 = vst [vmem:[#allocation2 + $0x2b8] sm:$0xff] 0.0
          %394 = vst [vmem:[#allocation2 + $0x2c0] sm:$0xff] 0.0
          %395 = vst [vmem:[#allocation2 + $0x2c8] sm:$0xff] 0.0
          %396 = vst [vmem:[#allocation2 + $0x2d0] sm:$0xff] 0.0
          %397 = vst [vmem:[#allocation2 + $0x2d8] sm:$0xff] 0.0
          %398 = vst [vmem:[#allocation2 + $0x2e0] sm:$0xff] 0.0
          %399 = vst [vmem:[#allocation2 + $0x2e8] sm:$0xff] 0.0
          %400 = vst [vmem:[#allocation2 + $0x2f0] sm:$0xff] 0.0
          %401 = vst [vmem:[#allocation2 + $0x2f8] sm:$0xff] 0.0
          %402 = vst [vmem:[#allocation2 + $0x300] sm:$0xff] 0.0
          %403 = vst [vmem:[#allocation2 + $0x308] sm:$0xff] 0.0
          %404 = vst [vmem:[#allocation2 + $0x310] sm:$0xff] 0.0
          %405 = vst [vmem:[#allocation2 + $0x318] sm:$0xff] 0.0
          %406 = vst [vmem:[#allocation2 + $0x320] sm:$0xff] 0.0
          %407 = vst [vmem:[#allocation2 + $0x328] sm:$0xff] 0.0
          %408 = vst [vmem:[#allocation2 + $0x330] sm:$0xff] 0.0
          %409 = vst [vmem:[#allocation2 + $0x338] sm:$0xff] 0.0
          %410 = vst [vmem:[#allocation2 + $0x340] sm:$0xff] 0.0
          %411 = vst [vmem:[#allocation2 + $0x348] sm:$0xff] 0.0
          %412 = vst [vmem:[#allocation2 + $0x350] sm:$0xff] 0.0
          %413 = vst [vmem:[#allocation2 + $0x358] sm:$0xff] 0.0
          %414 = vst [vmem:[#allocation2 + $0x360] sm:$0xff] 0.0
          %415 = vst [vmem:[#allocation2 + $0x368] sm:$0xff] 0.0
          %416 = vst [vmem:[#allocation2 + $0x370] sm:$0xff] 0.0
          %417 = vst [vmem:[#allocation2 + $0x378] sm:$0xff] 0.0
          %418 = vst [vmem:[#allocation2 + $0x380] sm:$0xff] 0.0
          %419 = vst [vmem:[#allocation2 + $0x388] sm:$0xff] 0.0
          %420 = vst [vmem:[#allocation2 + $0x390] sm:$0xff] 0.0
          %421 = vst [vmem:[#allocation2 + $0x398] sm:$0xff] 0.0
          %422 = vst [vmem:[#allocation2 + $0x3a0] sm:$0xff] 0.0
          %423 = vst [vmem:[#allocation2 + $0x3a8] sm:$0xff] 0.0
          %424 = vst [vmem:[#allocation2 + $0x3b0] sm:$0xff] 0.0
          %425 = vst [vmem:[#allocation2 + $0x3b8] sm:$0xff] 0.0
          %426 = vst [vmem:[#allocation2 + $0x3c0] sm:$0xff] 0.0
          %427 = vst [vmem:[#allocation2 + $0x3c8] sm:$0xff] 0.0
          %428 = vst [vmem:[#allocation2 + $0x3d0] sm:$0xff] 0.0
          %429 = vst [vmem:[#allocation2 + $0x3d8] sm:$0xff] 0.0
          %430 = vst [vmem:[#allocation2 + $0x3e0] sm:$0xff] 0.0
          %431 = vst [vmem:[#allocation2 + $0x3e8] sm:$0xff] 0.0
          %432 = vst [vmem:[#allocation2 + $0x3f0] sm:$0xff] 0.0
          %433 = vst [vmem:[#allocation2 + $0x3f8] sm:$0xff] 0.0
          %434 = vst [vmem:[#allocation2 + $0x400] sm:$0xff] 0.0
          %435 = vst [vmem:[#allocation2 + $0x408] sm:$0xff] 0.0
          %436 = vst [vmem:[#allocation2 + $0x410] sm:$0xff] 0.0
          %437 = vst [vmem:[#allocation2 + $0x418] sm:$0xff] 0.0
          %438 = vst [vmem:[#allocation2 + $0x420] sm:$0xff] 0.0
          %439 = vst [vmem:[#allocation2 + $0x428] sm:$0xff] 0.0
          %440 = vst [vmem:[#allocation2 + $0x430] sm:$0xff] 0.0
          %441 = vst [vmem:[#allocation2 + $0x438] sm:$0xff] 0.0
          %442 = vst [vmem:[#allocation2 + $0x440] sm:$0xff] 0.0
          %443 = vst [vmem:[#allocation2 + $0x448] sm:$0xff] 0.0
          %444 = vst [vmem:[#allocation2 + $0x450] sm:$0xff] 0.0
          %445 = vst [vmem:[#allocation2 + $0x458] sm:$0xff] 0.0
          %446 = vst [vmem:[#allocation2 + $0x460] sm:$0xff] 0.0
          %447 = vst [vmem:[#allocation2 + $0x468] sm:$0xff] 0.0
          %448 = vst [vmem:[#allocation2 + $0x470] sm:$0xff] 0.0
          %449 = vst [vmem:[#allocation2 + $0x478] sm:$0xff] 0.0
          %450 = vst [vmem:[#allocation2 + $0x480] sm:$0xff] 0.0
          %451 = vst [vmem:[#allocation2 + $0x488] sm:$0xff] 0.0
          %452 = vst [vmem:[#allocation2 + $0x490] sm:$0xff] 0.0
          %453 = vst [vmem:[#allocation2 + $0x498] sm:$0xff] 0.0
          %454 = vst [vmem:[#allocation2 + $0x4a0] sm:$0xff] 0.0
          %455 = vst [vmem:[#allocation2 + $0x4a8] sm:$0xff] 0.0
          %456 = vst [vmem:[#allocation2 + $0x4b0] sm:$0xff] 0.0
          %457 = vst [vmem:[#allocation2 + $0x4b8] sm:$0xff] 0.0
          %458 = vst [vmem:[#allocation2 + $0x4c0] sm:$0xff] 0.0
          %459 = vst [vmem:[#allocation2 + $0x4c8] sm:$0xff] 0.0
          %460 = vst [vmem:[#allocation2 + $0x4d0] sm:$0xff] 0.0
          %461 = vst [vmem:[#allocation2 + $0x4d8] sm:$0xff] 0.0
          %462 = vst [vmem:[#allocation2 + $0x4e0] sm:$0xff] 0.0
          %463 = vst [vmem:[#allocation2 + $0x4e8] sm:$0xff] 0.0
          %464 = vst [vmem:[#allocation2 + $0x4f0] sm:$0xff] 0.0
          %465 = vst [vmem:[#allocation2 + $0x4f8] sm:$0xff] 0.0
          %466 = vst [vmem:[#allocation2 + $0x500] sm:$0xff] 0.0
          %467 = vst [vmem:[#allocation2 + $0x508] sm:$0xff] 0.0
          %468 = vst [vmem:[#allocation2 + $0x510] sm:$0xff] 0.0
          %469 = vst [vmem:[#allocation2 + $0x518] sm:$0xff] 0.0
          %470 = vst [vmem:[#allocation2 + $0x520] sm:$0xff] 0.0
          %471 = vst [vmem:[#allocation2 + $0x528] sm:$0xff] 0.0
          %472 = vst [vmem:[#allocation2 + $0x530] sm:$0xff] 0.0
          %473 = vst [vmem:[#allocation2 + $0x538] sm:$0xff] 0.0
          %474 = vst [vmem:[#allocation2 + $0x540] sm:$0xff] 0.0
          %475 = vst [vmem:[#allocation2 + $0x548] sm:$0xff] 0.0
          %476 = vst [vmem:[#allocation2 + $0x550] sm:$0xff] 0.0
          %477 = vst [vmem:[#allocation2 + $0x558] sm:$0xff] 0.0
          %478 = vst [vmem:[#allocation2 + $0x560] sm:$0xff] 0.0
          %479 = vst [vmem:[#allocation2 + $0x568] sm:$0xff] 0.0
          %480 = vst [vmem:[#allocation2 + $0x570] sm:$0xff] 0.0
          %481 = vst [vmem:[#allocation2 + $0x578] sm:$0xff] 0.0
          %482 = vst [vmem:[#allocation2 + $0x580] sm:$0xff] 0.0
          %483 = vst [vmem:[#allocation2 + $0x588] sm:$0xff] 0.0
          %484 = vst [vmem:[#allocation2 + $0x590] sm:$0xff] 0.0
          %485 = vst [vmem:[#allocation2 + $0x598] sm:$0xff] 0.0
          %486 = vst [vmem:[#allocation2 + $0x5a0] sm:$0xff] 0.0
          %487 = vst [vmem:[#allocation2 + $0x5a8] sm:$0xff] 0.0
          %488 = vst [vmem:[#allocation2 + $0x5b0] sm:$0xff] 0.0
          %489 = vst [vmem:[#allocation2 + $0x5b8] sm:$0xff] 0.0
          %490 = vst [vmem:[#allocation2 + $0x5c0] sm:$0xff] 0.0
          %491 = vst [vmem:[#allocation2 + $0x5c8] sm:$0xff] 0.0
          %492 = vst [vmem:[#allocation2 + $0x5d0] sm:$0xff] 0.0
          %493 = vst [vmem:[#allocation2 + $0x5d8] sm:$0xff] 0.0
          %494 = vst [vmem:[#allocation2 + $0x5e0] sm:$0xff] 0.0
          %495 = vst [vmem:[#allocation2 + $0x5e8] sm:$0xff] 0.0
          %496 = vst [vmem:[#allocation2 + $0x5f0] sm:$0xff] 0.0
          %497 = vst [vmem:[#allocation2 + $0x5f8] sm:$0xff] 0.0
          %498 = vst [vmem:[#allocation2 + $0x600] sm:$0xff] 0.0
          %499 = vst [vmem:[#allocation2 + $0x608] sm:$0xff] 0.0
          %500 = vst [vmem:[#allocation2 + $0x610] sm:$0xff] 0.0
          %501 = vst [vmem:[#allocation2 + $0x618] sm:$0xff] 0.0
          %502 = vst [vmem:[#allocation2 + $0x620] sm:$0xff] 0.0
          %503 = vst [vmem:[#allocation2 + $0x628] sm:$0xff] 0.0
          %504 = vst [vmem:[#allocation2 + $0x630] sm:$0xff] 0.0
          %505 = vst [vmem:[#allocation2 + $0x638] sm:$0xff] 0.0
          %506 = vst [vmem:[#allocation2 + $0x640] sm:$0xff] 0.0
          %507 = vst [vmem:[#allocation2 + $0x648] sm:$0xff] 0.0
          %508 = vst [vmem:[#allocation2 + $0x650] sm:$0xff] 0.0
          %509 = vst [vmem:[#allocation2 + $0x658] sm:$0xff] 0.0
          %510 = vst [vmem:[#allocation2 + $0x660] sm:$0xff] 0.0
          %511 = vst [vmem:[#allocation2 + $0x668] sm:$0xff] 0.0
          %512 = vst [vmem:[#allocation2 + $0x670] sm:$0xff] 0.0
          %513 = vst [vmem:[#allocation2 + $0x678] sm:$0xff] 0.0
          %514 = vst [vmem:[#allocation2 + $0x680] sm:$0xff] 0.0
          %515 = vst [vmem:[#allocation2 + $0x688] sm:$0xff] 0.0
          %516 = vst [vmem:[#allocation2 + $0x690] sm:$0xff] 0.0
          %517 = vst [vmem:[#allocation2 + $0x698] sm:$0xff] 0.0
          %518 = vst [vmem:[#allocation2 + $0x6a0] sm:$0xff] 0.0
          %519 = vst [vmem:[#allocation2 + $0x6a8] sm:$0xff] 0.0
          %520 = vst [vmem:[#allocation2 + $0x6b0] sm:$0xff] 0.0
          %521 = vst [vmem:[#allocation2 + $0x6b8] sm:$0xff] 0.0
          %522 = vst [vmem:[#allocation2 + $0x6c0] sm:$0xff] 0.0
          %523 = vst [vmem:[#allocation2 + $0x6c8] sm:$0xff] 0.0
          %524 = vst [vmem:[#allocation2 + $0x6d0] sm:$0xff] 0.0
          %525 = vst [vmem:[#allocation2 + $0x6d8] sm:$0xff] 0.0
          %526 = vst [vmem:[#allocation2 + $0x6e0] sm:$0xff] 0.0
          %527 = vst [vmem:[#allocation2 + $0x6e8] sm:$0xff] 0.0
          %528 = vst [vmem:[#allocation2 + $0x6f0] sm:$0xff] 0.0
          %529 = vst [vmem:[#allocation2 + $0x6f8] sm:$0xff] 0.0
          %530 = vst [vmem:[#allocation2 + $0x700] sm:$0xff] 0.0
          %531 = vst [vmem:[#allocation2 + $0x708] sm:$0xff] 0.0
          %532 = vst [vmem:[#allocation2 + $0x710] sm:$0xff] 0.0
          %533 = vst [vmem:[#allocation2 + $0x718] sm:$0xff] 0.0
          %534 = vst [vmem:[#allocation2 + $0x720] sm:$0xff] 0.0
          %535 = vst [vmem:[#allocation2 + $0x728] sm:$0xff] 0.0
          %536 = vst [vmem:[#allocation2 + $0x730] sm:$0xff] 0.0
          %537 = vst [vmem:[#allocation2 + $0x738] sm:$0xff] 0.0
          %538 = vst [vmem:[#allocation2 + $0x740] sm:$0xff] 0.0
          %539 = vst [vmem:[#allocation2 + $0x748] sm:$0xff] 0.0
          %540 = vst [vmem:[#allocation2 + $0x750] sm:$0xff] 0.0
          %541 = vst [vmem:[#allocation2 + $0x758] sm:$0xff] 0.0
          %542 = vst [vmem:[#allocation2 + $0x760] sm:$0xff] 0.0
          %543 = vst [vmem:[#allocation2 + $0x768] sm:$0xff] 0.0
          %544 = vst [vmem:[#allocation2 + $0x770] sm:$0xff] 0.0
          %545 = vst [vmem:[#allocation2 + $0x778] sm:$0xff] 0.0
          %546 = vst [vmem:[#allocation2 + $0x780] sm:$0xff] 0.0
          %547 = vst [vmem:[#allocation2 + $0x788] sm:$0xff] 0.0
          %548 = vst [vmem:[#allocation2 + $0x790] sm:$0xff] 0.0
          %549 = vst [vmem:[#allocation2 + $0x798] sm:$0xff] 0.0
          %550 = vst [vmem:[#allocation2 + $0x7a0] sm:$0xff] 0.0
          %551 = vst [vmem:[#allocation2 + $0x7a8] sm:$0xff] 0.0
          %552 = vst [vmem:[#allocation2 + $0x7b0] sm:$0xff] 0.0
          %553 = vst [vmem:[#allocation2 + $0x7b8] sm:$0xff] 0.0
          %554 = vst [vmem:[#allocation2 + $0x7c0] sm:$0xff] 0.0
          %555 = vst [vmem:[#allocation2 + $0x7c8] sm:$0xff] 0.0
          %556 = vst [vmem:[#allocation2 + $0x7d0] sm:$0xff] 0.0
          %557 = vst [vmem:[#allocation2 + $0x7d8] sm:$0xff] 0.0
          %558 = vst [vmem:[#allocation2 + $0x7e0] sm:$0xff] 0.0
          %559 = vst [vmem:[#allocation2 + $0x7e8] sm:$0xff] 0.0
          %560 = vst [vmem:[#allocation2 + $0x7f0] sm:$0xff] 0.0
          %561 = vst [vmem:[#allocation2 + $0x7f8] sm:$0xff] 0.0
        $region48: #{tpu_custom_call.1} parent=31 // pred_fallthru
          _
        %v562 = vld [vmem:[#allocation2] sm:$0xff]
        %v563 = vld [vmem:[#allocation2 + $0x8] sm:$0xff]
        %v564 = vld [vmem:[#allocation2 + $0x10] sm:$0xff]
        %v565 = vld [vmem:[#allocation2 + $0x18] sm:$0xff]
        %v566 = vld [vmem:[#allocation2 + $0x20] sm:$0xff]
        %v567 = vld [vmem:[#allocation2 + $0x28] sm:$0xff]
        %v568 = vld [vmem:[#allocation2 + $0x30] sm:$0xff]
        %v569 = vld [vmem:[#allocation2 + $0x38] sm:$0xff]
        %v570 = vld [vmem:[#allocation2 + $0x40] sm:$0xff]
        %v571 = vld [vmem:[#allocation2 + $0x48] sm:$0xff]
        %v572 = vld [vmem:[#allocation2 + $0x50] sm:$0xff]
        %v573 = vld [vmem:[#allocation2 + $0x58] sm:$0xff]
        %v574 = vld [vmem:[#allocation2 + $0x60] sm:$0xff]
        %v575 = vld [vmem:[#allocation2 + $0x68] sm:$0xff]
        %v576 = vld [vmem:[#allocation2 + $0x70] sm:$0xff]
        %v577 = vld [vmem:[#allocation2 + $0x78] sm:$0xff]
        %v578 = vld [vmem:[#allocation2 + $0x80] sm:$0xff]
        %v579 = vld [vmem:[#allocation2 + $0x88] sm:$0xff]
        %v580 = vld [vmem:[#allocation2 + $0x90] sm:$0xff]
        %v581 = vld [vmem:[#allocation2 + $0x98] sm:$0xff]
        %v582 = vld [vmem:[#allocation2 + $0xa0] sm:$0xff]
        %v583 = vld [vmem:[#allocation2 + $0xa8] sm:$0xff]
        %v584 = vld [vmem:[#allocation2 + $0xb0] sm:$0xff]
        %v585 = vld [vmem:[#allocation2 + $0xb8] sm:$0xff]
        %v586 = vld [vmem:[#allocation2 + $0xc0] sm:$0xff]
        %v587 = vld [vmem:[#allocation2 + $0xc8] sm:$0xff]
        %v588 = vld [vmem:[#allocation2 + $0xd0] sm:$0xff]
        %v589 = vld [vmem:[#allocation2 + $0xd8] sm:$0xff]
        %v590 = vld [vmem:[#allocation2 + $0xe0] sm:$0xff]
        %v591 = vld [vmem:[#allocation2 + $0xe8] sm:$0xff]
        %v592 = vld [vmem:[#allocation2 + $0xf0] sm:$0xff]
        %v593 = vld [vmem:[#allocation2 + $0xf8] sm:$0xff]
        %v594 = vld [vmem:[#allocation2 + $0x100] sm:$0xff]
        %v595 = vld [vmem:[#allocation2 + $0x108] sm:$0xff]
        %v596 = vld [vmem:[#allocation2 + $0x110] sm:$0xff]
        %v597 = vld [vmem:[#allocation2 + $0x118] sm:$0xff]
        %v598 = vld [vmem:[#allocation2 + $0x120] sm:$0xff]
        %v599 = vld [vmem:[#allocation2 + $0x128] sm:$0xff]
        %v600 = vld [vmem:[#allocation2 + $0x130] sm:$0xff]
        %v601 = vld [vmem:[#allocation2 + $0x138] sm:$0xff]
        %v602 = vld [vmem:[#allocation2 + $0x140] sm:$0xff]
        %v603 = vld [vmem:[#allocation2 + $0x148] sm:$0xff]
        %v604 = vld [vmem:[#allocation2 + $0x150] sm:$0xff]
        %v605 = vld [vmem:[#allocation2 + $0x158] sm:$0xff]
        %v606 = vld [vmem:[#allocation2 + $0x160] sm:$0xff]
        %v607 = vld [vmem:[#allocation2 + $0x168] sm:$0xff]
        %v608 = vld [vmem:[#allocation2 + $0x170] sm:$0xff]
        %v609 = vld [vmem:[#allocation2 + $0x178] sm:$0xff]
        %v610 = vld [vmem:[#allocation2 + $0x180] sm:$0xff]
        %v611 = vld [vmem:[#allocation2 + $0x188] sm:$0xff]
        %v612 = vld [vmem:[#allocation2 + $0x190] sm:$0xff]
        %v613 = vld [vmem:[#allocation2 + $0x198] sm:$0xff]
        %v614 = vld [vmem:[#allocation2 + $0x1a0] sm:$0xff]
        %v615 = vld [vmem:[#allocation2 + $0x1a8] sm:$0xff]
        %v616 = vld [vmem:[#allocation2 + $0x1b0] sm:$0xff]
        %v617 = vld [vmem:[#allocation2 + $0x1b8] sm:$0xff]
        %v618 = vld [vmem:[#allocation2 + $0x1c0] sm:$0xff]
        %v619 = vld [vmem:[#allocation2 + $0x1c8] sm:$0xff]
        %v620 = vld [vmem:[#allocation2 + $0x1d0] sm:$0xff]
        %v621 = vld [vmem:[#allocation2 + $0x1d8] sm:$0xff]
        %v622 = vld [vmem:[#allocation2 + $0x1e0] sm:$0xff]
        %v623 = vld [vmem:[#allocation2 + $0x1e8] sm:$0xff]
        %v624 = vld [vmem:[#allocation2 + $0x1f0] sm:$0xff]
        %v625 = vld [vmem:[#allocation2 + $0x1f8] sm:$0xff]
        %v626 = vld [vmem:[#allocation2 + $0x200] sm:$0xff]
        %v627 = vld [vmem:[#allocation2 + $0x208] sm:$0xff]
        %v628 = vld [vmem:[#allocation2 + $0x210] sm:$0xff]
        %v629 = vld [vmem:[#allocation2 + $0x218] sm:$0xff]
        %v630 = vld [vmem:[#allocation2 + $0x220] sm:$0xff]
        %v631 = vld [vmem:[#allocation2 + $0x228] sm:$0xff]
        %v632 = vld [vmem:[#allocation2 + $0x230] sm:$0xff]
        %v633 = vld [vmem:[#allocation2 + $0x238] sm:$0xff]
        %v634 = vld [vmem:[#allocation2 + $0x240] sm:$0xff]
        %v635 = vld [vmem:[#allocation2 + $0x248] sm:$0xff]
        %v636 = vld [vmem:[#allocation2 + $0x250] sm:$0xff]
        %v637 = vld [vmem:[#allocation2 + $0x258] sm:$0xff]
        %v638 = vld [vmem:[#allocation2 + $0x260] sm:$0xff]
        %v639 = vld [vmem:[#allocation2 + $0x268] sm:$0xff]
        %v640 = vld [vmem:[#allocation2 + $0x270] sm:$0xff]
        %v641 = vld [vmem:[#allocation2 + $0x278] sm:$0xff]
        %v642 = vld [vmem:[#allocation2 + $0x280] sm:$0xff]
        %v643 = vld [vmem:[#allocation2 + $0x288] sm:$0xff]
        %v644 = vld [vmem:[#allocation2 + $0x290] sm:$0xff]
        %v645 = vld [vmem:[#allocation2 + $0x298] sm:$0xff]
        %v646 = vld [vmem:[#allocation2 + $0x2a0] sm:$0xff]
        %v647 = vld [vmem:[#allocation2 + $0x2a8] sm:$0xff]
        %v648 = vld [vmem:[#allocation2 + $0x2b0] sm:$0xff]
        %v649 = vld [vmem:[#allocation2 + $0x2b8] sm:$0xff]
        %v650 = vld [vmem:[#allocation2 + $0x2c0] sm:$0xff]
        %v651 = vld [vmem:[#allocation2 + $0x2c8] sm:$0xff]
        %v652 = vld [vmem:[#allocation2 + $0x2d0] sm:$0xff]
        %v653 = vld [vmem:[#allocation2 + $0x2d8] sm:$0xff]
        %v654 = vld [vmem:[#allocation2 + $0x2e0] sm:$0xff]
        %v655 = vld [vmem:[#allocation2 + $0x2e8] sm:$0xff]
        %v656 = vld [vmem:[#allocation2 + $0x2f0] sm:$0xff]
        %v657 = vld [vmem:[#allocation2 + $0x2f8] sm:$0xff]
        %v658 = vld [vmem:[#allocation2 + $0x300] sm:$0xff]
        %v659 = vld [vmem:[#allocation2 + $0x308] sm:$0xff]
        %v660 = vld [vmem:[#allocation2 + $0x310] sm:$0xff]
        %v661 = vld [vmem:[#allocation2 + $0x318] sm:$0xff]
        %v662 = vld [vmem:[#allocation2 + $0x320] sm:$0xff]
        %v663 = vld [vmem:[#allocation2 + $0x328] sm:$0xff]
        %v664 = vld [vmem:[#allocation2 + $0x330] sm:$0xff]
        %v665 = vld [vmem:[#allocation2 + $0x338] sm:$0xff]
        %v666 = vld [vmem:[#allocation2 + $0x340] sm:$0xff]
        %v667 = vld [vmem:[#allocation2 + $0x348] sm:$0xff]
        %v668 = vld [vmem:[#allocation2 + $0x350] sm:$0xff]
        %v669 = vld [vmem:[#allocation2 + $0x358] sm:$0xff]
        %v670 = vld [vmem:[#allocation2 + $0x360] sm:$0xff]
        %v671 = vld [vmem:[#allocation2 + $0x368] sm:$0xff]
        %v672 = vld [vmem:[#allocation2 + $0x370] sm:$0xff]
        %v673 = vld [vmem:[#allocation2 + $0x378] sm:$0xff]
        %v674 = vld [vmem:[#allocation2 + $0x380] sm:$0xff]
        %v675 = vld [vmem:[#allocation2 + $0x388] sm:$0xff]
        %v676 = vld [vmem:[#allocation2 + $0x390] sm:$0xff]
        %v677 = vld [vmem:[#allocation2 + $0x398] sm:$0xff]
        %v678 = vld [vmem:[#allocation2 + $0x3a0] sm:$0xff]
        %v679 = vld [vmem:[#allocation2 + $0x3a8] sm:$0xff]
        %v680 = vld [vmem:[#allocation2 + $0x3b0] sm:$0xff]
        %v681 = vld [vmem:[#allocation2 + $0x3b8] sm:$0xff]
        %v682 = vld [vmem:[#allocation2 + $0x3c0] sm:$0xff]
        %v683 = vld [vmem:[#allocation2 + $0x3c8] sm:$0xff]
        %v684 = vld [vmem:[#allocation2 + $0x3d0] sm:$0xff]
        %v685 = vld [vmem:[#allocation2 + $0x3d8] sm:$0xff]
        %v686 = vld [vmem:[#allocation2 + $0x3e0] sm:$0xff]
        %v687 = vld [vmem:[#allocation2 + $0x3e8] sm:$0xff]
        %v688 = vld [vmem:[#allocation2 + $0x3f0] sm:$0xff]
        %v689 = vld [vmem:[#allocation2 + $0x3f8] sm:$0xff]
        %v690 = vld [vmem:[#allocation2 + $0x400] sm:$0xff]
        %v691 = vld [vmem:[#allocation2 + $0x408] sm:$0xff]
        %v692 = vld [vmem:[#allocation2 + $0x410] sm:$0xff]
        %v693 = vld [vmem:[#allocation2 + $0x418] sm:$0xff]
        %v694 = vld [vmem:[#allocation2 + $0x420] sm:$0xff]
        %v695 = vld [vmem:[#allocation2 + $0x428] sm:$0xff]
        %v696 = vld [vmem:[#allocation2 + $0x430] sm:$0xff]
        %v697 = vld [vmem:[#allocation2 + $0x438] sm:$0xff]
        %v698 = vld [vmem:[#allocation2 + $0x440] sm:$0xff]
        %v699 = vld [vmem:[#allocation2 + $0x448] sm:$0xff]
        %v700 = vld [vmem:[#allocation2 + $0x450] sm:$0xff]
        %v701 = vld [vmem:[#allocation2 + $0x458] sm:$0xff]
        %v702 = vld [vmem:[#allocation2 + $0x460] sm:$0xff]
        %v703 = vld [vmem:[#allocation2 + $0x468] sm:$0xff]
        %v704 = vld [vmem:[#allocation2 + $0x470] sm:$0xff]
        %v705 = vld [vmem:[#allocation2 + $0x478] sm:$0xff]
        %v706 = vld [vmem:[#allocation2 + $0x480] sm:$0xff]
        %v707 = vld [vmem:[#allocation2 + $0x488] sm:$0xff]
        %v708 = vld [vmem:[#allocation2 + $0x490] sm:$0xff]
        %v709 = vld [vmem:[#allocation2 + $0x498] sm:$0xff]
        %v710 = vld [vmem:[#allocation2 + $0x4a0] sm:$0xff]
        %v711 = vld [vmem:[#allocation2 + $0x4a8] sm:$0xff]
        %v712 = vld [vmem:[#allocation2 + $0x4b0] sm:$0xff]
        %v713 = vld [vmem:[#allocation2 + $0x4b8] sm:$0xff]
        %v714 = vld [vmem:[#allocation2 + $0x4c0] sm:$0xff]
        %v715 = vld [vmem:[#allocation2 + $0x4c8] sm:$0xff]
        %v716 = vld [vmem:[#allocation2 + $0x4d0] sm:$0xff]
        %v717 = vld [vmem:[#allocation2 + $0x4d8] sm:$0xff]
        %v718 = vld [vmem:[#allocation2 + $0x4e0] sm:$0xff]
        %v719 = vld [vmem:[#allocation2 + $0x4e8] sm:$0xff]
        %v720 = vld [vmem:[#allocation2 + $0x4f0] sm:$0xff]
        %v721 = vld [vmem:[#allocation2 + $0x4f8] sm:$0xff]
        %v722 = vld [vmem:[#allocation2 + $0x500] sm:$0xff]
        %v723 = vld [vmem:[#allocation2 + $0x508] sm:$0xff]
        %v724 = vld [vmem:[#allocation2 + $0x510] sm:$0xff]
        %v725 = vld [vmem:[#allocation2 + $0x518] sm:$0xff]
        %v726 = vld [vmem:[#allocation2 + $0x520] sm:$0xff]
        %v727 = vld [vmem:[#allocation2 + $0x528] sm:$0xff]
        %v728 = vld [vmem:[#allocation2 + $0x530] sm:$0xff]
        %v729 = vld [vmem:[#allocation2 + $0x538] sm:$0xff]
        %v730 = vld [vmem:[#allocation2 + $0x540] sm:$0xff]
        %v731 = vld [vmem:[#allocation2 + $0x548] sm:$0xff]
        %v732 = vld [vmem:[#allocation2 + $0x550] sm:$0xff]
        %v733 = vld [vmem:[#allocation2 + $0x558] sm:$0xff]
        %v734 = vld [vmem:[#allocation2 + $0x560] sm:$0xff]
        %v735 = vld [vmem:[#allocation2 + $0x568] sm:$0xff]
        %v736 = vld [vmem:[#allocation2 + $0x570] sm:$0xff]
        %v737 = vld [vmem:[#allocation2 + $0x578] sm:$0xff]
        %v738 = vld [vmem:[#allocation2 + $0x580] sm:$0xff]
        %v739 = vld [vmem:[#allocation2 + $0x588] sm:$0xff]
        %v740 = vld [vmem:[#allocation2 + $0x590] sm:$0xff]
        %v741 = vld [vmem:[#allocation2 + $0x598] sm:$0xff]
        %v742 = vld [vmem:[#allocation2 + $0x5a0] sm:$0xff]
        %v743 = vld [vmem:[#allocation2 + $0x5a8] sm:$0xff]
        %v744 = vld [vmem:[#allocation2 + $0x5b0] sm:$0xff]
        %v745 = vld [vmem:[#allocation2 + $0x5b8] sm:$0xff]
        %v746 = vld [vmem:[#allocation2 + $0x5c0] sm:$0xff]
        %v747 = vld [vmem:[#allocation2 + $0x5c8] sm:$0xff]
        %v748 = vld [vmem:[#allocation2 + $0x5d0] sm:$0xff]
        %v749 = vld [vmem:[#allocation2 + $0x5d8] sm:$0xff]
        %v750 = vld [vmem:[#allocation2 + $0x5e0] sm:$0xff]
        %v751 = vld [vmem:[#allocation2 + $0x5e8] sm:$0xff]
        %v752 = vld [vmem:[#allocation2 + $0x5f0] sm:$0xff]
        %v753 = vld [vmem:[#allocation2 + $0x5f8] sm:$0xff]
        %v754 = vld [vmem:[#allocation2 + $0x600] sm:$0xff]
        %v755 = vld [vmem:[#allocation2 + $0x608] sm:$0xff]
        %v756 = vld [vmem:[#allocation2 + $0x610] sm:$0xff]
        %v757 = vld [vmem:[#allocation2 + $0x618] sm:$0xff]
        %v758 = vld [vmem:[#allocation2 + $0x620] sm:$0xff]
        %v759 = vld [vmem:[#allocation2 + $0x628] sm:$0xff]
        %v760 = vld [vmem:[#allocation2 + $0x630] sm:$0xff]
        %v761 = vld [vmem:[#allocation2 + $0x638] sm:$0xff]
        %v762 = vld [vmem:[#allocation2 + $0x640] sm:$0xff]
        %v763 = vld [vmem:[#allocation2 + $0x648] sm:$0xff]
        %v764 = vld [vmem:[#allocation2 + $0x650] sm:$0xff]
        %v765 = vld [vmem:[#allocation2 + $0x658] sm:$0xff]
        %v766 = vld [vmem:[#allocation2 + $0x660] sm:$0xff]
        %v767 = vld [vmem:[#allocation2 + $0x668] sm:$0xff]
        %v768 = vld [vmem:[#allocation2 + $0x670] sm:$0xff]
        %v769 = vld [vmem:[#allocation2 + $0x678] sm:$0xff]
        %v770 = vld [vmem:[#allocation2 + $0x680] sm:$0xff]
        %v771 = vld [vmem:[#allocation2 + $0x688] sm:$0xff]
        %v772 = vld [vmem:[#allocation2 + $0x690] sm:$0xff]
        %v773 = vld [vmem:[#allocation2 + $0x698] sm:$0xff]
        %v774 = vld [vmem:[#allocation2 + $0x6a0] sm:$0xff]
        %v775 = vld [vmem:[#allocation2 + $0x6a8] sm:$0xff]
        %v776 = vld [vmem:[#allocation2 + $0x6b0] sm:$0xff]
        %v777 = vld [vmem:[#allocation2 + $0x6b8] sm:$0xff]
        %v778 = vld [vmem:[#allocation2 + $0x6c0] sm:$0xff]
        %v779 = vld [vmem:[#allocation2 + $0x6c8] sm:$0xff]
        %v780 = vld [vmem:[#allocation2 + $0x6d0] sm:$0xff]
        %v781 = vld [vmem:[#allocation2 + $0x6d8] sm:$0xff]
        %v782 = vld [vmem:[#allocation2 + $0x6e0] sm:$0xff]
        %v783 = vld [vmem:[#allocation2 + $0x6e8] sm:$0xff]
        %v784 = vld [vmem:[#allocation2 + $0x6f0] sm:$0xff]
        %v785 = vld [vmem:[#allocation2 + $0x6f8] sm:$0xff]
        %v786 = vld [vmem:[#allocation2 + $0x700] sm:$0xff]
        %v787 = vld [vmem:[#allocation2 + $0x708] sm:$0xff]
        %v788 = vld [vmem:[#allocation2 + $0x710] sm:$0xff]
        %v789 = vld [vmem:[#allocation2 + $0x718] sm:$0xff]
        %v790 = vld [vmem:[#allocation2 + $0x720] sm:$0xff]
        %v791 = vld [vmem:[#allocation2 + $0x728] sm:$0xff]
        %v792 = vld [vmem:[#allocation2 + $0x730] sm:$0xff]
        %v793 = vld [vmem:[#allocation2 + $0x738] sm:$0xff]
        %v794 = vld [vmem:[#allocation2 + $0x740] sm:$0xff]
        %v795 = vld [vmem:[#allocation2 + $0x748] sm:$0xff]
        %v796 = vld [vmem:[#allocation2 + $0x750] sm:$0xff]
        %v797 = vld [vmem:[#allocation2 + $0x758] sm:$0xff]
        %v798 = vld [vmem:[#allocation2 + $0x760] sm:$0xff]
        %v799 = vld [vmem:[#allocation2 + $0x768] sm:$0xff]
        %v800 = vld [vmem:[#allocation2 + $0x770] sm:$0xff]
        %v801 = vld [vmem:[#allocation2 + $0x778] sm:$0xff]
        %v802 = vld [vmem:[#allocation2 + $0x780] sm:$0xff]
        %v803 = vld [vmem:[#allocation2 + $0x788] sm:$0xff]
        %v804 = vld [vmem:[#allocation2 + $0x790] sm:$0xff]
        %v805 = vld [vmem:[#allocation2 + $0x798] sm:$0xff]
        %v806 = vld [vmem:[#allocation2 + $0x7a0] sm:$0xff]
        %v807 = vld [vmem:[#allocation2 + $0x7a8] sm:$0xff]
        %v808 = vld [vmem:[#allocation2 + $0x7b0] sm:$0xff]
        %v809 = vld [vmem:[#allocation2 + $0x7b8] sm:$0xff]
        %v810 = vld [vmem:[#allocation2 + $0x7c0] sm:$0xff]
        %v811 = vld [vmem:[#allocation2 + $0x7c8] sm:$0xff]
        %v812 = vld [vmem:[#allocation2 + $0x7d0] sm:$0xff]
        %v813 = vld [vmem:[#allocation2 + $0x7d8] sm:$0xff]
        %v814 = vld [vmem:[#allocation2 + $0x7e0] sm:$0xff]
        %v815 = vld [vmem:[#allocation2 + $0x7e8] sm:$0xff]
        %v816 = vld [vmem:[#allocation2 + $0x7f0] sm:$0xff]
        %v817 = vld [vmem:[#allocation2 + $0x7f8] sm:$0xff]
        %v818 = vld [vmem:[%s244] sm:$0xff]
        %v819 = vld [vmem:[%s244 + $0x8] sm:$0xff]
        %v820 = vld [vmem:[%s244 + $0x10] sm:$0xff]
        %v821 = vld [vmem:[%s244 + $0x18] sm:$0xff]
        %v822 = vld [vmem:[%s244 + $0x20] sm:$0xff]
        %v823 = vld [vmem:[%s244 + $0x28] sm:$0xff]
        %v824 = vld [vmem:[%s244 + $0x30] sm:$0xff]
        %v825 = vld [vmem:[%s244 + $0x38] sm:$0xff]
        %v826 = vld [vmem:[%s244 + $0x40] sm:$0xff]
        %v827 = vld [vmem:[%s244 + $0x48] sm:$0xff]
        %v828 = vld [vmem:[%s244 + $0x50] sm:$0xff]
        %v829 = vld [vmem:[%s244 + $0x58] sm:$0xff]
        %v830 = vld [vmem:[%s244 + $0x60] sm:$0xff]
        %v831 = vld [vmem:[%s244 + $0x68] sm:$0xff]
        %v832 = vld [vmem:[%s244 + $0x70] sm:$0xff]
        %v833 = vld [vmem:[%s244 + $0x78] sm:$0xff]
        %v834 = vld [vmem:[%s244 + $0x80] sm:$0xff]
        %v835 = vld [vmem:[%s244 + $0x88] sm:$0xff]
        %v836 = vld [vmem:[%s244 + $0x90] sm:$0xff]
        %v837 = vld [vmem:[%s244 + $0x98] sm:$0xff]
        %v838 = vld [vmem:[%s244 + $0xa0] sm:$0xff]
        %v839 = vld [vmem:[%s244 + $0xa8] sm:$0xff]
        %v840 = vld [vmem:[%s244 + $0xb0] sm:$0xff]
        %v841 = vld [vmem:[%s244 + $0xb8] sm:$0xff]
        %v842 = vld [vmem:[%s244 + $0xc0] sm:$0xff]
        %v843 = vld [vmem:[%s244 + $0xc8] sm:$0xff]
        %v844 = vld [vmem:[%s244 + $0xd0] sm:$0xff]
        %v845 = vld [vmem:[%s244 + $0xd8] sm:$0xff]
        %v846 = vld [vmem:[%s244 + $0xe0] sm:$0xff]
        %v847 = vld [vmem:[%s244 + $0xe8] sm:$0xff]
        %v848 = vld [vmem:[%s244 + $0xf0] sm:$0xff]
        %v849 = vld [vmem:[%s244 + $0xf8] sm:$0xff]
        %v850 = vld [vmem:[%s244 + $0x100] sm:$0xff]
        %v851 = vld [vmem:[%s244 + $0x108] sm:$0xff]
        %v852 = vld [vmem:[%s244 + $0x110] sm:$0xff]
        %v853 = vld [vmem:[%s244 + $0x118] sm:$0xff]
        %v854 = vld [vmem:[%s244 + $0x120] sm:$0xff]
        %v855 = vld [vmem:[%s244 + $0x128] sm:$0xff]
        %v856 = vld [vmem:[%s244 + $0x130] sm:$0xff]
        %v857 = vld [vmem:[%s244 + $0x138] sm:$0xff]
        %v858 = vld [vmem:[%s244 + $0x140] sm:$0xff]
        %v859 = vld [vmem:[%s244 + $0x148] sm:$0xff]
        %v860 = vld [vmem:[%s244 + $0x150] sm:$0xff]
        %v861 = vld [vmem:[%s244 + $0x158] sm:$0xff]
        %v862 = vld [vmem:[%s244 + $0x160] sm:$0xff]
        %v863 = vld [vmem:[%s244 + $0x168] sm:$0xff]
        %v864 = vld [vmem:[%s244 + $0x170] sm:$0xff]
        %v865 = vld [vmem:[%s244 + $0x178] sm:$0xff]
        %v866 = vld [vmem:[%s244 + $0x180] sm:$0xff]
        %v867 = vld [vmem:[%s244 + $0x188] sm:$0xff]
        %v868 = vld [vmem:[%s244 + $0x190] sm:$0xff]
        %v869 = vld [vmem:[%s244 + $0x198] sm:$0xff]
        %v870 = vld [vmem:[%s244 + $0x1a0] sm:$0xff]
        %v871 = vld [vmem:[%s244 + $0x1a8] sm:$0xff]
        %v872 = vld [vmem:[%s244 + $0x1b0] sm:$0xff]
        %v873 = vld [vmem:[%s244 + $0x1b8] sm:$0xff]
        %v874 = vld [vmem:[%s244 + $0x1c0] sm:$0xff]
        %v875 = vld [vmem:[%s244 + $0x1c8] sm:$0xff]
        %v876 = vld [vmem:[%s244 + $0x1d0] sm:$0xff]
        %v877 = vld [vmem:[%s244 + $0x1d8] sm:$0xff]
        %v878 = vld [vmem:[%s244 + $0x1e0] sm:$0xff]
        %v879 = vld [vmem:[%s244 + $0x1e8] sm:$0xff]
        %v880 = vld [vmem:[%s244 + $0x1f0] sm:$0xff]
        %v881 = vld [vmem:[%s244 + $0x1f8] sm:$0xff]
        %v882 = vld [vmem:[%s244 + $0x200] sm:$0xff]
        %v883 = vld [vmem:[%s244 + $0x208] sm:$0xff]
        %v884 = vld [vmem:[%s244 + $0x210] sm:$0xff]
        %v885 = vld [vmem:[%s244 + $0x218] sm:$0xff]
        %v886 = vld [vmem:[%s244 + $0x220] sm:$0xff]
        %v887 = vld [vmem:[%s244 + $0x228] sm:$0xff]
        %v888 = vld [vmem:[%s244 + $0x230] sm:$0xff]
        %v889 = vld [vmem:[%s244 + $0x238] sm:$0xff]
        %v890 = vld [vmem:[%s244 + $0x240] sm:$0xff]
        %v891 = vld [vmem:[%s244 + $0x248] sm:$0xff]
        %v892 = vld [vmem:[%s244 + $0x250] sm:$0xff]
        %v893 = vld [vmem:[%s244 + $0x258] sm:$0xff]
        %v894 = vld [vmem:[%s244 + $0x260] sm:$0xff]
        %v895 = vld [vmem:[%s244 + $0x268] sm:$0xff]
        %v896 = vld [vmem:[%s244 + $0x270] sm:$0xff]
        %v897 = vld [vmem:[%s244 + $0x278] sm:$0xff]
        %v898 = vld [vmem:[%s244 + $0x280] sm:$0xff]
        %v899 = vld [vmem:[%s244 + $0x288] sm:$0xff]
        %v900 = vld [vmem:[%s244 + $0x290] sm:$0xff]
        %v901 = vld [vmem:[%s244 + $0x298] sm:$0xff]
        %v902 = vld [vmem:[%s244 + $0x2a0] sm:$0xff]
        %v903 = vld [vmem:[%s244 + $0x2a8] sm:$0xff]
        %v904 = vld [vmem:[%s244 + $0x2b0] sm:$0xff]
        %v905 = vld [vmem:[%s244 + $0x2b8] sm:$0xff]
        %v906 = vld [vmem:[%s244 + $0x2c0] sm:$0xff]
        %v907 = vld [vmem:[%s244 + $0x2c8] sm:$0xff]
        %v908 = vld [vmem:[%s244 + $0x2d0] sm:$0xff]
        %v909 = vld [vmem:[%s244 + $0x2d8] sm:$0xff]
        %v910 = vld [vmem:[%s244 + $0x2e0] sm:$0xff]
        %v911 = vld [vmem:[%s244 + $0x2e8] sm:$0xff]
        %v912 = vld [vmem:[%s244 + $0x2f0] sm:$0xff]
        %v913 = vld [vmem:[%s244 + $0x2f8] sm:$0xff]
        %v914 = vld [vmem:[%s244 + $0x300] sm:$0xff]
        %v915 = vld [vmem:[%s244 + $0x308] sm:$0xff]
        %v916 = vld [vmem:[%s244 + $0x310] sm:$0xff]
        %v917 = vld [vmem:[%s244 + $0x318] sm:$0xff]
        %v918 = vld [vmem:[%s244 + $0x320] sm:$0xff]
        %v919 = vld [vmem:[%s244 + $0x328] sm:$0xff]
        %v920 = vld [vmem:[%s244 + $0x330] sm:$0xff]
        %v921 = vld [vmem:[%s244 + $0x338] sm:$0xff]
        %v922 = vld [vmem:[%s244 + $0x340] sm:$0xff]
        %v923 = vld [vmem:[%s244 + $0x348] sm:$0xff]
        %v924 = vld [vmem:[%s244 + $0x350] sm:$0xff]
        %v925 = vld [vmem:[%s244 + $0x358] sm:$0xff]
        %v926 = vld [vmem:[%s244 + $0x360] sm:$0xff]
        %v927 = vld [vmem:[%s244 + $0x368] sm:$0xff]
        %v928 = vld [vmem:[%s244 + $0x370] sm:$0xff]
        %v929 = vld [vmem:[%s244 + $0x378] sm:$0xff]
        %v930 = vld [vmem:[%s244 + $0x380] sm:$0xff]
        %v931 = vld [vmem:[%s244 + $0x388] sm:$0xff]
        %v932 = vld [vmem:[%s244 + $0x390] sm:$0xff]
        %v933 = vld [vmem:[%s244 + $0x398] sm:$0xff]
        %v934 = vld [vmem:[%s244 + $0x3a0] sm:$0xff]
        %v935 = vld [vmem:[%s244 + $0x3a8] sm:$0xff]
        %v936 = vld [vmem:[%s244 + $0x3b0] sm:$0xff]
        %v937 = vld [vmem:[%s244 + $0x3b8] sm:$0xff]
        %v938 = vld [vmem:[%s244 + $0x3c0] sm:$0xff]
        %v939 = vld [vmem:[%s244 + $0x3c8] sm:$0xff]
        %v940 = vld [vmem:[%s244 + $0x3d0] sm:$0xff]
        %v941 = vld [vmem:[%s244 + $0x3d8] sm:$0xff]
        %v942 = vld [vmem:[%s244 + $0x3e0] sm:$0xff]
        %v943 = vld [vmem:[%s244 + $0x3e8] sm:$0xff]
        %v944 = vld [vmem:[%s244 + $0x3f0] sm:$0xff]
        %v945 = vld [vmem:[%s244 + $0x3f8] sm:$0xff]
        %v946 = vld [vmem:[%s253] sm:$0xff]
        %v947 = vld [vmem:[%s253 + $0x8] sm:$0xff]
        %v948 = vld [vmem:[%s253 + $0x10] sm:$0xff]
        %v949 = vld [vmem:[%s253 + $0x18] sm:$0xff]
        %v950 = vld [vmem:[%s253 + $0x20] sm:$0xff]
        %v951 = vld [vmem:[%s253 + $0x28] sm:$0xff]
        %v952 = vld [vmem:[%s253 + $0x30] sm:$0xff]
        %v953 = vld [vmem:[%s253 + $0x38] sm:$0xff]
        %v954 = vld [vmem:[%s253 + $0x40] sm:$0xff]
        %v955 = vld [vmem:[%s253 + $0x48] sm:$0xff]
        %v956 = vld [vmem:[%s253 + $0x50] sm:$0xff]
        %v957 = vld [vmem:[%s253 + $0x58] sm:$0xff]
        %v958 = vld [vmem:[%s253 + $0x60] sm:$0xff]
        %v959 = vld [vmem:[%s253 + $0x68] sm:$0xff]
        %v960 = vld [vmem:[%s253 + $0x70] sm:$0xff]
        %v961 = vld [vmem:[%s253 + $0x78] sm:$0xff]
        %v962 = vld [vmem:[%s253 + $0x80] sm:$0xff]
        %v963 = vld [vmem:[%s253 + $0x88] sm:$0xff]
        %v964 = vld [vmem:[%s253 + $0x90] sm:$0xff]
        %v965 = vld [vmem:[%s253 + $0x98] sm:$0xff]
        %v966 = vld [vmem:[%s253 + $0xa0] sm:$0xff]
        %v967 = vld [vmem:[%s253 + $0xa8] sm:$0xff]
        %v968 = vld [vmem:[%s253 + $0xb0] sm:$0xff]
        %v969 = vld [vmem:[%s253 + $0xb8] sm:$0xff]
        %v970 = vld [vmem:[%s253 + $0xc0] sm:$0xff]
        %v971 = vld [vmem:[%s253 + $0xc8] sm:$0xff]
        %v972 = vld [vmem:[%s253 + $0xd0] sm:$0xff]
        %v973 = vld [vmem:[%s253 + $0xd8] sm:$0xff]
        %v974 = vld [vmem:[%s253 + $0xe0] sm:$0xff]
        %v975 = vld [vmem:[%s253 + $0xe8] sm:$0xff]
        %v976 = vld [vmem:[%s253 + $0xf0] sm:$0xff]
        %v977 = vld [vmem:[%s253 + $0xf8] sm:$0xff]
        %v978 = vld [vmem:[%s253 + $0x100] sm:$0xff]
        %v979 = vld [vmem:[%s253 + $0x108] sm:$0xff]
        %v980 = vld [vmem:[%s253 + $0x110] sm:$0xff]
        %v981 = vld [vmem:[%s253 + $0x118] sm:$0xff]
        %v982 = vld [vmem:[%s253 + $0x120] sm:$0xff]
        %v983 = vld [vmem:[%s253 + $0x128] sm:$0xff]
        %v984 = vld [vmem:[%s253 + $0x130] sm:$0xff]
        %v985 = vld [vmem:[%s253 + $0x138] sm:$0xff]
        %v986 = vld [vmem:[%s253 + $0x140] sm:$0xff]
        %v987 = vld [vmem:[%s253 + $0x148] sm:$0xff]
        %v988 = vld [vmem:[%s253 + $0x150] sm:$0xff]
        %v989 = vld [vmem:[%s253 + $0x158] sm:$0xff]
        %v990 = vld [vmem:[%s253 + $0x160] sm:$0xff]
        %v991 = vld [vmem:[%s253 + $0x168] sm:$0xff]
        %v992 = vld [vmem:[%s253 + $0x170] sm:$0xff]
        %v993 = vld [vmem:[%s253 + $0x178] sm:$0xff]
        %v994 = vld [vmem:[%s253 + $0x180] sm:$0xff]
        %v995 = vld [vmem:[%s253 + $0x188] sm:$0xff]
        %v996 = vld [vmem:[%s253 + $0x190] sm:$0xff]
        %v997 = vld [vmem:[%s253 + $0x198] sm:$0xff]
        %v998 = vld [vmem:[%s253 + $0x1a0] sm:$0xff]
        %v999 = vld [vmem:[%s253 + $0x1a8] sm:$0xff]
        %v1000 = vld [vmem:[%s253 + $0x1b0] sm:$0xff]
        %v1001 = vld [vmem:[%s253 + $0x1b8] sm:$0xff]
        %v1002 = vld [vmem:[%s253 + $0x1c0] sm:$0xff]
        %v1003 = vld [vmem:[%s253 + $0x1c8] sm:$0xff]
        %v1004 = vld [vmem:[%s253 + $0x1d0] sm:$0xff]
        %v1005 = vld [vmem:[%s253 + $0x1d8] sm:$0xff]
        %v1006 = vld [vmem:[%s253 + $0x1e0] sm:$0xff]
        %v1007 = vld [vmem:[%s253 + $0x1e8] sm:$0xff]
        %v1008 = vld [vmem:[%s253 + $0x1f0] sm:$0xff]
        %v1009 = vld [vmem:[%s253 + $0x1f8] sm:$0xff]
        %v1010 = vld [vmem:[%s253 + $0x200] sm:$0xff]
        %v1011 = vld [vmem:[%s253 + $0x208] sm:$0xff]
        %v1012 = vld [vmem:[%s253 + $0x210] sm:$0xff]
        %v1013 = vld [vmem:[%s253 + $0x218] sm:$0xff]
        %v1014 = vld [vmem:[%s253 + $0x220] sm:$0xff]
        %v1015 = vld [vmem:[%s253 + $0x228] sm:$0xff]
        %v1016 = vld [vmem:[%s253 + $0x230] sm:$0xff]
        %v1017 = vld [vmem:[%s253 + $0x238] sm:$0xff]
        %v1018 = vld [vmem:[%s253 + $0x240] sm:$0xff]
        %v1019 = vld [vmem:[%s253 + $0x248] sm:$0xff]
        %v1020 = vld [vmem:[%s253 + $0x250] sm:$0xff]
        %v1021 = vld [vmem:[%s253 + $0x258] sm:$0xff]
        %v1022 = vld [vmem:[%s253 + $0x260] sm:$0xff]
        %v1023 = vld [vmem:[%s253 + $0x268] sm:$0xff]
        %v1024 = vld [vmem:[%s253 + $0x270] sm:$0xff]
        %v1025 = vld [vmem:[%s253 + $0x278] sm:$0xff]
        %v1026 = vld [vmem:[%s253 + $0x280] sm:$0xff]
        %v1027 = vld [vmem:[%s253 + $0x288] sm:$0xff]
        %v1028 = vld [vmem:[%s253 + $0x290] sm:$0xff]
        %v1029 = vld [vmem:[%s253 + $0x298] sm:$0xff]
        %v1030 = vld [vmem:[%s253 + $0x2a0] sm:$0xff]
        %v1031 = vld [vmem:[%s253 + $0x2a8] sm:$0xff]
        %v1032 = vld [vmem:[%s253 + $0x2b0] sm:$0xff]
        %v1033 = vld [vmem:[%s253 + $0x2b8] sm:$0xff]
        %v1034 = vld [vmem:[%s253 + $0x2c0] sm:$0xff]
        %v1035 = vld [vmem:[%s253 + $0x2c8] sm:$0xff]
        %v1036 = vld [vmem:[%s253 + $0x2d0] sm:$0xff]
        %v1037 = vld [vmem:[%s253 + $0x2d8] sm:$0xff]
        %v1038 = vld [vmem:[%s253 + $0x2e0] sm:$0xff]
        %v1039 = vld [vmem:[%s253 + $0x2e8] sm:$0xff]
        %v1040 = vld [vmem:[%s253 + $0x2f0] sm:$0xff]
        %v1041 = vld [vmem:[%s253 + $0x2f8] sm:$0xff]
        %v1042 = vld [vmem:[%s253 + $0x300] sm:$0xff]
        %v1043 = vld [vmem:[%s253 + $0x308] sm:$0xff]
        %v1044 = vld [vmem:[%s253 + $0x310] sm:$0xff]
        %v1045 = vld [vmem:[%s253 + $0x318] sm:$0xff]
        %v1046 = vld [vmem:[%s253 + $0x320] sm:$0xff]
        %v1047 = vld [vmem:[%s253 + $0x328] sm:$0xff]
        %v1048 = vld [vmem:[%s253 + $0x330] sm:$0xff]
        %v1049 = vld [vmem:[%s253 + $0x338] sm:$0xff]
        %v1050 = vld [vmem:[%s253 + $0x340] sm:$0xff]
        %v1051 = vld [vmem:[%s253 + $0x348] sm:$0xff]
        %v1052 = vld [vmem:[%s253 + $0x350] sm:$0xff]
        %v1053 = vld [vmem:[%s253 + $0x358] sm:$0xff]
        %v1054 = vld [vmem:[%s253 + $0x360] sm:$0xff]
        %v1055 = vld [vmem:[%s253 + $0x368] sm:$0xff]
        %v1056 = vld [vmem:[%s253 + $0x370] sm:$0xff]
        %v1057 = vld [vmem:[%s253 + $0x378] sm:$0xff]
        %v1058 = vld [vmem:[%s253 + $0x380] sm:$0xff]
        %v1059 = vld [vmem:[%s253 + $0x388] sm:$0xff]
        %v1060 = vld [vmem:[%s253 + $0x390] sm:$0xff]
        %v1061 = vld [vmem:[%s253 + $0x398] sm:$0xff]
        %v1062 = vld [vmem:[%s253 + $0x3a0] sm:$0xff]
        %v1063 = vld [vmem:[%s253 + $0x3a8] sm:$0xff]
        %v1064 = vld [vmem:[%s253 + $0x3b0] sm:$0xff]
        %v1065 = vld [vmem:[%s253 + $0x3b8] sm:$0xff]
        %v1066 = vld [vmem:[%s253 + $0x3c0] sm:$0xff]
        %v1067 = vld [vmem:[%s253 + $0x3c8] sm:$0xff]
        %v1068 = vld [vmem:[%s253 + $0x3d0] sm:$0xff]
        %v1069 = vld [vmem:[%s253 + $0x3d8] sm:$0xff]
        %v1070 = vld [vmem:[%s253 + $0x3e0] sm:$0xff]
        %v1071 = vld [vmem:[%s253 + $0x3e8] sm:$0xff]
        %v1072 = vld [vmem:[%s253 + $0x3f0] sm:$0xff]
        %v1073 = vld [vmem:[%s253 + $0x3f8] sm:$0xff]
        %v1202 = vunpack.c.l.b16 %v818
        %v1203 = vunpack.c.h.b16 %v818
        %v1204 = vunpack.c.l.b16 %v819
        %v1205 = vunpack.c.h.b16 %v819
        %v1206 = vunpack.c.l.b16 %v820
        %v1207 = vunpack.c.h.b16 %v820
        %v1208 = vunpack.c.l.b16 %v821
        %v1209 = vunpack.c.h.b16 %v821
        %v1210 = vunpack.c.l.b16 %v822
        %v1211 = vunpack.c.h.b16 %v822
        %v1212 = vunpack.c.l.b16 %v823
        %v1213 = vunpack.c.h.b16 %v823
        %v1214 = vunpack.c.l.b16 %v824
        %v1215 = vunpack.c.h.b16 %v824
        %v1216 = vunpack.c.l.b16 %v825
        %v1217 = vunpack.c.h.b16 %v825
        %v1218 = vunpack.c.l.b16 %v826
        %v1219 = vunpack.c.h.b16 %v826
        %v1220 = vunpack.c.l.b16 %v827
        %v1221 = vunpack.c.h.b16 %v827
        %v1222 = vunpack.c.l.b16 %v828
        %v1223 = vunpack.c.h.b16 %v828
        %v1224 = vunpack.c.l.b16 %v829
        %v1225 = vunpack.c.h.b16 %v829
        %v1226 = vunpack.c.l.b16 %v830
        %v1227 = vunpack.c.h.b16 %v830
        %v1228 = vunpack.c.l.b16 %v831
        %v1229 = vunpack.c.h.b16 %v831
        %v1230 = vunpack.c.l.b16 %v832
        %v1231 = vunpack.c.h.b16 %v832
        %v1232 = vunpack.c.l.b16 %v833
        %v1233 = vunpack.c.h.b16 %v833
        %v1234 = vunpack.c.l.b16 %v834
        %v1235 = vunpack.c.h.b16 %v834
        %v1236 = vunpack.c.l.b16 %v835
        %v1237 = vunpack.c.h.b16 %v835
        %v1238 = vunpack.c.l.b16 %v836
        %v1239 = vunpack.c.h.b16 %v836
        %v1240 = vunpack.c.l.b16 %v837
        %v1241 = vunpack.c.h.b16 %v837
        %v1242 = vunpack.c.l.b16 %v838
        %v1243 = vunpack.c.h.b16 %v838
        %v1244 = vunpack.c.l.b16 %v839
        %v1245 = vunpack.c.h.b16 %v839
        %v1246 = vunpack.c.l.b16 %v840
        %v1247 = vunpack.c.h.b16 %v840
        %v1248 = vunpack.c.l.b16 %v841
        %v1249 = vunpack.c.h.b16 %v841
        %v1250 = vunpack.c.l.b16 %v842
        %v1251 = vunpack.c.h.b16 %v842
        %v1252 = vunpack.c.l.b16 %v843
        %v1253 = vunpack.c.h.b16 %v843
        %v1254 = vunpack.c.l.b16 %v844
        %v1255 = vunpack.c.h.b16 %v844
        %v1256 = vunpack.c.l.b16 %v845
        %v1257 = vunpack.c.h.b16 %v845
        %v1258 = vunpack.c.l.b16 %v846
        %v1259 = vunpack.c.h.b16 %v846
        %v1260 = vunpack.c.l.b16 %v847
        %v1261 = vunpack.c.h.b16 %v847
        %v1262 = vunpack.c.l.b16 %v848
        %v1263 = vunpack.c.h.b16 %v848
        %v1264 = vunpack.c.l.b16 %v849
        %v1265 = vunpack.c.h.b16 %v849
        %v1266 = vunpack.c.l.b16 %v850
        %v1267 = vunpack.c.h.b16 %v850
        %v1268 = vunpack.c.l.b16 %v851
        %v1269 = vunpack.c.h.b16 %v851
        %v1270 = vunpack.c.l.b16 %v852
        %v1271 = vunpack.c.h.b16 %v852
        %v1272 = vunpack.c.l.b16 %v853
        %v1273 = vunpack.c.h.b16 %v853
        %v1274 = vunpack.c.l.b16 %v854
        %v1275 = vunpack.c.h.b16 %v854
        %v1276 = vunpack.c.l.b16 %v855
        %v1277 = vunpack.c.h.b16 %v855
        %v1278 = vunpack.c.l.b16 %v856
        %v1279 = vunpack.c.h.b16 %v856
        %v1280 = vunpack.c.l.b16 %v857
        %v1281 = vunpack.c.h.b16 %v857
        %v1282 = vunpack.c.l.b16 %v858
        %v1283 = vunpack.c.h.b16 %v858
        %v1284 = vunpack.c.l.b16 %v859
        %v1285 = vunpack.c.h.b16 %v859
        %v1286 = vunpack.c.l.b16 %v860
        %v1287 = vunpack.c.h.b16 %v860
        %v1288 = vunpack.c.l.b16 %v861
        %v1289 = vunpack.c.h.b16 %v861
        %v1290 = vunpack.c.l.b16 %v862
        %v1291 = vunpack.c.h.b16 %v862
        %v1292 = vunpack.c.l.b16 %v863
        %v1293 = vunpack.c.h.b16 %v863
        %v1294 = vunpack.c.l.b16 %v864
        %v1295 = vunpack.c.h.b16 %v864
        %v1296 = vunpack.c.l.b16 %v865
        %v1297 = vunpack.c.h.b16 %v865
        %v1298 = vunpack.c.l.b16 %v866
        %v1299 = vunpack.c.h.b16 %v866
        %v1300 = vunpack.c.l.b16 %v867
        %v1301 = vunpack.c.h.b16 %v867
        %v1302 = vunpack.c.l.b16 %v868
        %v1303 = vunpack.c.h.b16 %v868
        %v1304 = vunpack.c.l.b16 %v869
        %v1305 = vunpack.c.h.b16 %v869
        %v1306 = vunpack.c.l.b16 %v870
        %v1307 = vunpack.c.h.b16 %v870
        %v1308 = vunpack.c.l.b16 %v871
        %v1309 = vunpack.c.h.b16 %v871
        %v1310 = vunpack.c.l.b16 %v872
        %v1311 = vunpack.c.h.b16 %v872
        %v1312 = vunpack.c.l.b16 %v873
        %v1313 = vunpack.c.h.b16 %v873
        %v1314 = vunpack.c.l.b16 %v874
        %v1315 = vunpack.c.h.b16 %v874
        %v1316 = vunpack.c.l.b16 %v875
        %v1317 = vunpack.c.h.b16 %v875
        %v1318 = vunpack.c.l.b16 %v876
        %v1319 = vunpack.c.h.b16 %v876
        %v1320 = vunpack.c.l.b16 %v877
        %v1321 = vunpack.c.h.b16 %v877
        %v1322 = vunpack.c.l.b16 %v878
        %v1323 = vunpack.c.h.b16 %v878
        %v1324 = vunpack.c.l.b16 %v879
        %v1325 = vunpack.c.h.b16 %v879
        %v1326 = vunpack.c.l.b16 %v880
        %v1327 = vunpack.c.h.b16 %v880
        %v1328 = vunpack.c.l.b16 %v881
        %v1329 = vunpack.c.h.b16 %v881
        %v1330 = vunpack.c.l.b16 %v882
        %v1331 = vunpack.c.h.b16 %v882
        %v1332 = vunpack.c.l.b16 %v883
        %v1333 = vunpack.c.h.b16 %v883
        %v1334 = vunpack.c.l.b16 %v884
        %v1335 = vunpack.c.h.b16 %v884
        %v1336 = vunpack.c.l.b16 %v885
        %v1337 = vunpack.c.h.b16 %v885
        %v1338 = vunpack.c.l.b16 %v886
        %v1339 = vunpack.c.h.b16 %v886
        %v1340 = vunpack.c.l.b16 %v887
        %v1341 = vunpack.c.h.b16 %v887
        %v1342 = vunpack.c.l.b16 %v888
        %v1343 = vunpack.c.h.b16 %v888
        %v1344 = vunpack.c.l.b16 %v889
        %v1345 = vunpack.c.h.b16 %v889
        %v1346 = vunpack.c.l.b16 %v890
        %v1347 = vunpack.c.h.b16 %v890
        %v1348 = vunpack.c.l.b16 %v891
        %v1349 = vunpack.c.h.b16 %v891
        %v1350 = vunpack.c.l.b16 %v892
        %v1351 = vunpack.c.h.b16 %v892
        %v1352 = vunpack.c.l.b16 %v893
        %v1353 = vunpack.c.h.b16 %v893
        %v1354 = vunpack.c.l.b16 %v894
        %v1355 = vunpack.c.h.b16 %v894
        %v1356 = vunpack.c.l.b16 %v895
        %v1357 = vunpack.c.h.b16 %v895
        %v1358 = vunpack.c.l.b16 %v896
        %v1359 = vunpack.c.h.b16 %v896
        %v1360 = vunpack.c.l.b16 %v897
        %v1361 = vunpack.c.h.b16 %v897
        %v1362 = vunpack.c.l.b16 %v898
        %v1363 = vunpack.c.h.b16 %v898
        %v1364 = vunpack.c.l.b16 %v899
        %v1365 = vunpack.c.h.b16 %v899
        %v1366 = vunpack.c.l.b16 %v900
        %v1367 = vunpack.c.h.b16 %v900
        %v1368 = vunpack.c.l.b16 %v901
        %v1369 = vunpack.c.h.b16 %v901
        %v1370 = vunpack.c.l.b16 %v902
        %v1371 = vunpack.c.h.b16 %v902
        %v1372 = vunpack.c.l.b16 %v903
        %v1373 = vunpack.c.h.b16 %v903
        %v1374 = vunpack.c.l.b16 %v904
        %v1375 = vunpack.c.h.b16 %v904
        %v1376 = vunpack.c.l.b16 %v905
        %v1377 = vunpack.c.h.b16 %v905
        %v1378 = vunpack.c.l.b16 %v906
        %v1379 = vunpack.c.h.b16 %v906
        %v1380 = vunpack.c.l.b16 %v907
        %v1381 = vunpack.c.h.b16 %v907
        %v1382 = vunpack.c.l.b16 %v908
        %v1383 = vunpack.c.h.b16 %v908
        %v1384 = vunpack.c.l.b16 %v909
        %v1385 = vunpack.c.h.b16 %v909
        %v1386 = vunpack.c.l.b16 %v910
        %v1387 = vunpack.c.h.b16 %v910
        %v1388 = vunpack.c.l.b16 %v911
        %v1389 = vunpack.c.h.b16 %v911
        %v1390 = vunpack.c.l.b16 %v912
        %v1391 = vunpack.c.h.b16 %v912
        %v1392 = vunpack.c.l.b16 %v913
        %v1393 = vunpack.c.h.b16 %v913
        %v1394 = vunpack.c.l.b16 %v914
        %v1395 = vunpack.c.h.b16 %v914
        %v1396 = vunpack.c.l.b16 %v915
        %v1397 = vunpack.c.h.b16 %v915
        %v1398 = vunpack.c.l.b16 %v916
        %v1399 = vunpack.c.h.b16 %v916
        %v1400 = vunpack.c.l.b16 %v917
        %v1401 = vunpack.c.h.b16 %v917
        %v1402 = vunpack.c.l.b16 %v918
        %v1403 = vunpack.c.h.b16 %v918
        %v1404 = vunpack.c.l.b16 %v919
        %v1405 = vunpack.c.h.b16 %v919
        %v1406 = vunpack.c.l.b16 %v920
        %v1407 = vunpack.c.h.b16 %v920
        %v1408 = vunpack.c.l.b16 %v921
        %v1409 = vunpack.c.h.b16 %v921
        %v1410 = vunpack.c.l.b16 %v922
        %v1411 = vunpack.c.h.b16 %v922
        %v1412 = vunpack.c.l.b16 %v923
        %v1413 = vunpack.c.h.b16 %v923
        %v1414 = vunpack.c.l.b16 %v924
        %v1415 = vunpack.c.h.b16 %v924
        %v1416 = vunpack.c.l.b16 %v925
        %v1417 = vunpack.c.h.b16 %v925
        %v1418 = vunpack.c.l.b16 %v926
        %v1419 = vunpack.c.h.b16 %v926
        %v1420 = vunpack.c.l.b16 %v927
        %v1421 = vunpack.c.h.b16 %v927
        %v1422 = vunpack.c.l.b16 %v928
        %v1423 = vunpack.c.h.b16 %v928
        %v1424 = vunpack.c.l.b16 %v929
        %v1425 = vunpack.c.h.b16 %v929
        %v1426 = vunpack.c.l.b16 %v930
        %v1427 = vunpack.c.h.b16 %v930
        %v1428 = vunpack.c.l.b16 %v931
        %v1429 = vunpack.c.h.b16 %v931
        %v1430 = vunpack.c.l.b16 %v932
        %v1431 = vunpack.c.h.b16 %v932
        %v1432 = vunpack.c.l.b16 %v933
        %v1433 = vunpack.c.h.b16 %v933
        %v1434 = vunpack.c.l.b16 %v934
        %v1435 = vunpack.c.h.b16 %v934
        %v1436 = vunpack.c.l.b16 %v935
        %v1437 = vunpack.c.h.b16 %v935
        %v1438 = vunpack.c.l.b16 %v936
        %v1439 = vunpack.c.h.b16 %v936
        %v1440 = vunpack.c.l.b16 %v937
        %v1441 = vunpack.c.h.b16 %v937
        %v1442 = vunpack.c.l.b16 %v938
        %v1443 = vunpack.c.h.b16 %v938
        %v1444 = vunpack.c.l.b16 %v939
        %v1445 = vunpack.c.h.b16 %v939
        %v1446 = vunpack.c.l.b16 %v940
        %v1447 = vunpack.c.h.b16 %v940
        %v1448 = vunpack.c.l.b16 %v941
        %v1449 = vunpack.c.h.b16 %v941
        %v1450 = vunpack.c.l.b16 %v942
        %v1451 = vunpack.c.h.b16 %v942
        %v1452 = vunpack.c.l.b16 %v943
        %v1453 = vunpack.c.h.b16 %v943
        %v1454 = vunpack.c.l.b16 %v944
        %v1455 = vunpack.c.h.b16 %v944
        %v1456 = vunpack.c.l.b16 %v945
        %v1457 = vunpack.c.h.b16 %v945
        %v1458 = vpack.c.b16 %v1206, %v1202
        %v1459 = vpack.c.b16 %v1207, %v1203
        %v1460 = vpack.c.b16 %v1208, %v1204
        %v1461 = vpack.c.b16 %v1209, %v1205
        %v1462 = vpack.c.b16 %v1214, %v1210
        %v1463 = vpack.c.b16 %v1215, %v1211
        %v1464 = vpack.c.b16 %v1216, %v1212
        %v1465 = vpack.c.b16 %v1217, %v1213
        %v1466 = vpack.c.b16 %v1222, %v1218
        %v1467 = vpack.c.b16 %v1223, %v1219
        %v1468 = vpack.c.b16 %v1224, %v1220
        %v1469 = vpack.c.b16 %v1225, %v1221
        %v1470 = vpack.c.b16 %v1230, %v1226
        %v1471 = vpack.c.b16 %v1231, %v1227
        %v1472 = vpack.c.b16 %v1232, %v1228
        %v1473 = vpack.c.b16 %v1233, %v1229
        %v1474 = vpack.c.b16 %v1238, %v1234
        %v1475 = vpack.c.b16 %v1239, %v1235
        %v1476 = vpack.c.b16 %v1240, %v1236
        %v1477 = vpack.c.b16 %v1241, %v1237
        %v1478 = vpack.c.b16 %v1246, %v1242
        %v1479 = vpack.c.b16 %v1247, %v1243
        %v1480 = vpack.c.b16 %v1248, %v1244
        %v1481 = vpack.c.b16 %v1249, %v1245
        %v1482 = vpack.c.b16 %v1254, %v1250
        %v1483 = vpack.c.b16 %v1255, %v1251
        %v1484 = vpack.c.b16 %v1256, %v1252
        %v1485 = vpack.c.b16 %v1257, %v1253
        %v1486 = vpack.c.b16 %v1262, %v1258
        %v1487 = vpack.c.b16 %v1263, %v1259
        %v1488 = vpack.c.b16 %v1264, %v1260
        %v1489 = vpack.c.b16 %v1265, %v1261
        %v1490 = vpack.c.b16 %v1270, %v1266
        %v1491 = vpack.c.b16 %v1271, %v1267
        %v1492 = vpack.c.b16 %v1272, %v1268
        %v1493 = vpack.c.b16 %v1273, %v1269
        %v1494 = vpack.c.b16 %v1278, %v1274
        %v1495 = vpack.c.b16 %v1279, %v1275
        %v1496 = vpack.c.b16 %v1280, %v1276
        %v1497 = vpack.c.b16 %v1281, %v1277
        %v1498 = vpack.c.b16 %v1286, %v1282
        %v1499 = vpack.c.b16 %v1287, %v1283
        %v1500 = vpack.c.b16 %v1288, %v1284
        %v1501 = vpack.c.b16 %v1289, %v1285
        %v1502 = vpack.c.b16 %v1294, %v1290
        %v1503 = vpack.c.b16 %v1295, %v1291
        %v1504 = vpack.c.b16 %v1296, %v1292
        %v1505 = vpack.c.b16 %v1297, %v1293
        %v1506 = vpack.c.b16 %v1302, %v1298
        %v1507 = vpack.c.b16 %v1303, %v1299
        %v1508 = vpack.c.b16 %v1304, %v1300
        %v1509 = vpack.c.b16 %v1305, %v1301
        %v1510 = vpack.c.b16 %v1310, %v1306
        %v1511 = vpack.c.b16 %v1311, %v1307
        %v1512 = vpack.c.b16 %v1312, %v1308
        %v1513 = vpack.c.b16 %v1313, %v1309
        %v1514 = vpack.c.b16 %v1318, %v1314
        %v1515 = vpack.c.b16 %v1319, %v1315
        %v1516 = vpack.c.b16 %v1320, %v1316
        %v1517 = vpack.c.b16 %v1321, %v1317
        %v1518 = vpack.c.b16 %v1326, %v1322
        %v1519 = vpack.c.b16 %v1327, %v1323
        %v1520 = vpack.c.b16 %v1328, %v1324
        %v1521 = vpack.c.b16 %v1329, %v1325
        %v1522 = vpack.c.b16 %v1334, %v1330
        %v1523 = vpack.c.b16 %v1335, %v1331
        %v1524 = vpack.c.b16 %v1336, %v1332
        %v1525 = vpack.c.b16 %v1337, %v1333
        %v1526 = vpack.c.b16 %v1342, %v1338
        %v1527 = vpack.c.b16 %v1343, %v1339
        %v1528 = vpack.c.b16 %v1344, %v1340
        %v1529 = vpack.c.b16 %v1345, %v1341
        %v1530 = vpack.c.b16 %v1350, %v1346
        %v1531 = vpack.c.b16 %v1351, %v1347
        %v1532 = vpack.c.b16 %v1352, %v1348
        %v1533 = vpack.c.b16 %v1353, %v1349
        %v1534 = vpack.c.b16 %v1358, %v1354
        %v1535 = vpack.c.b16 %v1359, %v1355
        %v1536 = vpack.c.b16 %v1360, %v1356
        %v1537 = vpack.c.b16 %v1361, %v1357
        %v1538 = vpack.c.b16 %v1366, %v1362
        %v1539 = vpack.c.b16 %v1367, %v1363
        %v1540 = vpack.c.b16 %v1368, %v1364
        %v1541 = vpack.c.b16 %v1369, %v1365
        %v1542 = vpack.c.b16 %v1374, %v1370
        %v1543 = vpack.c.b16 %v1375, %v1371
        %v1544 = vpack.c.b16 %v1376, %v1372
        %v1545 = vpack.c.b16 %v1377, %v1373
        %v1546 = vpack.c.b16 %v1382, %v1378
        %v1547 = vpack.c.b16 %v1383, %v1379
        %v1548 = vpack.c.b16 %v1384, %v1380
        %v1549 = vpack.c.b16 %v1385, %v1381
        %v1550 = vpack.c.b16 %v1390, %v1386
        %v1551 = vpack.c.b16 %v1391, %v1387
        %v1552 = vpack.c.b16 %v1392, %v1388
        %v1553 = vpack.c.b16 %v1393, %v1389
        %v1554 = vpack.c.b16 %v1398, %v1394
        %v1555 = vpack.c.b16 %v1399, %v1395
        %v1556 = vpack.c.b16 %v1400, %v1396
        %v1557 = vpack.c.b16 %v1401, %v1397
        %v1558 = vpack.c.b16 %v1406, %v1402
        %v1559 = vpack.c.b16 %v1407, %v1403
        %v1560 = vpack.c.b16 %v1408, %v1404
        %v1561 = vpack.c.b16 %v1409, %v1405
        %v1562 = vpack.c.b16 %v1414, %v1410
        %v1563 = vpack.c.b16 %v1415, %v1411
        %v1564 = vpack.c.b16 %v1416, %v1412
        %v1565 = vpack.c.b16 %v1417, %v1413
        %v1566 = vpack.c.b16 %v1422, %v1418
        %v1567 = vpack.c.b16 %v1423, %v1419
        %v1568 = vpack.c.b16 %v1424, %v1420
        %v1569 = vpack.c.b16 %v1425, %v1421
        %v1570 = vpack.c.b16 %v1430, %v1426
        %v1571 = vpack.c.b16 %v1431, %v1427
        %v1572 = vpack.c.b16 %v1432, %v1428
        %v1573 = vpack.c.b16 %v1433, %v1429
        %v1574 = vpack.c.b16 %v1438, %v1434
        %v1575 = vpack.c.b16 %v1439, %v1435
        %v1576 = vpack.c.b16 %v1440, %v1436
        %v1577 = vpack.c.b16 %v1441, %v1437
        %v1578 = vpack.c.b16 %v1446, %v1442
        %v1579 = vpack.c.b16 %v1447, %v1443
        %v1580 = vpack.c.b16 %v1448, %v1444
        %v1581 = vpack.c.b16 %v1449, %v1445
        %v1582 = vpack.c.b16 %v1454, %v1450
        %v1583 = vpack.c.b16 %v1455, %v1451
        %v1584 = vpack.c.b16 %v1456, %v1452
        %v1585 = vpack.c.b16 %v1457, %v1453
        %v1842 = vunpack.c.l.b16 %v946
        %v1843 = vunpack.c.h.b16 %v946
        %v1844 = vunpack.c.l.b16 %v947
        %v1845 = vunpack.c.h.b16 %v947
        %v1846 = vunpack.c.l.b16 %v948
        %v1847 = vunpack.c.h.b16 %v948
        %v1848 = vunpack.c.l.b16 %v949
        %v1849 = vunpack.c.h.b16 %v949
        %v1850 = vunpack.c.l.b16 %v950
        %v1851 = vunpack.c.h.b16 %v950
        %v1852 = vunpack.c.l.b16 %v951
        %v1853 = vunpack.c.h.b16 %v951
        %v1854 = vunpack.c.l.b16 %v952
        %v1855 = vunpack.c.h.b16 %v952
        %v1856 = vunpack.c.l.b16 %v953
        %v1857 = vunpack.c.h.b16 %v953
        %v1858 = vunpack.c.l.b16 %v954
        %v1859 = vunpack.c.h.b16 %v954
        %v1860 = vunpack.c.l.b16 %v955
        %v1861 = vunpack.c.h.b16 %v955
        %v1862 = vunpack.c.l.b16 %v956
        %v1863 = vunpack.c.h.b16 %v956
        %v1864 = vunpack.c.l.b16 %v957
        %v1865 = vunpack.c.h.b16 %v957
        %v1866 = vunpack.c.l.b16 %v958
        %v1867 = vunpack.c.h.b16 %v958
        %v1868 = vunpack.c.l.b16 %v959
        %v1869 = vunpack.c.h.b16 %v959
        %v1870 = vunpack.c.l.b16 %v960
        %v1871 = vunpack.c.h.b16 %v960
        %v1872 = vunpack.c.l.b16 %v961
        %v1873 = vunpack.c.h.b16 %v961
        %v1874 = vunpack.c.l.b16 %v962
        %v1875 = vunpack.c.h.b16 %v962
        %v1876 = vunpack.c.l.b16 %v963
        %v1877 = vunpack.c.h.b16 %v963
        %v1878 = vunpack.c.l.b16 %v964
        %v1879 = vunpack.c.h.b16 %v964
        %v1880 = vunpack.c.l.b16 %v965
        %v1881 = vunpack.c.h.b16 %v965
        %v1882 = vunpack.c.l.b16 %v966
        %v1883 = vunpack.c.h.b16 %v966
        %v1884 = vunpack.c.l.b16 %v967
        %v1885 = vunpack.c.h.b16 %v967
        %v1886 = vunpack.c.l.b16 %v968
        %v1887 = vunpack.c.h.b16 %v968
        %v1888 = vunpack.c.l.b16 %v969
        %v1889 = vunpack.c.h.b16 %v969
        %v1890 = vunpack.c.l.b16 %v970
        %v1891 = vunpack.c.h.b16 %v970
        %v1892 = vunpack.c.l.b16 %v971
        %v1893 = vunpack.c.h.b16 %v971
        %v1894 = vunpack.c.l.b16 %v972
        %v1895 = vunpack.c.h.b16 %v972
        %v1896 = vunpack.c.l.b16 %v973
        %v1897 = vunpack.c.h.b16 %v973
        %v1898 = vunpack.c.l.b16 %v974
        %v1899 = vunpack.c.h.b16 %v974
        %v1900 = vunpack.c.l.b16 %v975
        %v1901 = vunpack.c.h.b16 %v975
        %v1902 = vunpack.c.l.b16 %v976
        %v1903 = vunpack.c.h.b16 %v976
        %v1904 = vunpack.c.l.b16 %v977
        %v1905 = vunpack.c.h.b16 %v977
        %v1906 = vunpack.c.l.b16 %v978
        %v1907 = vunpack.c.h.b16 %v978
        %v1908 = vunpack.c.l.b16 %v979
        %v1909 = vunpack.c.h.b16 %v979
        %v1910 = vunpack.c.l.b16 %v980
        %v1911 = vunpack.c.h.b16 %v980
        %v1912 = vunpack.c.l.b16 %v981
        %v1913 = vunpack.c.h.b16 %v981
        %v1914 = vunpack.c.l.b16 %v982
        %v1915 = vunpack.c.h.b16 %v982
        %v1916 = vunpack.c.l.b16 %v983
        %v1917 = vunpack.c.h.b16 %v983
        %v1918 = vunpack.c.l.b16 %v984
        %v1919 = vunpack.c.h.b16 %v984
        %v1920 = vunpack.c.l.b16 %v985
        %v1921 = vunpack.c.h.b16 %v985
        %v1922 = vunpack.c.l.b16 %v986
        %v1923 = vunpack.c.h.b16 %v986
        %v1924 = vunpack.c.l.b16 %v987
        %v1925 = vunpack.c.h.b16 %v987
        %v1926 = vunpack.c.l.b16 %v988
        %v1927 = vunpack.c.h.b16 %v988
        %v1928 = vunpack.c.l.b16 %v989
        %v1929 = vunpack.c.h.b16 %v989
        %v1930 = vunpack.c.l.b16 %v990
        %v1931 = vunpack.c.h.b16 %v990
        %v1932 = vunpack.c.l.b16 %v991
        %v1933 = vunpack.c.h.b16 %v991
        %v1934 = vunpack.c.l.b16 %v992
        %v1935 = vunpack.c.h.b16 %v992
        %v1936 = vunpack.c.l.b16 %v993
        %v1937 = vunpack.c.h.b16 %v993
        %v1938 = vunpack.c.l.b16 %v994
        %v1939 = vunpack.c.h.b16 %v994
        %v1940 = vunpack.c.l.b16 %v995
        %v1941 = vunpack.c.h.b16 %v995
        %v1942 = vunpack.c.l.b16 %v996
        %v1943 = vunpack.c.h.b16 %v996
        %v1944 = vunpack.c.l.b16 %v997
        %v1945 = vunpack.c.h.b16 %v997
        %v1946 = vunpack.c.l.b16 %v998
        %v1947 = vunpack.c.h.b16 %v998
        %v1948 = vunpack.c.l.b16 %v999
        %v1949 = vunpack.c.h.b16 %v999
        %v1950 = vunpack.c.l.b16 %v1000
        %v1951 = vunpack.c.h.b16 %v1000
        %v1952 = vunpack.c.l.b16 %v1001
        %v1953 = vunpack.c.h.b16 %v1001
        %v1954 = vunpack.c.l.b16 %v1002
        %v1955 = vunpack.c.h.b16 %v1002
        %v1956 = vunpack.c.l.b16 %v1003
        %v1957 = vunpack.c.h.b16 %v1003
        %v1958 = vunpack.c.l.b16 %v1004
        %v1959 = vunpack.c.h.b16 %v1004
        %v1960 = vunpack.c.l.b16 %v1005
        %v1961 = vunpack.c.h.b16 %v1005
        %v1962 = vunpack.c.l.b16 %v1006
        %v1963 = vunpack.c.h.b16 %v1006
        %v1964 = vunpack.c.l.b16 %v1007
        %v1965 = vunpack.c.h.b16 %v1007
        %v1966 = vunpack.c.l.b16 %v1008
        %v1967 = vunpack.c.h.b16 %v1008
        %v1968 = vunpack.c.l.b16 %v1009
        %v1969 = vunpack.c.h.b16 %v1009
        %v1970 = vunpack.c.l.b16 %v1010
        %v1971 = vunpack.c.h.b16 %v1010
        %v1972 = vunpack.c.l.b16 %v1011
        %v1973 = vunpack.c.h.b16 %v1011
        %v1974 = vunpack.c.l.b16 %v1012
        %v1975 = vunpack.c.h.b16 %v1012
        %v1976 = vunpack.c.l.b16 %v1013
        %v1977 = vunpack.c.h.b16 %v1013
        %v1978 = vunpack.c.l.b16 %v1014
        %v1979 = vunpack.c.h.b16 %v1014
        %v1980 = vunpack.c.l.b16 %v1015
        %v1981 = vunpack.c.h.b16 %v1015
        %v1982 = vunpack.c.l.b16 %v1016
        %v1983 = vunpack.c.h.b16 %v1016
        %v1984 = vunpack.c.l.b16 %v1017
        %v1985 = vunpack.c.h.b16 %v1017
        %v1986 = vunpack.c.l.b16 %v1018
        %v1987 = vunpack.c.h.b16 %v1018
        %v1988 = vunpack.c.l.b16 %v1019
        %v1989 = vunpack.c.h.b16 %v1019
        %v1990 = vunpack.c.l.b16 %v1020
        %v1991 = vunpack.c.h.b16 %v1020
        %v1992 = vunpack.c.l.b16 %v1021
        %v1993 = vunpack.c.h.b16 %v1021
        %v1994 = vunpack.c.l.b16 %v1022
        %v1995 = vunpack.c.h.b16 %v1022
        %v1996 = vunpack.c.l.b16 %v1023
        %v1997 = vunpack.c.h.b16 %v1023
        %v1998 = vunpack.c.l.b16 %v1024
        %v1999 = vunpack.c.h.b16 %v1024
        %v2000 = vunpack.c.l.b16 %v1025
        %v2001 = vunpack.c.h.b16 %v1025
        %v2002 = vunpack.c.l.b16 %v1026
        %v2003 = vunpack.c.h.b16 %v1026
        %v2004 = vunpack.c.l.b16 %v1027
        %v2005 = vunpack.c.h.b16 %v1027
        %v2006 = vunpack.c.l.b16 %v1028
        %v2007 = vunpack.c.h.b16 %v1028
        %v2008 = vunpack.c.l.b16 %v1029
        %v2009 = vunpack.c.h.b16 %v1029
        %v2010 = vunpack.c.l.b16 %v1030
        %v2011 = vunpack.c.h.b16 %v1030
        %v2012 = vunpack.c.l.b16 %v1031
        %v2013 = vunpack.c.h.b16 %v1031
        %v2014 = vunpack.c.l.b16 %v1032
        %v2015 = vunpack.c.h.b16 %v1032
        %v2016 = vunpack.c.l.b16 %v1033
        %v2017 = vunpack.c.h.b16 %v1033
        %v2018 = vunpack.c.l.b16 %v1034
        %v2019 = vunpack.c.h.b16 %v1034
        %v2020 = vunpack.c.l.b16 %v1035
        %v2021 = vunpack.c.h.b16 %v1035
        %v2022 = vunpack.c.l.b16 %v1036
        %v2023 = vunpack.c.h.b16 %v1036
        %v2024 = vunpack.c.l.b16 %v1037
        %v2025 = vunpack.c.h.b16 %v1037
        %v2026 = vunpack.c.l.b16 %v1038
        %v2027 = vunpack.c.h.b16 %v1038
        %v2028 = vunpack.c.l.b16 %v1039
        %v2029 = vunpack.c.h.b16 %v1039
        %v2030 = vunpack.c.l.b16 %v1040
        %v2031 = vunpack.c.h.b16 %v1040
        %v2032 = vunpack.c.l.b16 %v1041
        %v2033 = vunpack.c.h.b16 %v1041
        %v2034 = vunpack.c.l.b16 %v1042
        %v2035 = vunpack.c.h.b16 %v1042
        %v2036 = vunpack.c.l.b16 %v1043
        %v2037 = vunpack.c.h.b16 %v1043
        %v2038 = vunpack.c.l.b16 %v1044
        %v2039 = vunpack.c.h.b16 %v1044
        %v2040 = vunpack.c.l.b16 %v1045
        %v2041 = vunpack.c.h.b16 %v1045
        %v2042 = vunpack.c.l.b16 %v1046
        %v2043 = vunpack.c.h.b16 %v1046
        %v2044 = vunpack.c.l.b16 %v1047
        %v2045 = vunpack.c.h.b16 %v1047
        %v2046 = vunpack.c.l.b16 %v1048
        %v2047 = vunpack.c.h.b16 %v1048
        %v2048 = vunpack.c.l.b16 %v1049
        %v2049 = vunpack.c.h.b16 %v1049
        %v2050 = vunpack.c.l.b16 %v1050
        %v2051 = vunpack.c.h.b16 %v1050
        %v2052 = vunpack.c.l.b16 %v1051
        %v2053 = vunpack.c.h.b16 %v1051
        %v2054 = vunpack.c.l.b16 %v1052
        %v2055 = vunpack.c.h.b16 %v1052
        %v2056 = vunpack.c.l.b16 %v1053
        %v2057 = vunpack.c.h.b16 %v1053
        %v2058 = vunpack.c.l.b16 %v1054
        %v2059 = vunpack.c.h.b16 %v1054
        %v2060 = vunpack.c.l.b16 %v1055
        %v2061 = vunpack.c.h.b16 %v1055
        %v2062 = vunpack.c.l.b16 %v1056
        %v2063 = vunpack.c.h.b16 %v1056
        %v2064 = vunpack.c.l.b16 %v1057
        %v2065 = vunpack.c.h.b16 %v1057
        %v2066 = vunpack.c.l.b16 %v1058
        %v2067 = vunpack.c.h.b16 %v1058
        %v2068 = vunpack.c.l.b16 %v1059
        %v2069 = vunpack.c.h.b16 %v1059
        %v2070 = vunpack.c.l.b16 %v1060
        %v2071 = vunpack.c.h.b16 %v1060
        %v2072 = vunpack.c.l.b16 %v1061
        %v2073 = vunpack.c.h.b16 %v1061
        %v2074 = vunpack.c.l.b16 %v1062
        %v2075 = vunpack.c.h.b16 %v1062
        %v2076 = vunpack.c.l.b16 %v1063
        %v2077 = vunpack.c.h.b16 %v1063
        %v2078 = vunpack.c.l.b16 %v1064
        %v2079 = vunpack.c.h.b16 %v1064
        %v2080 = vunpack.c.l.b16 %v1065
        %v2081 = vunpack.c.h.b16 %v1065
        %v2082 = vunpack.c.l.b16 %v1066
        %v2083 = vunpack.c.h.b16 %v1066
        %v2084 = vunpack.c.l.b16 %v1067
        %v2085 = vunpack.c.h.b16 %v1067
        %v2086 = vunpack.c.l.b16 %v1068
        %v2087 = vunpack.c.h.b16 %v1068
        %v2088 = vunpack.c.l.b16 %v1069
        %v2089 = vunpack.c.h.b16 %v1069
        %v2090 = vunpack.c.l.b16 %v1070
        %v2091 = vunpack.c.h.b16 %v1070
        %v2092 = vunpack.c.l.b16 %v1071
        %v2093 = vunpack.c.h.b16 %v1071
        %v2094 = vunpack.c.l.b16 %v1072
        %v2095 = vunpack.c.h.b16 %v1072
        %v2096 = vunpack.c.l.b16 %v1073
        %v2097 = vunpack.c.h.b16 %v1073
        %v2098 = vpack.c.b16 %v1846, %v1842
        %v2099 = vpack.c.b16 %v1847, %v1843
        %v2100 = vpack.c.b16 %v1848, %v1844
        %v2101 = vpack.c.b16 %v1849, %v1845
        %v2102 = vpack.c.b16 %v1854, %v1850
        %v2103 = vpack.c.b16 %v1855, %v1851
        %v2104 = vpack.c.b16 %v1856, %v1852
        %v2105 = vpack.c.b16 %v1857, %v1853
        %v2106 = vpack.c.b16 %v1862, %v1858
        %v2107 = vpack.c.b16 %v1863, %v1859
        %v2108 = vpack.c.b16 %v1864, %v1860
        %v2109 = vpack.c.b16 %v1865, %v1861
        %v2110 = vpack.c.b16 %v1870, %v1866
        %v2111 = vpack.c.b16 %v1871, %v1867
        %v2112 = vpack.c.b16 %v1872, %v1868
        %v2113 = vpack.c.b16 %v1873, %v1869
        %v2114 = vpack.c.b16 %v1878, %v1874
        %v2115 = vpack.c.b16 %v1879, %v1875
        %v2116 = vpack.c.b16 %v1880, %v1876
        %v2117 = vpack.c.b16 %v1881, %v1877
        %v2118 = vpack.c.b16 %v1886, %v1882
        %v2119 = vpack.c.b16 %v1887, %v1883
        %v2120 = vpack.c.b16 %v1888, %v1884
        %v2121 = vpack.c.b16 %v1889, %v1885
        %v2122 = vpack.c.b16 %v1894, %v1890
        %v2123 = vpack.c.b16 %v1895, %v1891
        %v2124 = vpack.c.b16 %v1896, %v1892
        %v2125 = vpack.c.b16 %v1897, %v1893
        %v2126 = vpack.c.b16 %v1902, %v1898
        %v2127 = vpack.c.b16 %v1903, %v1899
        %v2128 = vpack.c.b16 %v1904, %v1900
        %v2129 = vpack.c.b16 %v1905, %v1901
        %v2130 = vpack.c.b16 %v1910, %v1906
        %v2131 = vpack.c.b16 %v1911, %v1907
        %v2132 = vpack.c.b16 %v1912, %v1908
        %v2133 = vpack.c.b16 %v1913, %v1909
        %v2134 = vpack.c.b16 %v1918, %v1914
        %v2135 = vpack.c.b16 %v1919, %v1915
        %v2136 = vpack.c.b16 %v1920, %v1916
        %v2137 = vpack.c.b16 %v1921, %v1917
        %v2138 = vpack.c.b16 %v1926, %v1922
        %v2139 = vpack.c.b16 %v1927, %v1923
        %v2140 = vpack.c.b16 %v1928, %v1924
        %v2141 = vpack.c.b16 %v1929, %v1925
        %v2142 = vpack.c.b16 %v1934, %v1930
        %v2143 = vpack.c.b16 %v1935, %v1931
        %v2144 = vpack.c.b16 %v1936, %v1932
        %v2145 = vpack.c.b16 %v1937, %v1933
        %v2146 = vpack.c.b16 %v1942, %v1938
        %v2147 = vpack.c.b16 %v1943, %v1939
        %v2148 = vpack.c.b16 %v1944, %v1940
        %v2149 = vpack.c.b16 %v1945, %v1941
        %v2150 = vpack.c.b16 %v1950, %v1946
        %v2151 = vpack.c.b16 %v1951, %v1947
        %v2152 = vpack.c.b16 %v1952, %v1948
        %v2153 = vpack.c.b16 %v1953, %v1949
        %v2154 = vpack.c.b16 %v1958, %v1954
        %v2155 = vpack.c.b16 %v1959, %v1955
        %v2156 = vpack.c.b16 %v1960, %v1956
        %v2157 = vpack.c.b16 %v1961, %v1957
        %v2158 = vpack.c.b16 %v1966, %v1962
        %v2159 = vpack.c.b16 %v1967, %v1963
        %v2160 = vpack.c.b16 %v1968, %v1964
        %v2161 = vpack.c.b16 %v1969, %v1965
        %v2162 = vpack.c.b16 %v1974, %v1970
        %v2163 = vpack.c.b16 %v1975, %v1971
        %v2164 = vpack.c.b16 %v1976, %v1972
        %v2165 = vpack.c.b16 %v1977, %v1973
        %v2166 = vpack.c.b16 %v1982, %v1978
        %v2167 = vpack.c.b16 %v1983, %v1979
        %v2168 = vpack.c.b16 %v1984, %v1980
        %v2169 = vpack.c.b16 %v1985, %v1981
        %v2170 = vpack.c.b16 %v1990, %v1986
        %v2171 = vpack.c.b16 %v1991, %v1987
        %v2172 = vpack.c.b16 %v1992, %v1988
        %v2173 = vpack.c.b16 %v1993, %v1989
        %v2174 = vpack.c.b16 %v1998, %v1994
        %v2175 = vpack.c.b16 %v1999, %v1995
        %v2176 = vpack.c.b16 %v2000, %v1996
        %v2177 = vpack.c.b16 %v2001, %v1997
        %v2178 = vpack.c.b16 %v2006, %v2002
        %v2179 = vpack.c.b16 %v2007, %v2003
        %v2180 = vpack.c.b16 %v2008, %v2004
        %v2181 = vpack.c.b16 %v2009, %v2005
        %v2182 = vpack.c.b16 %v2014, %v2010
        %v2183 = vpack.c.b16 %v2015, %v2011
        %v2184 = vpack.c.b16 %v2016, %v2012
        %v2185 = vpack.c.b16 %v2017, %v2013
        %v2186 = vpack.c.b16 %v2022, %v2018
        %v2187 = vpack.c.b16 %v2023, %v2019
        %v2188 = vpack.c.b16 %v2024, %v2020
        %v2189 = vpack.c.b16 %v2025, %v2021
        %v2190 = vpack.c.b16 %v2030, %v2026
        %v2191 = vpack.c.b16 %v2031, %v2027
        %v2192 = vpack.c.b16 %v2032, %v2028
        %v2193 = vpack.c.b16 %v2033, %v2029
        %v2194 = vpack.c.b16 %v2038, %v2034
        %v2195 = vpack.c.b16 %v2039, %v2035
        %v2196 = vpack.c.b16 %v2040, %v2036
        %v2197 = vpack.c.b16 %v2041, %v2037
        %v2198 = vpack.c.b16 %v2046, %v2042
        %v2199 = vpack.c.b16 %v2047, %v2043
        %v2200 = vpack.c.b16 %v2048, %v2044
        %v2201 = vpack.c.b16 %v2049, %v2045
        %v2202 = vpack.c.b16 %v2054, %v2050
        %v2203 = vpack.c.b16 %v2055, %v2051
        %v2204 = vpack.c.b16 %v2056, %v2052
        %v2205 = vpack.c.b16 %v2057, %v2053
        %v2206 = vpack.c.b16 %v2062, %v2058
        %v2207 = vpack.c.b16 %v2063, %v2059
        %v2208 = vpack.c.b16 %v2064, %v2060
        %v2209 = vpack.c.b16 %v2065, %v2061
        %v2210 = vpack.c.b16 %v2070, %v2066
        %v2211 = vpack.c.b16 %v2071, %v2067
        %v2212 = vpack.c.b16 %v2072, %v2068
        %v2213 = vpack.c.b16 %v2073, %v2069
        %v2214 = vpack.c.b16 %v2078, %v2074
        %v2215 = vpack.c.b16 %v2079, %v2075
        %v2216 = vpack.c.b16 %v2080, %v2076
        %v2217 = vpack.c.b16 %v2081, %v2077
        %v2218 = vpack.c.b16 %v2086, %v2082
        %v2219 = vpack.c.b16 %v2087, %v2083
        %v2220 = vpack.c.b16 %v2088, %v2084
        %v2221 = vpack.c.b16 %v2089, %v2085
        %v2222 = vpack.c.b16 %v2094, %v2090
        %v2223 = vpack.c.b16 %v2095, %v2091
        %v2224 = vpack.c.b16 %v2096, %v2092
        %v2225 = vpack.c.b16 %v2097, %v2093
        %2354 = vmatprep.subr.bf16.mxu0 %v2099
        %2355 = vmatpush1.bf16.msra.mxu0 %v2098
        %2356 = vmatprep.subr.bf16.mxu0 %v2103
        %2357 = vmatpush1.bf16.msra.mxu0 %v2102
        %2358 = vmatprep.subr.bf16.mxu0 %v2107
        %2359 = vmatpush1.bf16.msra.mxu0 %v2106
        %2360 = vmatprep.subr.bf16.mxu0 %v2111
        %2361 = vmatpush1.bf16.msra.mxu0 %v2110
        %2362 = vmatprep.subr.bf16.mxu0 %v2115
        %2363 = vmatpush1.bf16.msra.mxu0 %v2114
        %2364 = vmatprep.subr.bf16.mxu0 %v2119
        %2365 = vmatpush1.bf16.msra.mxu0 %v2118
        %2366 = vmatprep.subr.bf16.mxu0 %v2123
        %2367 = vmatpush1.bf16.msra.mxu0 %v2122
        %2368 = vmatprep.subr.bf16.mxu0 %v2127
        %2369 = vmatpush1.bf16.msra.mxu0 %v2126
        %2370 = vmatprep.subr.bf16.mxu0 %v2131
        %2371 = vmatpush1.bf16.msra.mxu0 %v2130
        %2372 = vmatprep.subr.bf16.mxu0 %v2135
        %2373 = vmatpush1.bf16.msra.mxu0 %v2134
        %2374 = vmatprep.subr.bf16.mxu0 %v2139
        %2375 = vmatpush1.bf16.msra.mxu0 %v2138
        %2376 = vmatprep.subr.bf16.mxu0 %v2143
        %2377 = vmatpush1.bf16.msra.mxu0 %v2142
        %2378 = vmatprep.subr.bf16.mxu0 %v2147
        %2379 = vmatpush1.bf16.msra.mxu0 %v2146
        %2380 = vmatprep.subr.bf16.mxu0 %v2151
        %2381 = vmatpush1.bf16.msra.mxu0 %v2150
        %2382 = vmatprep.subr.bf16.mxu0 %v2155
        %2383 = vmatpush1.bf16.msra.mxu0 %v2154
        %2384 = vmatprep.subr.bf16.mxu0 %v2159
        %2385 = vmatpush1.bf16.msra.mxu0 %v2158
        %2386 = vmatprep.mubr.bf16.mxu0 %v1459
        %2387 = vmatmul.mubr.bf16.gmra.mrb[0].mxu0 %v1458
        %v2388 = vpop.f32.mrb[0].mxu0
        %v2389 = vadd.f32 0.0, %v2388
        %v2390 = vpop.f32.mrb[0].mxu0
        %v2391 = vadd.f32 0.0, %v2390
        %v2392 = vpop.f32.mrb[0].mxu0
        %v2393 = vadd.f32 0.0, %v2392
        %v2394 = vpop.f32.mrb[0].mxu0
        %v2395 = vadd.f32 0.0, %v2394
        %2396 = vmatprep.mubr.bf16.mxu0 %v1463
        %2397 = vmatmul.mubr.bf16.gmra.mrb[0].mxu0 %v1462
        %v2398 = vpop.f32.mrb[0].mxu0
        %v2399 = vadd.f32 0.0, %v2398
        %v2400 = vpop.f32.mrb[0].mxu0
        %v2401 = vadd.f32 0.0, %v2400
        %v2402 = vpop.f32.mrb[0].mxu0
        %v2403 = vadd.f32 0.0, %v2402
        %v2404 = vpop.f32.mrb[0].mxu0
        %v2405 = vadd.f32 0.0, %v2404
        %2406 = vmatprep.mubr.bf16.mxu0 %v1467
        %2407 = vmatmul.mubr.bf16.gmra.mrb[0].mxu0 %v1466
        %v2408 = vpop.f32.mrb[0].mxu0
        %v2409 = vadd.f32 0.0, %v2408
        %v2410 = vpop.f32.mrb[0].mxu0
        %v2411 = vadd.f32 0.0, %v2410
        %v2412 = vpop.f32.mrb[0].mxu0
        %v2413 = vadd.f32 0.0, %v2412
        %v2414 = vpop.f32.mrb[0].mxu0
        %v2415 = vadd.f32 0.0, %v2414
        %2416 = vmatprep.mubr.bf16.mxu0 %v1471
        %2417 = vmatmul.mubr.bf16.gmra.mrb[0].mxu0 %v1470
        %v2418 = vpop.f32.mrb[0].mxu0
        %v2419 = vadd.f32 0.0, %v2418
        %v2420 = vpop.f32.mrb[0].mxu0
        %v2421 = vadd.f32 0.0, %v2420
        %v2422 = vpop.f32.mrb[0].mxu0
        %v2423 = vadd.f32 0.0, %v2422
        %v2424 = vpop.f32.mrb[0].mxu0
        %v2425 = vadd.f32 0.0, %v2424
        %2426 = vmatprep.mubr.bf16.mxu0 %v1475
        %2427 = vmatmul.mubr.bf16.gmra.mrb[0].mxu0 %v1474
        %v2428 = vpop.f32.mrb[0].mxu0
        %v2429 = vadd.f32 0.0, %v2428
        %v2430 = vpop.f32.mrb[0].mxu0
        %v2431 = vadd.f32 0.0, %v2430
        %v2432 = vpop.f32.mrb[0].mxu0
        %v2433 = vadd.f32 0.0, %v2432
        %v2434 = vpop.f32.mrb[0].mxu0
        %v2435 = vadd.f32 0.0, %v2434
        %2436 = vmatprep.mubr.bf16.mxu0 %v1479
        %2437 = vmatmul.mubr.bf16.gmra.mrb[0].mxu0 %v1478
        %v2438 = vpop.f32.mrb[0].mxu0
        %v2439 = vadd.f32 0.0, %v2438
        %v2440 = vpop.f32.mrb[0].mxu0
        %v2441 = vadd.f32 0.0, %v2440
        %v2442 = vpop.f32.mrb[0].mxu0
        %v2443 = vadd.f32 0.0, %v2442
        %v2444 = vpop.f32.mrb[0].mxu0
        %v2445 = vadd.f32 0.0, %v2444
        %2446 = vmatprep.mubr.bf16.mxu0 %v1483
        %2447 = vmatmul.mubr.bf16.gmra.mrb[0].mxu0 %v1482
        %v2448 = vpop.f32.mrb[0].mxu0
        %v2449 = vadd.f32 0.0, %v2448
        %v2450 = vpop.f32.mrb[0].mxu0
        %v2451 = vadd.f32 0.0, %v2450
        %v2452 = vpop.f32.mrb[0].mxu0
        %v2453 = vadd.f32 0.0, %v2452
        %v2454 = vpop.f32.mrb[0].mxu0
        %v2455 = vadd.f32 0.0, %v2454
        %2456 = vmatprep.mubr.bf16.mxu0 %v1487
        %2457 = vmatmul.mubr.bf16.gmra.mrb[0].mxu0 %v1486
        %v2458 = vpop.f32.mrb[0].mxu0
        %v2459 = vadd.f32 0.0, %v2458
        %v2460 = vpop.f32.mrb[0].mxu0
        %v2461 = vadd.f32 0.0, %v2460
        %v2462 = vpop.f32.mrb[0].mxu0
        %v2463 = vadd.f32 0.0, %v2462
        %v2464 = vpop.f32.mrb[0].mxu0
        %v2465 = vadd.f32 0.0, %v2464
        %2466 = vmatprep.mubr.bf16.mxu0 %v1491
        %2467 = vmatmul.mubr.bf16.gmra.mrb[0].mxu0 %v1490
        %v2468 = vpop.f32.mrb[0].mxu0
        %v2469 = vadd.f32 0.0, %v2468
        %v2470 = vpop.f32.mrb[0].mxu0
        %v2471 = vadd.f32 0.0, %v2470
        %v2472 = vpop.f32.mrb[0].mxu0
        %v2473 = vadd.f32 0.0, %v2472
        %v2474 = vpop.f32.mrb[0].mxu0
        %v2475 = vadd.f32 0.0, %v2474
        %2476 = vmatprep.mubr.bf16.mxu0 %v1495
        %2477 = vmatmul.mubr.bf16.gmra.mrb[0].mxu0 %v1494
        %v2478 = vpop.f32.mrb[0].mxu0
        %v2479 = vadd.f32 0.0, %v2478
        %v2480 = vpop.f32.mrb[0].mxu0
        %v2481 = vadd.f32 0.0, %v2480
        %v2482 = vpop.f32.mrb[0].mxu0
        %v2483 = vadd.f32 0.0, %v2482
        %v2484 = vpop.f32.mrb[0].mxu0
        %v2485 = vadd.f32 0.0, %v2484
        %2486 = vmatprep.mubr.bf16.mxu0 %v1499
        %2487 = vmatmul.mubr.bf16.gmra.mrb[0].mxu0 %v1498
        %v2488 = vpop.f32.mrb[0].mxu0
        %v2489 = vadd.f32 0.0, %v2488
        %v2490 = vpop.f32.mrb[0].mxu0
        %v2491 = vadd.f32 0.0, %v2490
        %v2492 = vpop.f32.mrb[0].mxu0
        %v2493 = vadd.f32 0.0, %v2492
        %v2494 = vpop.f32.mrb[0].mxu0
        %v2495 = vadd.f32 0.0, %v2494
        %2496 = vmatprep.mubr.bf16.mxu0 %v1503
        %2497 = vmatmul.mubr.bf16.gmra.mrb[0].mxu0 %v1502
        %v2498 = vpop.f32.mrb[0].mxu0
        %v2499 = vadd.f32 0.0, %v2498
        %v2500 = vpop.f32.mrb[0].mxu0
        %v2501 = vadd.f32 0.0, %v2500
        %v2502 = vpop.f32.mrb[0].mxu0
        %v2503 = vadd.f32 0.0, %v2502
        %v2504 = vpop.f32.mrb[0].mxu0
        %v2505 = vadd.f32 0.0, %v2504
        %2506 = vmatprep.mubr.bf16.mxu0 %v1507
        %2507 = vmatmul.mubr.bf16.gmra.mrb[0].mxu0 %v1506
        %v2508 = vpop.f32.mrb[0].mxu0
        %v2509 = vadd.f32 0.0, %v2508
        %v2510 = vpop.f32.mrb[0].mxu0
        %v2511 = vadd.f32 0.0, %v2510
        %v2512 = vpop.f32.mrb[0].mxu0
        %v2513 = vadd.f32 0.0, %v2512
        %v2514 = vpop.f32.mrb[0].mxu0
        %v2515 = vadd.f32 0.0, %v2514
        %2516 = vmatprep.mubr.bf16.mxu0 %v1511
        %2517 = vmatmul.mubr.bf16.gmra.mrb[0].mxu0 %v1510
        %v2518 = vpop.f32.mrb[0].mxu0
        %v2519 = vadd.f32 0.0, %v2518
        %v2520 = vpop.f32.mrb[0].mxu0
        %v2521 = vadd.f32 0.0, %v2520
        %v2522 = vpop.f32.mrb[0].mxu0
        %v2523 = vadd.f32 0.0, %v2522
        %v2524 = vpop.f32.mrb[0].mxu0
        %v2525 = vadd.f32 0.0, %v2524
        %2526 = vmatprep.mubr.bf16.mxu0 %v1515
        %2527 = vmatmul.mubr.bf16.gmra.mrb[0].mxu0 %v1514
        %v2528 = vpop.f32.mrb[0].mxu0
        %v2529 = vadd.f32 0.0, %v2528
        %v2530 = vpop.f32.mrb[0].mxu0
        %v2531 = vadd.f32 0.0, %v2530
        %v2532 = vpop.f32.mrb[0].mxu0
        %v2533 = vadd.f32 0.0, %v2532
        %v2534 = vpop.f32.mrb[0].mxu0
        %v2535 = vadd.f32 0.0, %v2534
        %2536 = vmatprep.mubr.bf16.mxu0 %v1519
        %2537 = vmatmul.mubr.bf16.gmra.mrb[0].mxu0 %v1518
        %v2538 = vpop.f32.mrb[0].mxu0
        %v2539 = vadd.f32 0.0, %v2538
        %v2540 = vpop.f32.mrb[0].mxu0
        %v2541 = vadd.f32 0.0, %v2540
        %v2542 = vpop.f32.mrb[0].mxu0
        %v2543 = vadd.f32 0.0, %v2542
        %v2544 = vpop.f32.mrb[0].mxu0
        %v2545 = vadd.f32 0.0, %v2544
        %2546 = vmatprep.mubr.bf16.mxu0 %v1523
        %2547 = vmatmul.mubr.bf16.gmra.mrb[0].mxu0 %v1522
        %v2548 = vpop.f32.mrb[0].mxu0
        %v2549 = vadd.f32 0.0, %v2548
        %v2550 = vpop.f32.mrb[0].mxu0
        %v2551 = vadd.f32 0.0, %v2550
        %v2552 = vpop.f32.mrb[0].mxu0
        %v2553 = vadd.f32 0.0, %v2552
        %v2554 = vpop.f32.mrb[0].mxu0
        %v2555 = vadd.f32 0.0, %v2554
        %2556 = vmatprep.mubr.bf16.mxu0 %v1527
        %2557 = vmatmul.mubr.bf16.gmra.mrb[0].mxu0 %v1526
        %v2558 = vpop.f32.mrb[0].mxu0
        %v2559 = vadd.f32 0.0, %v2558
        %v2560 = vpop.f32.mrb[0].mxu0
        %v2561 = vadd.f32 0.0, %v2560
        %v2562 = vpop.f32.mrb[0].mxu0
        %v2563 = vadd.f32 0.0, %v2562
        %v2564 = vpop.f32.mrb[0].mxu0
        %v2565 = vadd.f32 0.0, %v2564
        %2566 = vmatprep.mubr.bf16.mxu0 %v1531
        %2567 = vmatmul.mubr.bf16.gmra.mrb[0].mxu0 %v1530
        %v2568 = vpop.f32.mrb[0].mxu0
        %v2569 = vadd.f32 0.0, %v2568
        %v2570 = vpop.f32.mrb[0].mxu0
        %v2571 = vadd.f32 0.0, %v2570
        %v2572 = vpop.f32.mrb[0].mxu0
        %v2573 = vadd.f32 0.0, %v2572
        %v2574 = vpop.f32.mrb[0].mxu0
        %v2575 = vadd.f32 0.0, %v2574
        %2576 = vmatprep.mubr.bf16.mxu0 %v1535
        %2577 = vmatmul.mubr.bf16.gmra.mrb[0].mxu0 %v1534
        %v2578 = vpop.f32.mrb[0].mxu0
        %v2579 = vadd.f32 0.0, %v2578
        %v2580 = vpop.f32.mrb[0].mxu0
        %v2581 = vadd.f32 0.0, %v2580
        %v2582 = vpop.f32.mrb[0].mxu0
        %v2583 = vadd.f32 0.0, %v2582
        %v2584 = vpop.f32.mrb[0].mxu0
        %v2585 = vadd.f32 0.0, %v2584
        %2586 = vmatprep.mubr.bf16.mxu0 %v1539
        %2587 = vmatmul.mubr.bf16.gmra.mrb[0].mxu0 %v1538
        %v2588 = vpop.f32.mrb[0].mxu0
        %v2589 = vadd.f32 0.0, %v2588
        %v2590 = vpop.f32.mrb[0].mxu0
        %v2591 = vadd.f32 0.0, %v2590
        %v2592 = vpop.f32.mrb[0].mxu0
        %v2593 = vadd.f32 0.0, %v2592
        %v2594 = vpop.f32.mrb[0].mxu0
        %v2595 = vadd.f32 0.0, %v2594
        %2596 = vmatprep.mubr.bf16.mxu0 %v1543
        %2597 = vmatmul.mubr.bf16.gmra.mrb[0].mxu0 %v1542
        %v2598 = vpop.f32.mrb[0].mxu0
        %v2599 = vadd.f32 0.0, %v2598
        %v2600 = vpop.f32.mrb[0].mxu0
        %v2601 = vadd.f32 0.0, %v2600
        %v2602 = vpop.f32.mrb[0].mxu0
        %v2603 = vadd.f32 0.0, %v2602
        %v2604 = vpop.f32.mrb[0].mxu0
        %v2605 = vadd.f32 0.0, %v2604
        %2606 = vmatprep.mubr.bf16.mxu0 %v1547
        %2607 = vmatmul.mubr.bf16.gmra.mrb[0].mxu0 %v1546
        %v2608 = vpop.f32.mrb[0].mxu0
        %v2609 = vadd.f32 0.0, %v2608
        %v2610 = vpop.f32.mrb[0].mxu0
        %v2611 = vadd.f32 0.0, %v2610
        %v2612 = vpop.f32.mrb[0].mxu0
        %v2613 = vadd.f32 0.0, %v2612
        %v2614 = vpop.f32.mrb[0].mxu0
        %v2615 = vadd.f32 0.0, %v2614
        %2616 = vmatprep.mubr.bf16.mxu0 %v1551
        %2617 = vmatmul.mubr.bf16.gmra.mrb[0].mxu0 %v1550
        %v2618 = vpop.f32.mrb[0].mxu0
        %v2619 = vadd.f32 0.0, %v2618
        %v2620 = vpop.f32.mrb[0].mxu0
        %v2621 = vadd.f32 0.0, %v2620
        %v2622 = vpop.f32.mrb[0].mxu0
        %v2623 = vadd.f32 0.0, %v2622
        %v2624 = vpop.f32.mrb[0].mxu0
        %v2625 = vadd.f32 0.0, %v2624
        %2626 = vmatprep.mubr.bf16.mxu0 %v1555
        %2627 = vmatmul.mubr.bf16.gmra.mrb[0].mxu0 %v1554
        %v2628 = vpop.f32.mrb[0].mxu0
        %v2629 = vadd.f32 0.0, %v2628
        %v2630 = vpop.f32.mrb[0].mxu0
        %v2631 = vadd.f32 0.0, %v2630
        %v2632 = vpop.f32.mrb[0].mxu0
        %v2633 = vadd.f32 0.0, %v2632
        %v2634 = vpop.f32.mrb[0].mxu0
        %v2635 = vadd.f32 0.0, %v2634
        %2636 = vmatprep.mubr.bf16.mxu0 %v1559
        %2637 = vmatmul.mubr.bf16.gmra.mrb[0].mxu0 %v1558
        %v2638 = vpop.f32.mrb[0].mxu0
        %v2639 = vadd.f32 0.0, %v2638
        %v2640 = vpop.f32.mrb[0].mxu0
        %v2641 = vadd.f32 0.0, %v2640
        %v2642 = vpop.f32.mrb[0].mxu0
        %v2643 = vadd.f32 0.0, %v2642
        %v2644 = vpop.f32.mrb[0].mxu0
        %v2645 = vadd.f32 0.0, %v2644
        %2646 = vmatprep.mubr.bf16.mxu0 %v1563
        %2647 = vmatmul.mubr.bf16.gmra.mrb[0].mxu0 %v1562
        %v2648 = vpop.f32.mrb[0].mxu0
        %v2649 = vadd.f32 0.0, %v2648
        %v2650 = vpop.f32.mrb[0].mxu0
        %v2651 = vadd.f32 0.0, %v2650
        %v2652 = vpop.f32.mrb[0].mxu0
        %v2653 = vadd.f32 0.0, %v2652
        %v2654 = vpop.f32.mrb[0].mxu0
        %v2655 = vadd.f32 0.0, %v2654
        %2656 = vmatprep.mubr.bf16.mxu0 %v1567
        %2657 = vmatmul.mubr.bf16.gmra.mrb[0].mxu0 %v1566
        %v2658 = vpop.f32.mrb[0].mxu0
        %v2659 = vadd.f32 0.0, %v2658
        %v2660 = vpop.f32.mrb[0].mxu0
        %v2661 = vadd.f32 0.0, %v2660
        %v2662 = vpop.f32.mrb[0].mxu0
        %v2663 = vadd.f32 0.0, %v2662
        %v2664 = vpop.f32.mrb[0].mxu0
        %v2665 = vadd.f32 0.0, %v2664
        %2666 = vmatprep.mubr.bf16.mxu0 %v1571
        %2667 = vmatmul.mubr.bf16.gmra.mrb[0].mxu0 %v1570
        %v2668 = vpop.f32.mrb[0].mxu0
        %v2669 = vadd.f32 0.0, %v2668
        %v2670 = vpop.f32.mrb[0].mxu0
        %v2671 = vadd.f32 0.0, %v2670
        %v2672 = vpop.f32.mrb[0].mxu0
        %v2673 = vadd.f32 0.0, %v2672
        %v2674 = vpop.f32.mrb[0].mxu0
        %v2675 = vadd.f32 0.0, %v2674
        %2676 = vmatprep.mubr.bf16.mxu0 %v1575
        %2677 = vmatmul.mubr.bf16.gmra.mrb[0].mxu0 %v1574
        %v2678 = vpop.f32.mrb[0].mxu0
        %v2679 = vadd.f32 0.0, %v2678
        %v2680 = vpop.f32.mrb[0].mxu0
        %v2681 = vadd.f32 0.0, %v2680
        %v2682 = vpop.f32.mrb[0].mxu0
        %v2683 = vadd.f32 0.0, %v2682
        %v2684 = vpop.f32.mrb[0].mxu0
        %v2685 = vadd.f32 0.0, %v2684
        %2686 = vmatprep.mubr.bf16.mxu0 %v1579
        %2687 = vmatmul.mubr.bf16.gmra.mrb[0].mxu0 %v1578
        %v2688 = vpop.f32.mrb[0].mxu0
        %v2689 = vadd.f32 0.0, %v2688
        %v2690 = vpop.f32.mrb[0].mxu0
        %v2691 = vadd.f32 0.0, %v2690
        %v2692 = vpop.f32.mrb[0].mxu0
        %v2693 = vadd.f32 0.0, %v2692
        %v2694 = vpop.f32.mrb[0].mxu0
        %v2695 = vadd.f32 0.0, %v2694
        %2696 = vmatprep.mubr.bf16.mxu0 %v1583
        %2697 = vmatmul.mubr.bf16.gmra.mrb[0].mxu0 %v1582
        %v2698 = vpop.f32.mrb[0].mxu0
        %v2699 = vadd.f32 0.0, %v2698
        %v2700 = vpop.f32.mrb[0].mxu0
        %v2701 = vadd.f32 0.0, %v2700
        %v2702 = vpop.f32.mrb[0].mxu0
        %v2703 = vadd.f32 0.0, %v2702
        %v2704 = vpop.f32.mrb[0].mxu0
        %v2705 = vadd.f32 0.0, %v2704
        %2706 = vdwg.mxu0
        %2707 = vmatprep.subr.bf16.mxu0 %v2163
        %2708 = vmatpush1.bf16.msra.mxu0 %v2162
        %2709 = vmatprep.subr.bf16.mxu0 %v2167
        %2710 = vmatpush1.bf16.msra.mxu0 %v2166
        %2711 = vmatprep.subr.bf16.mxu0 %v2171
        %2712 = vmatpush1.bf16.msra.mxu0 %v2170
        %2713 = vmatprep.subr.bf16.mxu0 %v2175
        %2714 = vmatpush1.bf16.msra.mxu0 %v2174
        %2715 = vmatprep.subr.bf16.mxu0 %v2179
        %2716 = vmatpush1.bf16.msra.mxu0 %v2178
        %2717 = vmatprep.subr.bf16.mxu0 %v2183
        %2718 = vmatpush1.bf16.msra.mxu0 %v2182
        %2719 = vmatprep.subr.bf16.mxu0 %v2187
        %2720 = vmatpush1.bf16.msra.mxu0 %v2186
        %2721 = vmatprep.subr.bf16.mxu0 %v2191
        %2722 = vmatpush1.bf16.msra.mxu0 %v2190
        %2723 = vmatprep.subr.bf16.mxu0 %v2195
        %2724 = vmatpush1.bf16.msra.mxu0 %v2194
        %2725 = vmatprep.subr.bf16.mxu0 %v2199
        %2726 = vmatpush1.bf16.msra.mxu0 %v2198
        %2727 = vmatprep.subr.bf16.mxu0 %v2203
        %2728 = vmatpush1.bf16.msra.mxu0 %v2202
        %2729 = vmatprep.subr.bf16.mxu0 %v2207
        %2730 = vmatpush1.bf16.msra.mxu0 %v2206
        %2731 = vmatprep.subr.bf16.mxu0 %v2211
        %2732 = vmatpush1.bf16.msra.mxu0 %v2210
        %2733 = vmatprep.subr.bf16.mxu0 %v2215
        %2734 = vmatpush1.bf16.msra.mxu0 %v2214
        %2735 = vmatprep.subr.bf16.mxu0 %v2219
        %2736 = vmatpush1.bf16.msra.mxu0 %v2218
        %2737 = vmatprep.subr.bf16.mxu0 %v2223
        %2738 = vmatpush1.bf16.msra.mxu0 %v2222
        %2739 = vmatprep.mubr.bf16.mxu0 %v1461
        %2740 = vmatmul.mubr.bf16.gmra.mrb[0].mxu0 %v1460
        %v2741 = vpop.f32.mrb[0].mxu0
        %v2742 = vadd.f32 %v2389, %v2741
        %v2743 = vpop.f32.mrb[0].mxu0
        %v2744 = vadd.f32 %v2391, %v2743
        %v2745 = vpop.f32.mrb[0].mxu0
        %v2746 = vadd.f32 %v2393, %v2745
        %v2747 = vpop.f32.mrb[0].mxu0
        %v2748 = vadd.f32 %v2395, %v2747
        %2749 = vmatprep.mubr.bf16.mxu0 %v1465
        %2750 = vmatmul.mubr.bf16.gmra.mrb[0].mxu0 %v1464
        %v2751 = vpop.f32.mrb[0].mxu0
        %v2752 = vadd.f32 %v2399, %v2751
        %v2753 = vpop.f32.mrb[0].mxu0
        %v2754 = vadd.f32 %v2401, %v2753
        %v2755 = vpop.f32.mrb[0].mxu0
        %v2756 = vadd.f32 %v2403, %v2755
        %v2757 = vpop.f32.mrb[0].mxu0
        %v2758 = vadd.f32 %v2405, %v2757
        %2759 = vmatprep.mubr.bf16.mxu0 %v1469
        %2760 = vmatmul.mubr.bf16.gmra.mrb[0].mxu0 %v1468
        %v2761 = vpop.f32.mrb[0].mxu0
        %v2762 = vadd.f32 %v2409, %v2761
        %v2763 = vpop.f32.mrb[0].mxu0
        %v2764 = vadd.f32 %v2411, %v2763
        %v2765 = vpop.f32.mrb[0].mxu0
        %v2766 = vadd.f32 %v2413, %v2765
        %v2767 = vpop.f32.mrb[0].mxu0
        %v2768 = vadd.f32 %v2415, %v2767
        %2769 = vmatprep.mubr.bf16.mxu0 %v1473
        %2770 = vmatmul.mubr.bf16.gmra.mrb[0].mxu0 %v1472
        %v2771 = vpop.f32.mrb[0].mxu0
        %v2772 = vadd.f32 %v2419, %v2771
        %v2773 = vpop.f32.mrb[0].mxu0
        %v2774 = vadd.f32 %v2421, %v2773
        %v2775 = vpop.f32.mrb[0].mxu0
        %v2776 = vadd.f32 %v2423, %v2775
        %v2777 = vpop.f32.mrb[0].mxu0
        %v2778 = vadd.f32 %v2425, %v2777
        %2779 = vmatprep.mubr.bf16.mxu0 %v1477
        %2780 = vmatmul.mubr.bf16.gmra.mrb[0].mxu0 %v1476
        %v2781 = vpop.f32.mrb[0].mxu0
        %v2782 = vadd.f32 %v2429, %v2781
        %v2783 = vpop.f32.mrb[0].mxu0
        %v2784 = vadd.f32 %v2431, %v2783
        %v2785 = vpop.f32.mrb[0].mxu0
        %v2786 = vadd.f32 %v2433, %v2785
        %v2787 = vpop.f32.mrb[0].mxu0
        %v2788 = vadd.f32 %v2435, %v2787
        %2789 = vmatprep.mubr.bf16.mxu0 %v1481
        %2790 = vmatmul.mubr.bf16.gmra.mrb[0].mxu0 %v1480
        %v2791 = vpop.f32.mrb[0].mxu0
        %v2792 = vadd.f32 %v2439, %v2791
        %v2793 = vpop.f32.mrb[0].mxu0
        %v2794 = vadd.f32 %v2441, %v2793
        %v2795 = vpop.f32.mrb[0].mxu0
        %v2796 = vadd.f32 %v2443, %v2795
        %v2797 = vpop.f32.mrb[0].mxu0
        %v2798 = vadd.f32 %v2445, %v2797
        %2799 = vmatprep.mubr.bf16.mxu0 %v1485
        %2800 = vmatmul.mubr.bf16.gmra.mrb[0].mxu0 %v1484
        %v2801 = vpop.f32.mrb[0].mxu0
        %v2802 = vadd.f32 %v2449, %v2801
        %v2803 = vpop.f32.mrb[0].mxu0
        %v2804 = vadd.f32 %v2451, %v2803
        %v2805 = vpop.f32.mrb[0].mxu0
        %v2806 = vadd.f32 %v2453, %v2805
        %v2807 = vpop.f32.mrb[0].mxu0
        %v2808 = vadd.f32 %v2455, %v2807
        %2809 = vmatprep.mubr.bf16.mxu0 %v1489
        %2810 = vmatmul.mubr.bf16.gmra.mrb[0].mxu0 %v1488
        %v2811 = vpop.f32.mrb[0].mxu0
        %v2812 = vadd.f32 %v2459, %v2811
        %v2813 = vpop.f32.mrb[0].mxu0
        %v2814 = vadd.f32 %v2461, %v2813
        %v2815 = vpop.f32.mrb[0].mxu0
        %v2816 = vadd.f32 %v2463, %v2815
        %v2817 = vpop.f32.mrb[0].mxu0
        %v2818 = vadd.f32 %v2465, %v2817
        %2819 = vmatprep.mubr.bf16.mxu0 %v1493
        %2820 = vmatmul.mubr.bf16.gmra.mrb[0].mxu0 %v1492
        %v2821 = vpop.f32.mrb[0].mxu0
        %v2822 = vadd.f32 %v2469, %v2821
        %v2823 = vpop.f32.mrb[0].mxu0
        %v2824 = vadd.f32 %v2471, %v2823
        %v2825 = vpop.f32.mrb[0].mxu0
        %v2826 = vadd.f32 %v2473, %v2825
        %v2827 = vpop.f32.mrb[0].mxu0
        %v2828 = vadd.f32 %v2475, %v2827
        %2829 = vmatprep.mubr.bf16.mxu0 %v1497
        %2830 = vmatmul.mubr.bf16.gmra.mrb[0].mxu0 %v1496
        %v2831 = vpop.f32.mrb[0].mxu0
        %v2832 = vadd.f32 %v2479, %v2831
        %v2833 = vpop.f32.mrb[0].mxu0
        %v2834 = vadd.f32 %v2481, %v2833
        %v2835 = vpop.f32.mrb[0].mxu0
        %v2836 = vadd.f32 %v2483, %v2835
        %v2837 = vpop.f32.mrb[0].mxu0
        %v2838 = vadd.f32 %v2485, %v2837
        %2839 = vmatprep.mubr.bf16.mxu0 %v1501
        %2840 = vmatmul.mubr.bf16.gmra.mrb[0].mxu0 %v1500
        %v2841 = vpop.f32.mrb[0].mxu0
        %v2842 = vadd.f32 %v2489, %v2841
        %v2843 = vpop.f32.mrb[0].mxu0
        %v2844 = vadd.f32 %v2491, %v2843
        %v2845 = vpop.f32.mrb[0].mxu0
        %v2846 = vadd.f32 %v2493, %v2845
        %v2847 = vpop.f32.mrb[0].mxu0
        %v2848 = vadd.f32 %v2495, %v2847
        %2849 = vmatprep.mubr.bf16.mxu0 %v1505
        %2850 = vmatmul.mubr.bf16.gmra.mrb[0].mxu0 %v1504
        %v2851 = vpop.f32.mrb[0].mxu0
        %v2852 = vadd.f32 %v2499, %v2851
        %v2853 = vpop.f32.mrb[0].mxu0
        %v2854 = vadd.f32 %v2501, %v2853
        %v2855 = vpop.f32.mrb[0].mxu0
        %v2856 = vadd.f32 %v2503, %v2855
        %v2857 = vpop.f32.mrb[0].mxu0
        %v2858 = vadd.f32 %v2505, %v2857
        %2859 = vmatprep.mubr.bf16.mxu0 %v1509
        %2860 = vmatmul.mubr.bf16.gmra.mrb[0].mxu0 %v1508
        %v2861 = vpop.f32.mrb[0].mxu0
        %v2862 = vadd.f32 %v2509, %v2861
        %v2863 = vpop.f32.mrb[0].mxu0
        %v2864 = vadd.f32 %v2511, %v2863
        %v2865 = vpop.f32.mrb[0].mxu0
        %v2866 = vadd.f32 %v2513, %v2865
        %v2867 = vpop.f32.mrb[0].mxu0
        %v2868 = vadd.f32 %v2515, %v2867
        %2869 = vmatprep.mubr.bf16.mxu0 %v1513
        %2870 = vmatmul.mubr.bf16.gmra.mrb[0].mxu0 %v1512
        %v2871 = vpop.f32.mrb[0].mxu0
        %v2872 = vadd.f32 %v2519, %v2871
        %v2873 = vpop.f32.mrb[0].mxu0
        %v2874 = vadd.f32 %v2521, %v2873
        %v2875 = vpop.f32.mrb[0].mxu0
        %v2876 = vadd.f32 %v2523, %v2875
        %v2877 = vpop.f32.mrb[0].mxu0
        %v2878 = vadd.f32 %v2525, %v2877
        %2879 = vmatprep.mubr.bf16.mxu0 %v1517
        %2880 = vmatmul.mubr.bf16.gmra.mrb[0].mxu0 %v1516
        %v2881 = vpop.f32.mrb[0].mxu0
        %v2882 = vadd.f32 %v2529, %v2881
        %v2883 = vpop.f32.mrb[0].mxu0
        %v2884 = vadd.f32 %v2531, %v2883
        %v2885 = vpop.f32.mrb[0].mxu0
        %v2886 = vadd.f32 %v2533, %v2885
        %v2887 = vpop.f32.mrb[0].mxu0
        %v2888 = vadd.f32 %v2535, %v2887
        %2889 = vmatprep.mubr.bf16.mxu0 %v1521
        %2890 = vmatmul.mubr.bf16.gmra.mrb[0].mxu0 %v1520
        %v2891 = vpop.f32.mrb[0].mxu0
        %v2892 = vadd.f32 %v2539, %v2891
        %v2893 = vpop.f32.mrb[0].mxu0
        %v2894 = vadd.f32 %v2541, %v2893
        %v2895 = vpop.f32.mrb[0].mxu0
        %v2896 = vadd.f32 %v2543, %v2895
        %v2897 = vpop.f32.mrb[0].mxu0
        %v2898 = vadd.f32 %v2545, %v2897
        %2899 = vmatprep.mubr.bf16.mxu0 %v1525
        %2900 = vmatmul.mubr.bf16.gmra.mrb[0].mxu0 %v1524
        %v2901 = vpop.f32.mrb[0].mxu0
        %v2902 = vadd.f32 %v2549, %v2901
        %v2903 = vpop.f32.mrb[0].mxu0
        %v2904 = vadd.f32 %v2551, %v2903
        %v2905 = vpop.f32.mrb[0].mxu0
        %v2906 = vadd.f32 %v2553, %v2905
        %v2907 = vpop.f32.mrb[0].mxu0
        %v2908 = vadd.f32 %v2555, %v2907
        %2909 = vmatprep.mubr.bf16.mxu0 %v1529
        %2910 = vmatmul.mubr.bf16.gmra.mrb[0].mxu0 %v1528
        %v2911 = vpop.f32.mrb[0].mxu0
        %v2912 = vadd.f32 %v2559, %v2911
        %v2913 = vpop.f32.mrb[0].mxu0
        %v2914 = vadd.f32 %v2561, %v2913
        %v2915 = vpop.f32.mrb[0].mxu0
        %v2916 = vadd.f32 %v2563, %v2915
        %v2917 = vpop.f32.mrb[0].mxu0
        %v2918 = vadd.f32 %v2565, %v2917
        %2919 = vmatprep.mubr.bf16.mxu0 %v1533
        %2920 = vmatmul.mubr.bf16.gmra.mrb[0].mxu0 %v1532
        %v2921 = vpop.f32.mrb[0].mxu0
        %v2922 = vadd.f32 %v2569, %v2921
        %v2923 = vpop.f32.mrb[0].mxu0
        %v2924 = vadd.f32 %v2571, %v2923
        %v2925 = vpop.f32.mrb[0].mxu0
        %v2926 = vadd.f32 %v2573, %v2925
        %v2927 = vpop.f32.mrb[0].mxu0
        %v2928 = vadd.f32 %v2575, %v2927
        %2929 = vmatprep.mubr.bf16.mxu0 %v1537
        %2930 = vmatmul.mubr.bf16.gmra.mrb[0].mxu0 %v1536
        %v2931 = vpop.f32.mrb[0].mxu0
        %v2932 = vadd.f32 %v2579, %v2931
        %v2933 = vpop.f32.mrb[0].mxu0
        %v2934 = vadd.f32 %v2581, %v2933
        %v2935 = vpop.f32.mrb[0].mxu0
        %v2936 = vadd.f32 %v2583, %v2935
        %v2937 = vpop.f32.mrb[0].mxu0
        %v2938 = vadd.f32 %v2585, %v2937
        %2939 = vmatprep.mubr.bf16.mxu0 %v1541
        %2940 = vmatmul.mubr.bf16.gmra.mrb[0].mxu0 %v1540
        %v2941 = vpop.f32.mrb[0].mxu0
        %v2942 = vadd.f32 %v2589, %v2941
        %v2943 = vpop.f32.mrb[0].mxu0
        %v2944 = vadd.f32 %v2591, %v2943
        %v2945 = vpop.f32.mrb[0].mxu0
        %v2946 = vadd.f32 %v2593, %v2945
        %v2947 = vpop.f32.mrb[0].mxu0
        %v2948 = vadd.f32 %v2595, %v2947
        %2949 = vmatprep.mubr.bf16.mxu0 %v1545
        %2950 = vmatmul.mubr.bf16.gmra.mrb[0].mxu0 %v1544
        %v2951 = vpop.f32.mrb[0].mxu0
        %v2952 = vadd.f32 %v2599, %v2951
        %v2953 = vpop.f32.mrb[0].mxu0
        %v2954 = vadd.f32 %v2601, %v2953
        %v2955 = vpop.f32.mrb[0].mxu0
        %v2956 = vadd.f32 %v2603, %v2955
        %v2957 = vpop.f32.mrb[0].mxu0
        %v2958 = vadd.f32 %v2605, %v2957
        %2959 = vmatprep.mubr.bf16.mxu0 %v1549
        %2960 = vmatmul.mubr.bf16.gmra.mrb[0].mxu0 %v1548
        %v2961 = vpop.f32.mrb[0].mxu0
        %v2962 = vadd.f32 %v2609, %v2961
        %v2963 = vpop.f32.mrb[0].mxu0
        %v2964 = vadd.f32 %v2611, %v2963
        %v2965 = vpop.f32.mrb[0].mxu0
        %v2966 = vadd.f32 %v2613, %v2965
        %v2967 = vpop.f32.mrb[0].mxu0
        %v2968 = vadd.f32 %v2615, %v2967
        %2969 = vmatprep.mubr.bf16.mxu0 %v1553
        %2970 = vmatmul.mubr.bf16.gmra.mrb[0].mxu0 %v1552
        %v2971 = vpop.f32.mrb[0].mxu0
        %v2972 = vadd.f32 %v2619, %v2971
        %v2973 = vpop.f32.mrb[0].mxu0
        %v2974 = vadd.f32 %v2621, %v2973
        %v2975 = vpop.f32.mrb[0].mxu0
        %v2976 = vadd.f32 %v2623, %v2975
        %v2977 = vpop.f32.mrb[0].mxu0
        %v2978 = vadd.f32 %v2625, %v2977
        %2979 = vmatprep.mubr.bf16.mxu0 %v1557
        %2980 = vmatmul.mubr.bf16.gmra.mrb[0].mxu0 %v1556
        %v2981 = vpop.f32.mrb[0].mxu0
        %v2982 = vadd.f32 %v2629, %v2981
        %v2983 = vpop.f32.mrb[0].mxu0
        %v2984 = vadd.f32 %v2631, %v2983
        %v2985 = vpop.f32.mrb[0].mxu0
        %v2986 = vadd.f32 %v2633, %v2985
        %v2987 = vpop.f32.mrb[0].mxu0
        %v2988 = vadd.f32 %v2635, %v2987
        %2989 = vmatprep.mubr.bf16.mxu0 %v1561
        %2990 = vmatmul.mubr.bf16.gmra.mrb[0].mxu0 %v1560
        %v2991 = vpop.f32.mrb[0].mxu0
        %v2992 = vadd.f32 %v2639, %v2991
        %v2993 = vpop.f32.mrb[0].mxu0
        %v2994 = vadd.f32 %v2641, %v2993
        %v2995 = vpop.f32.mrb[0].mxu0
        %v2996 = vadd.f32 %v2643, %v2995
        %v2997 = vpop.f32.mrb[0].mxu0
        %v2998 = vadd.f32 %v2645, %v2997
        %2999 = vmatprep.mubr.bf16.mxu0 %v1565
        %3000 = vmatmul.mubr.bf16.gmra.mrb[0].mxu0 %v1564
        %v3001 = vpop.f32.mrb[0].mxu0
        %v3002 = vadd.f32 %v2649, %v3001
        %v3003 = vpop.f32.mrb[0].mxu0
        %v3004 = vadd.f32 %v2651, %v3003
        %v3005 = vpop.f32.mrb[0].mxu0
        %v3006 = vadd.f32 %v2653, %v3005
        %v3007 = vpop.f32.mrb[0].mxu0
        %v3008 = vadd.f32 %v2655, %v3007
        %3009 = vmatprep.mubr.bf16.mxu0 %v1569
        %3010 = vmatmul.mubr.bf16.gmra.mrb[0].mxu0 %v1568
        %v3011 = vpop.f32.mrb[0].mxu0
        %v3012 = vadd.f32 %v2659, %v3011
        %v3013 = vpop.f32.mrb[0].mxu0
        %v3014 = vadd.f32 %v2661, %v3013
        %v3015 = vpop.f32.mrb[0].mxu0
        %v3016 = vadd.f32 %v2663, %v3015
        %v3017 = vpop.f32.mrb[0].mxu0
        %v3018 = vadd.f32 %v2665, %v3017
        %3019 = vmatprep.mubr.bf16.mxu0 %v1573
        %3020 = vmatmul.mubr.bf16.gmra.mrb[0].mxu0 %v1572
        %v3021 = vpop.f32.mrb[0].mxu0
        %v3022 = vadd.f32 %v2669, %v3021
        %v3023 = vpop.f32.mrb[0].mxu0
        %v3024 = vadd.f32 %v2671, %v3023
        %v3025 = vpop.f32.mrb[0].mxu0
        %v3026 = vadd.f32 %v2673, %v3025
        %v3027 = vpop.f32.mrb[0].mxu0
        %v3028 = vadd.f32 %v2675, %v3027
        %3029 = vmatprep.mubr.bf16.mxu0 %v1577
        %3030 = vmatmul.mubr.bf16.gmra.mrb[0].mxu0 %v1576
        %v3031 = vpop.f32.mrb[0].mxu0
        %v3032 = vadd.f32 %v2679, %v3031
        %v3033 = vpop.f32.mrb[0].mxu0
        %v3034 = vadd.f32 %v2681, %v3033
        %v3035 = vpop.f32.mrb[0].mxu0
        %v3036 = vadd.f32 %v2683, %v3035
        %v3037 = vpop.f32.mrb[0].mxu0
        %v3038 = vadd.f32 %v2685, %v3037
        %3039 = vmatprep.mubr.bf16.mxu0 %v1581
        %3040 = vmatmul.mubr.bf16.gmra.mrb[0].mxu0 %v1580
        %v3041 = vpop.f32.mrb[0].mxu0
        %v3042 = vadd.f32 %v2689, %v3041
        %v3043 = vpop.f32.mrb[0].mxu0
        %v3044 = vadd.f32 %v2691, %v3043
        %v3045 = vpop.f32.mrb[0].mxu0
        %v3046 = vadd.f32 %v2693, %v3045
        %v3047 = vpop.f32.mrb[0].mxu0
        %v3048 = vadd.f32 %v2695, %v3047
        %3049 = vmatprep.mubr.bf16.mxu0 %v1585
        %3050 = vmatmul.mubr.bf16.gmra.mrb[0].mxu0 %v1584
        %v3051 = vpop.f32.mrb[0].mxu0
        %v3052 = vadd.f32 %v2699, %v3051
        %v3053 = vpop.f32.mrb[0].mxu0
        %v3054 = vadd.f32 %v2701, %v3053
        %v3055 = vpop.f32.mrb[0].mxu0
        %v3056 = vadd.f32 %v2703, %v3055
        %v3057 = vpop.f32.mrb[0].mxu0
        %v3058 = vadd.f32 %v2705, %v3057
        %3059 = vdwg.mxu0
        %3060 = vmatprep.subr.bf16.mxu0 %v2101
        %3061 = vmatpush1.bf16.msra.mxu0 %v2100
        %3062 = vmatprep.subr.bf16.mxu0 %v2105
        %3063 = vmatpush1.bf16.msra.mxu0 %v2104
        %3064 = vmatprep.subr.bf16.mxu0 %v2109
        %3065 = vmatpush1.bf16.msra.mxu0 %v2108
        %3066 = vmatprep.subr.bf16.mxu0 %v2113
        %3067 = vmatpush1.bf16.msra.mxu0 %v2112
        %3068 = vmatprep.subr.bf16.mxu0 %v2117
        %3069 = vmatpush1.bf16.msra.mxu0 %v2116
        %3070 = vmatprep.subr.bf16.mxu0 %v2121
        %3071 = vmatpush1.bf16.msra.mxu0 %v2120
        %3072 = vmatprep.subr.bf16.mxu0 %v2125
        %3073 = vmatpush1.bf16.msra.mxu0 %v2124
        %3074 = vmatprep.subr.bf16.mxu0 %v2129
        %3075 = vmatpush1.bf16.msra.mxu0 %v2128
        %3076 = vmatprep.subr.bf16.mxu0 %v2133
        %3077 = vmatpush1.bf16.msra.mxu0 %v2132
        %3078 = vmatprep.subr.bf16.mxu0 %v2137
        %3079 = vmatpush1.bf16.msra.mxu0 %v2136
        %3080 = vmatprep.subr.bf16.mxu0 %v2141
        %3081 = vmatpush1.bf16.msra.mxu0 %v2140
        %3082 = vmatprep.subr.bf16.mxu0 %v2145
        %3083 = vmatpush1.bf16.msra.mxu0 %v2144
        %3084 = vmatprep.subr.bf16.mxu0 %v2149
        %3085 = vmatpush1.bf16.msra.mxu0 %v2148
        %3086 = vmatprep.subr.bf16.mxu0 %v2153
        %3087 = vmatpush1.bf16.msra.mxu0 %v2152
        %3088 = vmatprep.subr.bf16.mxu0 %v2157
        %3089 = vmatpush1.bf16.msra.mxu0 %v2156
        %3090 = vmatprep.subr.bf16.mxu0 %v2161
        %3091 = vmatpush1.bf16.msra.mxu0 %v2160
        %3092 = vmatprep.mubr.bf16.mxu0 %v1459
        %3093 = vmatmul.mubr.bf16.gmra.mrb[0].mxu0 %v1458
        %v3094 = vpop.f32.mrb[0].mxu0
        %v3095 = vadd.f32 0.0, %v3094
        %v3096 = vpop.f32.mrb[0].mxu0
        %v3097 = vadd.f32 0.0, %v3096
        %v3098 = vpop.f32.mrb[0].mxu0
        %v3099 = vadd.f32 0.0, %v3098
        %v3100 = vpop.f32.mrb[0].mxu0
        %v3101 = vadd.f32 0.0, %v3100
        %3102 = vmatprep.mubr.bf16.mxu0 %v1463
        %3103 = vmatmul.mubr.bf16.gmra.mrb[0].mxu0 %v1462
        %v3104 = vpop.f32.mrb[0].mxu0
        %v3105 = vadd.f32 0.0, %v3104
        %v3106 = vpop.f32.mrb[0].mxu0
        %v3107 = vadd.f32 0.0, %v3106
        %v3108 = vpop.f32.mrb[0].mxu0
        %v3109 = vadd.f32 0.0, %v3108
        %v3110 = vpop.f32.mrb[0].mxu0
        %v3111 = vadd.f32 0.0, %v3110
        %3112 = vmatprep.mubr.bf16.mxu0 %v1467
        %3113 = vmatmul.mubr.bf16.gmra.mrb[0].mxu0 %v1466
        %v3114 = vpop.f32.mrb[0].mxu0
        %v3115 = vadd.f32 0.0, %v3114
        %v3116 = vpop.f32.mrb[0].mxu0
        %v3117 = vadd.f32 0.0, %v3116
        %v3118 = vpop.f32.mrb[0].mxu0
        %v3119 = vadd.f32 0.0, %v3118
        %v3120 = vpop.f32.mrb[0].mxu0
        %v3121 = vadd.f32 0.0, %v3120
        %3122 = vmatprep.mubr.bf16.mxu0 %v1471
        %3123 = vmatmul.mubr.bf16.gmra.mrb[0].mxu0 %v1470
        %v3124 = vpop.f32.mrb[0].mxu0
        %v3125 = vadd.f32 0.0, %v3124
        %v3126 = vpop.f32.mrb[0].mxu0
        %v3127 = vadd.f32 0.0, %v3126
        %v3128 = vpop.f32.mrb[0].mxu0
        %v3129 = vadd.f32 0.0, %v3128
        %v3130 = vpop.f32.mrb[0].mxu0
        %v3131 = vadd.f32 0.0, %v3130
        %3132 = vmatprep.mubr.bf16.mxu0 %v1475
        %3133 = vmatmul.mubr.bf16.gmra.mrb[0].mxu0 %v1474
        %v3134 = vpop.f32.mrb[0].mxu0
        %v3135 = vadd.f32 0.0, %v3134
        %v3136 = vpop.f32.mrb[0].mxu0
        %v3137 = vadd.f32 0.0, %v3136
        %v3138 = vpop.f32.mrb[0].mxu0
        %v3139 = vadd.f32 0.0, %v3138
        %v3140 = vpop.f32.mrb[0].mxu0
        %v3141 = vadd.f32 0.0, %v3140
        %3142 = vmatprep.mubr.bf16.mxu0 %v1479
        %3143 = vmatmul.mubr.bf16.gmra.mrb[0].mxu0 %v1478
        %v3144 = vpop.f32.mrb[0].mxu0
        %v3145 = vadd.f32 0.0, %v3144
        %v3146 = vpop.f32.mrb[0].mxu0
        %v3147 = vadd.f32 0.0, %v3146
        %v3148 = vpop.f32.mrb[0].mxu0
        %v3149 = vadd.f32 0.0, %v3148
        %v3150 = vpop.f32.mrb[0].mxu0
        %v3151 = vadd.f32 0.0, %v3150
        %3152 = vmatprep.mubr.bf16.mxu0 %v1483
        %3153 = vmatmul.mubr.bf16.gmra.mrb[0].mxu0 %v1482
        %v3154 = vpop.f32.mrb[0].mxu0
        %v3155 = vadd.f32 0.0, %v3154
        %v3156 = vpop.f32.mrb[0].mxu0
        %v3157 = vadd.f32 0.0, %v3156
        %v3158 = vpop.f32.mrb[0].mxu0
        %v3159 = vadd.f32 0.0, %v3158
        %v3160 = vpop.f32.mrb[0].mxu0
        %v3161 = vadd.f32 0.0, %v3160
        %3162 = vmatprep.mubr.bf16.mxu0 %v1487
        %3163 = vmatmul.mubr.bf16.gmra.mrb[0].mxu0 %v1486
        %v3164 = vpop.f32.mrb[0].mxu0
        %v3165 = vadd.f32 0.0, %v3164
        %v3166 = vpop.f32.mrb[0].mxu0
        %v3167 = vadd.f32 0.0, %v3166
        %v3168 = vpop.f32.mrb[0].mxu0
        %v3169 = vadd.f32 0.0, %v3168
        %v3170 = vpop.f32.mrb[0].mxu0
        %v3171 = vadd.f32 0.0, %v3170
        %3172 = vmatprep.mubr.bf16.mxu0 %v1491
        %3173 = vmatmul.mubr.bf16.gmra.mrb[0].mxu0 %v1490
        %v3174 = vpop.f32.mrb[0].mxu0
        %v3175 = vadd.f32 0.0, %v3174
        %v3176 = vpop.f32.mrb[0].mxu0
        %v3177 = vadd.f32 0.0, %v3176
        %v3178 = vpop.f32.mrb[0].mxu0
        %v3179 = vadd.f32 0.0, %v3178
        %v3180 = vpop.f32.mrb[0].mxu0
        %v3181 = vadd.f32 0.0, %v3180
        %3182 = vmatprep.mubr.bf16.mxu0 %v1495
        %3183 = vmatmul.mubr.bf16.gmra.mrb[0].mxu0 %v1494
        %v3184 = vpop.f32.mrb[0].mxu0
        %v3185 = vadd.f32 0.0, %v3184
        %v3186 = vpop.f32.mrb[0].mxu0
        %v3187 = vadd.f32 0.0, %v3186
        %v3188 = vpop.f32.mrb[0].mxu0
        %v3189 = vadd.f32 0.0, %v3188
        %v3190 = vpop.f32.mrb[0].mxu0
        %v3191 = vadd.f32 0.0, %v3190
        %3192 = vmatprep.mubr.bf16.mxu0 %v1499
        %3193 = vmatmul.mubr.bf16.gmra.mrb[0].mxu0 %v1498
        %v3194 = vpop.f32.mrb[0].mxu0
        %v3195 = vadd.f32 0.0, %v3194
        %v3196 = vpop.f32.mrb[0].mxu0
        %v3197 = vadd.f32 0.0, %v3196
        %v3198 = vpop.f32.mrb[0].mxu0
        %v3199 = vadd.f32 0.0, %v3198
        %v3200 = vpop.f32.mrb[0].mxu0
        %v3201 = vadd.f32 0.0, %v3200
        %3202 = vmatprep.mubr.bf16.mxu0 %v1503
        %3203 = vmatmul.mubr.bf16.gmra.mrb[0].mxu0 %v1502
        %v3204 = vpop.f32.mrb[0].mxu0
        %v3205 = vadd.f32 0.0, %v3204
        %v3206 = vpop.f32.mrb[0].mxu0
        %v3207 = vadd.f32 0.0, %v3206
        %v3208 = vpop.f32.mrb[0].mxu0
        %v3209 = vadd.f32 0.0, %v3208
        %v3210 = vpop.f32.mrb[0].mxu0
        %v3211 = vadd.f32 0.0, %v3210
        %3212 = vmatprep.mubr.bf16.mxu0 %v1507
        %3213 = vmatmul.mubr.bf16.gmra.mrb[0].mxu0 %v1506
        %v3214 = vpop.f32.mrb[0].mxu0
        %v3215 = vadd.f32 0.0, %v3214
        %v3216 = vpop.f32.mrb[0].mxu0
        %v3217 = vadd.f32 0.0, %v3216
        %v3218 = vpop.f32.mrb[0].mxu0
        %v3219 = vadd.f32 0.0, %v3218
        %v3220 = vpop.f32.mrb[0].mxu0
        %v3221 = vadd.f32 0.0, %v3220
        %3222 = vmatprep.mubr.bf16.mxu0 %v1511
        %3223 = vmatmul.mubr.bf16.gmra.mrb[0].mxu0 %v1510
        %v3224 = vpop.f32.mrb[0].mxu0
        %v3225 = vadd.f32 0.0, %v3224
        %v3226 = vpop.f32.mrb[0].mxu0
        %v3227 = vadd.f32 0.0, %v3226
        %v3228 = vpop.f32.mrb[0].mxu0
        %v3229 = vadd.f32 0.0, %v3228
        %v3230 = vpop.f32.mrb[0].mxu0
        %v3231 = vadd.f32 0.0, %v3230
        %3232 = vmatprep.mubr.bf16.mxu0 %v1515
        %3233 = vmatmul.mubr.bf16.gmra.mrb[0].mxu0 %v1514
        %v3234 = vpop.f32.mrb[0].mxu0
        %v3235 = vadd.f32 0.0, %v3234
        %v3236 = vpop.f32.mrb[0].mxu0
        %v3237 = vadd.f32 0.0, %v3236
        %v3238 = vpop.f32.mrb[0].mxu0
        %v3239 = vadd.f32 0.0, %v3238
        %v3240 = vpop.f32.mrb[0].mxu0
        %v3241 = vadd.f32 0.0, %v3240
        %3242 = vmatprep.mubr.bf16.mxu0 %v1519
        %3243 = vmatmul.mubr.bf16.gmra.mrb[0].mxu0 %v1518
        %v3244 = vpop.f32.mrb[0].mxu0
        %v3245 = vadd.f32 0.0, %v3244
        %v3246 = vpop.f32.mrb[0].mxu0
        %v3247 = vadd.f32 0.0, %v3246
        %v3248 = vpop.f32.mrb[0].mxu0
        %v3249 = vadd.f32 0.0, %v3248
        %v3250 = vpop.f32.mrb[0].mxu0
        %v3251 = vadd.f32 0.0, %v3250
        %3252 = vmatprep.mubr.bf16.mxu0 %v1523
        %3253 = vmatmul.mubr.bf16.gmra.mrb[0].mxu0 %v1522
        %v3254 = vpop.f32.mrb[0].mxu0
        %v3255 = vadd.f32 0.0, %v3254
        %v3256 = vpop.f32.mrb[0].mxu0
        %v3257 = vadd.f32 0.0, %v3256
        %v3258 = vpop.f32.mrb[0].mxu0
        %v3259 = vadd.f32 0.0, %v3258
        %v3260 = vpop.f32.mrb[0].mxu0
        %v3261 = vadd.f32 0.0, %v3260
        %3262 = vmatprep.mubr.bf16.mxu0 %v1527
        %3263 = vmatmul.mubr.bf16.gmra.mrb[0].mxu0 %v1526
        %v3264 = vpop.f32.mrb[0].mxu0
        %v3265 = vadd.f32 0.0, %v3264
        %v3266 = vpop.f32.mrb[0].mxu0
        %v3267 = vadd.f32 0.0, %v3266
        %v3268 = vpop.f32.mrb[0].mxu0
        %v3269 = vadd.f32 0.0, %v3268
        %v3270 = vpop.f32.mrb[0].mxu0
        %v3271 = vadd.f32 0.0, %v3270
        %3272 = vmatprep.mubr.bf16.mxu0 %v1531
        %3273 = vmatmul.mubr.bf16.gmra.mrb[0].mxu0 %v1530
        %v3274 = vpop.f32.mrb[0].mxu0
        %v3275 = vadd.f32 0.0, %v3274
        %v3276 = vpop.f32.mrb[0].mxu0
        %v3277 = vadd.f32 0.0, %v3276
        %v3278 = vpop.f32.mrb[0].mxu0
        %v3279 = vadd.f32 0.0, %v3278
        %v3280 = vpop.f32.mrb[0].mxu0
        %v3281 = vadd.f32 0.0, %v3280
        %3282 = vmatprep.mubr.bf16.mxu0 %v1535
        %3283 = vmatmul.mubr.bf16.gmra.mrb[0].mxu0 %v1534
        %v3284 = vpop.f32.mrb[0].mxu0
        %v3285 = vadd.f32 0.0, %v3284
        %v3286 = vpop.f32.mrb[0].mxu0
        %v3287 = vadd.f32 0.0, %v3286
        %v3288 = vpop.f32.mrb[0].mxu0
        %v3289 = vadd.f32 0.0, %v3288
        %v3290 = vpop.f32.mrb[0].mxu0
        %v3291 = vadd.f32 0.0, %v3290
        %3292 = vmatprep.mubr.bf16.mxu0 %v1539
        %3293 = vmatmul.mubr.bf16.gmra.mrb[0].mxu0 %v1538
        %v3294 = vpop.f32.mrb[0].mxu0
        %v3295 = vadd.f32 0.0, %v3294
        %v3296 = vpop.f32.mrb[0].mxu0
        %v3297 = vadd.f32 0.0, %v3296
        %v3298 = vpop.f32.mrb[0].mxu0
        %v3299 = vadd.f32 0.0, %v3298
        %v3300 = vpop.f32.mrb[0].mxu0
        %v3301 = vadd.f32 0.0, %v3300
        %3302 = vmatprep.mubr.bf16.mxu0 %v1543
        %3303 = vmatmul.mubr.bf16.gmra.mrb[0].mxu0 %v1542
        %v3304 = vpop.f32.mrb[0].mxu0
        %v3305 = vadd.f32 0.0, %v3304
        %v3306 = vpop.f32.mrb[0].mxu0
        %v3307 = vadd.f32 0.0, %v3306
        %v3308 = vpop.f32.mrb[0].mxu0
        %v3309 = vadd.f32 0.0, %v3308
        %v3310 = vpop.f32.mrb[0].mxu0
        %v3311 = vadd.f32 0.0, %v3310
        %3312 = vmatprep.mubr.bf16.mxu0 %v1547
        %3313 = vmatmul.mubr.bf16.gmra.mrb[0].mxu0 %v1546
        %v3314 = vpop.f32.mrb[0].mxu0
        %v3315 = vadd.f32 0.0, %v3314
        %v3316 = vpop.f32.mrb[0].mxu0
        %v3317 = vadd.f32 0.0, %v3316
        %v3318 = vpop.f32.mrb[0].mxu0
        %v3319 = vadd.f32 0.0, %v3318
        %v3320 = vpop.f32.mrb[0].mxu0
        %v3321 = vadd.f32 0.0, %v3320
        %3322 = vmatprep.mubr.bf16.mxu0 %v1551
        %3323 = vmatmul.mubr.bf16.gmra.mrb[0].mxu0 %v1550
        %v3324 = vpop.f32.mrb[0].mxu0
        %v3325 = vadd.f32 0.0, %v3324
        %v3326 = vpop.f32.mrb[0].mxu0
        %v3327 = vadd.f32 0.0, %v3326
        %v3328 = vpop.f32.mrb[0].mxu0
        %v3329 = vadd.f32 0.0, %v3328
        %v3330 = vpop.f32.mrb[0].mxu0
        %v3331 = vadd.f32 0.0, %v3330
        %3332 = vmatprep.mubr.bf16.mxu0 %v1555
        %3333 = vmatmul.mubr.bf16.gmra.mrb[0].mxu0 %v1554
        %v3334 = vpop.f32.mrb[0].mxu0
        %v3335 = vadd.f32 0.0, %v3334
        %v3336 = vpop.f32.mrb[0].mxu0
        %v3337 = vadd.f32 0.0, %v3336
        %v3338 = vpop.f32.mrb[0].mxu0
        %v3339 = vadd.f32 0.0, %v3338
        %v3340 = vpop.f32.mrb[0].mxu0
        %v3341 = vadd.f32 0.0, %v3340
        %3342 = vmatprep.mubr.bf16.mxu0 %v1559
        %3343 = vmatmul.mubr.bf16.gmra.mrb[0].mxu0 %v1558
        %v3344 = vpop.f32.mrb[0].mxu0
        %v3345 = vadd.f32 0.0, %v3344
        %v3346 = vpop.f32.mrb[0].mxu0
        %v3347 = vadd.f32 0.0, %v3346
        %v3348 = vpop.f32.mrb[0].mxu0
        %v3349 = vadd.f32 0.0, %v3348
        %v3350 = vpop.f32.mrb[0].mxu0
        %v3351 = vadd.f32 0.0, %v3350
        %3352 = vmatprep.mubr.bf16.mxu0 %v1563
        %3353 = vmatmul.mubr.bf16.gmra.mrb[0].mxu0 %v1562
        %v3354 = vpop.f32.mrb[0].mxu0
        %v3355 = vadd.f32 0.0, %v3354
        %v3356 = vpop.f32.mrb[0].mxu0
        %v3357 = vadd.f32 0.0, %v3356
        %v3358 = vpop.f32.mrb[0].mxu0
        %v3359 = vadd.f32 0.0, %v3358
        %v3360 = vpop.f32.mrb[0].mxu0
        %v3361 = vadd.f32 0.0, %v3360
        %3362 = vmatprep.mubr.bf16.mxu0 %v1567
        %3363 = vmatmul.mubr.bf16.gmra.mrb[0].mxu0 %v1566
        %v3364 = vpop.f32.mrb[0].mxu0
        %v3365 = vadd.f32 0.0, %v3364
        %v3366 = vpop.f32.mrb[0].mxu0
        %v3367 = vadd.f32 0.0, %v3366
        %v3368 = vpop.f32.mrb[0].mxu0
        %v3369 = vadd.f32 0.0, %v3368
        %v3370 = vpop.f32.mrb[0].mxu0
        %v3371 = vadd.f32 0.0, %v3370
        %3372 = vmatprep.mubr.bf16.mxu0 %v1571
        %3373 = vmatmul.mubr.bf16.gmra.mrb[0].mxu0 %v1570
        %v3374 = vpop.f32.mrb[0].mxu0
        %v3375 = vadd.f32 0.0, %v3374
        %v3376 = vpop.f32.mrb[0].mxu0
        %v3377 = vadd.f32 0.0, %v3376
        %v3378 = vpop.f32.mrb[0].mxu0
        %v3379 = vadd.f32 0.0, %v3378
        %v3380 = vpop.f32.mrb[0].mxu0
        %v3381 = vadd.f32 0.0, %v3380
        %3382 = vmatprep.mubr.bf16.mxu0 %v1575
        %3383 = vmatmul.mubr.bf16.gmra.mrb[0].mxu0 %v1574
        %v3384 = vpop.f32.mrb[0].mxu0
        %v3385 = vadd.f32 0.0, %v3384
        %v3386 = vpop.f32.mrb[0].mxu0
        %v3387 = vadd.f32 0.0, %v3386
        %v3388 = vpop.f32.mrb[0].mxu0
        %v3389 = vadd.f32 0.0, %v3388
        %v3390 = vpop.f32.mrb[0].mxu0
        %v3391 = vadd.f32 0.0, %v3390
        %3392 = vmatprep.mubr.bf16.mxu0 %v1579
        %3393 = vmatmul.mubr.bf16.gmra.mrb[0].mxu0 %v1578
        %v3394 = vpop.f32.mrb[0].mxu0
        %v3395 = vadd.f32 0.0, %v3394
        %v3396 = vpop.f32.mrb[0].mxu0
        %v3397 = vadd.f32 0.0, %v3396
        %v3398 = vpop.f32.mrb[0].mxu0
        %v3399 = vadd.f32 0.0, %v3398
        %v3400 = vpop.f32.mrb[0].mxu0
        %v3401 = vadd.f32 0.0, %v3400
        %3402 = vmatprep.mubr.bf16.mxu0 %v1583
        %3403 = vmatmul.mubr.bf16.gmra.mrb[0].mxu0 %v1582
        %v3404 = vpop.f32.mrb[0].mxu0
        %v3405 = vadd.f32 0.0, %v3404
        %v3406 = vpop.f32.mrb[0].mxu0
        %v3407 = vadd.f32 0.0, %v3406
        %v3408 = vpop.f32.mrb[0].mxu0
        %v3409 = vadd.f32 0.0, %v3408
        %v3410 = vpop.f32.mrb[0].mxu0
        %v3411 = vadd.f32 0.0, %v3410
        %3412 = vdwg.mxu0
        %3413 = vmatprep.subr.bf16.mxu0 %v2165
        %3414 = vmatpush1.bf16.msra.mxu0 %v2164
        %3415 = vmatprep.subr.bf16.mxu0 %v2169
        %3416 = vmatpush1.bf16.msra.mxu0 %v2168
        %3417 = vmatprep.subr.bf16.mxu0 %v2173
        %3418 = vmatpush1.bf16.msra.mxu0 %v2172
        %3419 = vmatprep.subr.bf16.mxu0 %v2177
        %3420 = vmatpush1.bf16.msra.mxu0 %v2176
        %3421 = vmatprep.subr.bf16.mxu0 %v2181
        %3422 = vmatpush1.bf16.msra.mxu0 %v2180
        %3423 = vmatprep.subr.bf16.mxu0 %v2185
        %3424 = vmatpush1.bf16.msra.mxu0 %v2184
        %3425 = vmatprep.subr.bf16.mxu0 %v2189
        %3426 = vmatpush1.bf16.msra.mxu0 %v2188
        %3427 = vmatprep.subr.bf16.mxu0 %v2193
        %3428 = vmatpush1.bf16.msra.mxu0 %v2192
        %3429 = vmatprep.subr.bf16.mxu0 %v2197
        %3430 = vmatpush1.bf16.msra.mxu0 %v2196
        %3431 = vmatprep.subr.bf16.mxu0 %v2201
        %3432 = vmatpush1.bf16.msra.mxu0 %v2200
        %3433 = vmatprep.subr.bf16.mxu0 %v2205
        %3434 = vmatpush1.bf16.msra.mxu0 %v2204
        %3435 = vmatprep.subr.bf16.mxu0 %v2209
        %3436 = vmatpush1.bf16.msra.mxu0 %v2208
        %3437 = vmatprep.subr.bf16.mxu0 %v2213
        %3438 = vmatpush1.bf16.msra.mxu0 %v2212
        %3439 = vmatprep.subr.bf16.mxu0 %v2217
        %3440 = vmatpush1.bf16.msra.mxu0 %v2216
        %3441 = vmatprep.subr.bf16.mxu0 %v2221
        %3442 = vmatpush1.bf16.msra.mxu0 %v2220
        %3443 = vmatprep.subr.bf16.mxu0 %v2225
        %3444 = vmatpush1.bf16.msra.mxu0 %v2224
        %3445 = vmatprep.mubr.bf16.mxu0 %v1461
        %3446 = vmatmul.mubr.bf16.gmra.mrb[0].mxu0 %v1460
        %v3447 = vpop.f32.mrb[0].mxu0
        %v3448 = vadd.f32 %v3095, %v3447
        %v3449 = vpop.f32.mrb[0].mxu0
        %v3450 = vadd.f32 %v3097, %v3449
        %v3451 = vpop.f32.mrb[0].mxu0
        %v3452 = vadd.f32 %v3099, %v3451
        %v3453 = vpop.f32.mrb[0].mxu0
        %v3454 = vadd.f32 %v3101, %v3453
        %3455 = vmatprep.mubr.bf16.mxu0 %v1465
        %3456 = vmatmul.mubr.bf16.gmra.mrb[0].mxu0 %v1464
        %v3457 = vpop.f32.mrb[0].mxu0
        %v3458 = vadd.f32 %v3105, %v3457
        %v3459 = vpop.f32.mrb[0].mxu0
        %v3460 = vadd.f32 %v3107, %v3459
        %v3461 = vpop.f32.mrb[0].mxu0
        %v3462 = vadd.f32 %v3109, %v3461
        %v3463 = vpop.f32.mrb[0].mxu0
        %v3464 = vadd.f32 %v3111, %v3463
        %3465 = vmatprep.mubr.bf16.mxu0 %v1469
        %3466 = vmatmul.mubr.bf16.gmra.mrb[0].mxu0 %v1468
        %v3467 = vpop.f32.mrb[0].mxu0
        %v3468 = vadd.f32 %v3115, %v3467
        %v3469 = vpop.f32.mrb[0].mxu0
        %v3470 = vadd.f32 %v3117, %v3469
        %v3471 = vpop.f32.mrb[0].mxu0
        %v3472 = vadd.f32 %v3119, %v3471
        %v3473 = vpop.f32.mrb[0].mxu0
        %v3474 = vadd.f32 %v3121, %v3473
        %3475 = vmatprep.mubr.bf16.mxu0 %v1473
        %3476 = vmatmul.mubr.bf16.gmra.mrb[0].mxu0 %v1472
        %v3477 = vpop.f32.mrb[0].mxu0
        %v3478 = vadd.f32 %v3125, %v3477
        %v3479 = vpop.f32.mrb[0].mxu0
        %v3480 = vadd.f32 %v3127, %v3479
        %v3481 = vpop.f32.mrb[0].mxu0
        %v3482 = vadd.f32 %v3129, %v3481
        %v3483 = vpop.f32.mrb[0].mxu0
        %v3484 = vadd.f32 %v3131, %v3483
        %3485 = vmatprep.mubr.bf16.mxu0 %v1477
        %3486 = vmatmul.mubr.bf16.gmra.mrb[0].mxu0 %v1476
        %v3487 = vpop.f32.mrb[0].mxu0
        %v3488 = vadd.f32 %v3135, %v3487
        %v3489 = vpop.f32.mrb[0].mxu0
        %v3490 = vadd.f32 %v3137, %v3489
        %v3491 = vpop.f32.mrb[0].mxu0
        %v3492 = vadd.f32 %v3139, %v3491
        %v3493 = vpop.f32.mrb[0].mxu0
        %v3494 = vadd.f32 %v3141, %v3493
        %3495 = vmatprep.mubr.bf16.mxu0 %v1481
        %3496 = vmatmul.mubr.bf16.gmra.mrb[0].mxu0 %v1480
        %v3497 = vpop.f32.mrb[0].mxu0
        %v3498 = vadd.f32 %v3145, %v3497
        %v3499 = vpop.f32.mrb[0].mxu0
        %v3500 = vadd.f32 %v3147, %v3499
        %v3501 = vpop.f32.mrb[0].mxu0
        %v3502 = vadd.f32 %v3149, %v3501
        %v3503 = vpop.f32.mrb[0].mxu0
        %v3504 = vadd.f32 %v3151, %v3503
        %3505 = vmatprep.mubr.bf16.mxu0 %v1485
        %3506 = vmatmul.mubr.bf16.gmra.mrb[0].mxu0 %v1484
        %v3507 = vpop.f32.mrb[0].mxu0
        %v3508 = vadd.f32 %v3155, %v3507
        %v3509 = vpop.f32.mrb[0].mxu0
        %v3510 = vadd.f32 %v3157, %v3509
        %v3511 = vpop.f32.mrb[0].mxu0
        %v3512 = vadd.f32 %v3159, %v3511
        %v3513 = vpop.f32.mrb[0].mxu0
        %v3514 = vadd.f32 %v3161, %v3513
        %3515 = vmatprep.mubr.bf16.mxu0 %v1489
        %3516 = vmatmul.mubr.bf16.gmra.mrb[0].mxu0 %v1488
        %v3517 = vpop.f32.mrb[0].mxu0
        %v3518 = vadd.f32 %v3165, %v3517
        %v3519 = vpop.f32.mrb[0].mxu0
        %v3520 = vadd.f32 %v3167, %v3519
        %v3521 = vpop.f32.mrb[0].mxu0
        %v3522 = vadd.f32 %v3169, %v3521
        %v3523 = vpop.f32.mrb[0].mxu0
        %v3524 = vadd.f32 %v3171, %v3523
        %3525 = vmatprep.mubr.bf16.mxu0 %v1493
        %3526 = vmatmul.mubr.bf16.gmra.mrb[0].mxu0 %v1492
        %v3527 = vpop.f32.mrb[0].mxu0
        %v3528 = vadd.f32 %v3175, %v3527
        %v3529 = vpop.f32.mrb[0].mxu0
        %v3530 = vadd.f32 %v3177, %v3529
        %v3531 = vpop.f32.mrb[0].mxu0
        %v3532 = vadd.f32 %v3179, %v3531
        %v3533 = vpop.f32.mrb[0].mxu0
        %v3534 = vadd.f32 %v3181, %v3533
        %3535 = vmatprep.mubr.bf16.mxu0 %v1497
        %3536 = vmatmul.mubr.bf16.gmra.mrb[0].mxu0 %v1496
        %v3537 = vpop.f32.mrb[0].mxu0
        %v3538 = vadd.f32 %v3185, %v3537
        %v3539 = vpop.f32.mrb[0].mxu0
        %v3540 = vadd.f32 %v3187, %v3539
        %v3541 = vpop.f32.mrb[0].mxu0
        %v3542 = vadd.f32 %v3189, %v3541
        %v3543 = vpop.f32.mrb[0].mxu0
        %v3544 = vadd.f32 %v3191, %v3543
        %3545 = vmatprep.mubr.bf16.mxu0 %v1501
        %3546 = vmatmul.mubr.bf16.gmra.mrb[0].mxu0 %v1500
        %v3547 = vpop.f32.mrb[0].mxu0
        %v3548 = vadd.f32 %v3195, %v3547
        %v3549 = vpop.f32.mrb[0].mxu0
        %v3550 = vadd.f32 %v3197, %v3549
        %v3551 = vpop.f32.mrb[0].mxu0
        %v3552 = vadd.f32 %v3199, %v3551
        %v3553 = vpop.f32.mrb[0].mxu0
        %v3554 = vadd.f32 %v3201, %v3553
        %3555 = vmatprep.mubr.bf16.mxu0 %v1505
        %3556 = vmatmul.mubr.bf16.gmra.mrb[0].mxu0 %v1504
        %v3557 = vpop.f32.mrb[0].mxu0
        %v3558 = vadd.f32 %v3205, %v3557
        %v3559 = vpop.f32.mrb[0].mxu0
        %v3560 = vadd.f32 %v3207, %v3559
        %v3561 = vpop.f32.mrb[0].mxu0
        %v3562 = vadd.f32 %v3209, %v3561
        %v3563 = vpop.f32.mrb[0].mxu0
        %v3564 = vadd.f32 %v3211, %v3563
        %3565 = vmatprep.mubr.bf16.mxu0 %v1509
        %3566 = vmatmul.mubr.bf16.gmra.mrb[0].mxu0 %v1508
        %v3567 = vpop.f32.mrb[0].mxu0
        %v3568 = vadd.f32 %v3215, %v3567
        %v3569 = vpop.f32.mrb[0].mxu0
        %v3570 = vadd.f32 %v3217, %v3569
        %v3571 = vpop.f32.mrb[0].mxu0
        %v3572 = vadd.f32 %v3219, %v3571
        %v3573 = vpop.f32.mrb[0].mxu0
        %v3574 = vadd.f32 %v3221, %v3573
        %3575 = vmatprep.mubr.bf16.mxu0 %v1513
        %3576 = vmatmul.mubr.bf16.gmra.mrb[0].mxu0 %v1512
        %v3577 = vpop.f32.mrb[0].mxu0
        %v3578 = vadd.f32 %v3225, %v3577
        %v3579 = vpop.f32.mrb[0].mxu0
        %v3580 = vadd.f32 %v3227, %v3579
        %v3581 = vpop.f32.mrb[0].mxu0
        %v3582 = vadd.f32 %v3229, %v3581
        %v3583 = vpop.f32.mrb[0].mxu0
        %v3584 = vadd.f32 %v3231, %v3583
        %3585 = vmatprep.mubr.bf16.mxu0 %v1517
        %3586 = vmatmul.mubr.bf16.gmra.mrb[0].mxu0 %v1516
        %v3587 = vpop.f32.mrb[0].mxu0
        %v3588 = vadd.f32 %v3235, %v3587
        %v3589 = vpop.f32.mrb[0].mxu0
        %v3590 = vadd.f32 %v3237, %v3589
        %v3591 = vpop.f32.mrb[0].mxu0
        %v3592 = vadd.f32 %v3239, %v3591
        %v3593 = vpop.f32.mrb[0].mxu0
        %v3594 = vadd.f32 %v3241, %v3593
        %3595 = vmatprep.mubr.bf16.mxu0 %v1521
        %3596 = vmatmul.mubr.bf16.gmra.mrb[0].mxu0 %v1520
        %v3597 = vpop.f32.mrb[0].mxu0
        %v3598 = vadd.f32 %v3245, %v3597
        %v3599 = vpop.f32.mrb[0].mxu0
        %v3600 = vadd.f32 %v3247, %v3599
        %v3601 = vpop.f32.mrb[0].mxu0
        %v3602 = vadd.f32 %v3249, %v3601
        %v3603 = vpop.f32.mrb[0].mxu0
        %v3604 = vadd.f32 %v3251, %v3603
        %3605 = vmatprep.mubr.bf16.mxu0 %v1525
        %3606 = vmatmul.mubr.bf16.gmra.mrb[0].mxu0 %v1524
        %v3607 = vpop.f32.mrb[0].mxu0
        %v3608 = vadd.f32 %v3255, %v3607
        %v3609 = vpop.f32.mrb[0].mxu0
        %v3610 = vadd.f32 %v3257, %v3609
        %v3611 = vpop.f32.mrb[0].mxu0
        %v3612 = vadd.f32 %v3259, %v3611
        %v3613 = vpop.f32.mrb[0].mxu0
        %v3614 = vadd.f32 %v3261, %v3613
        %3615 = vmatprep.mubr.bf16.mxu0 %v1529
        %3616 = vmatmul.mubr.bf16.gmra.mrb[0].mxu0 %v1528
        %v3617 = vpop.f32.mrb[0].mxu0
        %v3618 = vadd.f32 %v3265, %v3617
        %v3619 = vpop.f32.mrb[0].mxu0
        %v3620 = vadd.f32 %v3267, %v3619
        %v3621 = vpop.f32.mrb[0].mxu0
        %v3622 = vadd.f32 %v3269, %v3621
        %v3623 = vpop.f32.mrb[0].mxu0
        %v3624 = vadd.f32 %v3271, %v3623
        %3625 = vmatprep.mubr.bf16.mxu0 %v1533
        %3626 = vmatmul.mubr.bf16.gmra.mrb[0].mxu0 %v1532
        %v3627 = vpop.f32.mrb[0].mxu0
        %v3628 = vadd.f32 %v3275, %v3627
        %v3629 = vpop.f32.mrb[0].mxu0
        %v3630 = vadd.f32 %v3277, %v3629
        %v3631 = vpop.f32.mrb[0].mxu0
        %v3632 = vadd.f32 %v3279, %v3631
        %v3633 = vpop.f32.mrb[0].mxu0
        %v3634 = vadd.f32 %v3281, %v3633
        %3635 = vmatprep.mubr.bf16.mxu0 %v1537
        %3636 = vmatmul.mubr.bf16.gmra.mrb[0].mxu0 %v1536
        %v3637 = vpop.f32.mrb[0].mxu0
        %v3638 = vadd.f32 %v3285, %v3637
        %v3639 = vpop.f32.mrb[0].mxu0
        %v3640 = vadd.f32 %v3287, %v3639
        %v3641 = vpop.f32.mrb[0].mxu0
        %v3642 = vadd.f32 %v3289, %v3641
        %v3643 = vpop.f32.mrb[0].mxu0
        %v3644 = vadd.f32 %v3291, %v3643
        %3645 = vmatprep.mubr.bf16.mxu0 %v1541
        %3646 = vmatmul.mubr.bf16.gmra.mrb[0].mxu0 %v1540
        %v3647 = vpop.f32.mrb[0].mxu0
        %v3648 = vadd.f32 %v3295, %v3647
        %v3649 = vpop.f32.mrb[0].mxu0
        %v3650 = vadd.f32 %v3297, %v3649
        %v3651 = vpop.f32.mrb[0].mxu0
        %v3652 = vadd.f32 %v3299, %v3651
        %v3653 = vpop.f32.mrb[0].mxu0
        %v3654 = vadd.f32 %v3301, %v3653
        %3655 = vmatprep.mubr.bf16.mxu0 %v1545
        %3656 = vmatmul.mubr.bf16.gmra.mrb[0].mxu0 %v1544
        %v3657 = vpop.f32.mrb[0].mxu0
        %v3658 = vadd.f32 %v3305, %v3657
        %v3659 = vpop.f32.mrb[0].mxu0
        %v3660 = vadd.f32 %v3307, %v3659
        %v3661 = vpop.f32.mrb[0].mxu0
        %v3662 = vadd.f32 %v3309, %v3661
        %v3663 = vpop.f32.mrb[0].mxu0
        %v3664 = vadd.f32 %v3311, %v3663
        %3665 = vmatprep.mubr.bf16.mxu0 %v1549
        %3666 = vmatmul.mubr.bf16.gmra.mrb[0].mxu0 %v1548
        %v3667 = vpop.f32.mrb[0].mxu0
        %v3668 = vadd.f32 %v3315, %v3667
        %v3669 = vpop.f32.mrb[0].mxu0
        %v3670 = vadd.f32 %v3317, %v3669
        %v3671 = vpop.f32.mrb[0].mxu0
        %v3672 = vadd.f32 %v3319, %v3671
        %v3673 = vpop.f32.mrb[0].mxu0
        %v3674 = vadd.f32 %v3321, %v3673
        %3675 = vmatprep.mubr.bf16.mxu0 %v1553
        %3676 = vmatmul.mubr.bf16.gmra.mrb[0].mxu0 %v1552
        %v3677 = vpop.f32.mrb[0].mxu0
        %v3678 = vadd.f32 %v3325, %v3677
        %v3679 = vpop.f32.mrb[0].mxu0
        %v3680 = vadd.f32 %v3327, %v3679
        %v3681 = vpop.f32.mrb[0].mxu0
        %v3682 = vadd.f32 %v3329, %v3681
        %v3683 = vpop.f32.mrb[0].mxu0
        %v3684 = vadd.f32 %v3331, %v3683
        %3685 = vmatprep.mubr.bf16.mxu0 %v1557
        %3686 = vmatmul.mubr.bf16.gmra.mrb[0].mxu0 %v1556
        %v3687 = vpop.f32.mrb[0].mxu0
        %v3688 = vadd.f32 %v3335, %v3687
        %v3689 = vpop.f32.mrb[0].mxu0
        %v3690 = vadd.f32 %v3337, %v3689
        %v3691 = vpop.f32.mrb[0].mxu0
        %v3692 = vadd.f32 %v3339, %v3691
        %v3693 = vpop.f32.mrb[0].mxu0
        %v3694 = vadd.f32 %v3341, %v3693
        %3695 = vmatprep.mubr.bf16.mxu0 %v1561
        %3696 = vmatmul.mubr.bf16.gmra.mrb[0].mxu0 %v1560
        %v3697 = vpop.f32.mrb[0].mxu0
        %v3698 = vadd.f32 %v3345, %v3697
        %v3699 = vpop.f32.mrb[0].mxu0
        %v3700 = vadd.f32 %v3347, %v3699
        %v3701 = vpop.f32.mrb[0].mxu0
        %v3702 = vadd.f32 %v3349, %v3701
        %v3703 = vpop.f32.mrb[0].mxu0
        %v3704 = vadd.f32 %v3351, %v3703
        %3705 = vmatprep.mubr.bf16.mxu0 %v1565
        %3706 = vmatmul.mubr.bf16.gmra.mrb[0].mxu0 %v1564
        %v3707 = vpop.f32.mrb[0].mxu0
        %v3708 = vadd.f32 %v3355, %v3707
        %v3709 = vpop.f32.mrb[0].mxu0
        %v3710 = vadd.f32 %v3357, %v3709
        %v3711 = vpop.f32.mrb[0].mxu0
        %v3712 = vadd.f32 %v3359, %v3711
        %v3713 = vpop.f32.mrb[0].mxu0
        %v3714 = vadd.f32 %v3361, %v3713
        %3715 = vmatprep.mubr.bf16.mxu0 %v1569
        %3716 = vmatmul.mubr.bf16.gmra.mrb[0].mxu0 %v1568
        %v3717 = vpop.f32.mrb[0].mxu0
        %v3718 = vadd.f32 %v3365, %v3717
        %v3719 = vpop.f32.mrb[0].mxu0
        %v3720 = vadd.f32 %v3367, %v3719
        %v3721 = vpop.f32.mrb[0].mxu0
        %v3722 = vadd.f32 %v3369, %v3721
        %v3723 = vpop.f32.mrb[0].mxu0
        %v3724 = vadd.f32 %v3371, %v3723
        %3725 = vmatprep.mubr.bf16.mxu0 %v1573
        %3726 = vmatmul.mubr.bf16.gmra.mrb[0].mxu0 %v1572
        %v3727 = vpop.f32.mrb[0].mxu0
        %v3728 = vadd.f32 %v3375, %v3727
        %v3729 = vpop.f32.mrb[0].mxu0
        %v3730 = vadd.f32 %v3377, %v3729
        %v3731 = vpop.f32.mrb[0].mxu0
        %v3732 = vadd.f32 %v3379, %v3731
        %v3733 = vpop.f32.mrb[0].mxu0
        %v3734 = vadd.f32 %v3381, %v3733
        %3735 = vmatprep.mubr.bf16.mxu0 %v1577
        %3736 = vmatmul.mubr.bf16.gmra.mrb[0].mxu0 %v1576
        %v3737 = vpop.f32.mrb[0].mxu0
        %v3738 = vadd.f32 %v3385, %v3737
        %v3739 = vpop.f32.mrb[0].mxu0
        %v3740 = vadd.f32 %v3387, %v3739
        %v3741 = vpop.f32.mrb[0].mxu0
        %v3742 = vadd.f32 %v3389, %v3741
        %v3743 = vpop.f32.mrb[0].mxu0
        %v3744 = vadd.f32 %v3391, %v3743
        %3745 = vmatprep.mubr.bf16.mxu0 %v1581
        %3746 = vmatmul.mubr.bf16.gmra.mrb[0].mxu0 %v1580
        %v3747 = vpop.f32.mrb[0].mxu0
        %v3748 = vadd.f32 %v3395, %v3747
        %v3749 = vpop.f32.mrb[0].mxu0
        %v3750 = vadd.f32 %v3397, %v3749
        %v3751 = vpop.f32.mrb[0].mxu0
        %v3752 = vadd.f32 %v3399, %v3751
        %v3753 = vpop.f32.mrb[0].mxu0
        %v3754 = vadd.f32 %v3401, %v3753
        %3755 = vmatprep.mubr.bf16.mxu0 %v1585
        %3756 = vmatmul.mubr.bf16.gmra.mrb[0].mxu0 %v1584
        %v3757 = vpop.f32.mrb[0].mxu0
        %v3758 = vadd.f32 %v3405, %v3757
        %v3759 = vpop.f32.mrb[0].mxu0
        %v3760 = vadd.f32 %v3407, %v3759
        %v3761 = vpop.f32.mrb[0].mxu0
        %v3762 = vadd.f32 %v3409, %v3761
        %v3763 = vpop.f32.mrb[0].mxu0
        %v3764 = vadd.f32 %v3411, %v3763
        %3765 = vdwg.mxu0
        %v3766 = vadd.f32 %v562, %v2742
        %v3767 = vadd.f32 %v563, %v2744
        %v3768 = vadd.f32 %v564, %v3448
        %v3769 = vadd.f32 %v565, %v3450
        %v3770 = vadd.f32 %v566, %v2746
        %v3771 = vadd.f32 %v567, %v2748
        %v3772 = vadd.f32 %v568, %v3452
        %v3773 = vadd.f32 %v569, %v3454
        %v3774 = vadd.f32 %v570, %v2752
        %v3775 = vadd.f32 %v571, %v2754
        %v3776 = vadd.f32 %v572, %v3458
        %v3777 = vadd.f32 %v573, %v3460
        %v3778 = vadd.f32 %v574, %v2756
        %v3779 = vadd.f32 %v575, %v2758
        %v3780 = vadd.f32 %v576, %v3462
        %v3781 = vadd.f32 %v577, %v3464
        %v3782 = vadd.f32 %v578, %v2762
        %v3783 = vadd.f32 %v579, %v2764
        %v3784 = vadd.f32 %v580, %v3468
        %v3785 = vadd.f32 %v581, %v3470
        %v3786 = vadd.f32 %v582, %v2766
        %v3787 = vadd.f32 %v583, %v2768
        %v3788 = vadd.f32 %v584, %v3472
        %v3789 = vadd.f32 %v585, %v3474
        %v3790 = vadd.f32 %v586, %v2772
        %v3791 = vadd.f32 %v587, %v2774
        %v3792 = vadd.f32 %v588, %v3478
        %v3793 = vadd.f32 %v589, %v3480
        %v3794 = vadd.f32 %v590, %v2776
        %v3795 = vadd.f32 %v591, %v2778
        %v3796 = vadd.f32 %v592, %v3482
        %v3797 = vadd.f32 %v593, %v3484
        %v3798 = vadd.f32 %v594, %v2782
        %v3799 = vadd.f32 %v595, %v2784
        %v3800 = vadd.f32 %v596, %v3488
        %v3801 = vadd.f32 %v597, %v3490
        %v3802 = vadd.f32 %v598, %v2786
        %v3803 = vadd.f32 %v599, %v2788
        %v3804 = vadd.f32 %v600, %v3492
        %v3805 = vadd.f32 %v601, %v3494
        %v3806 = vadd.f32 %v602, %v2792
        %v3807 = vadd.f32 %v603, %v2794
        %v3808 = vadd.f32 %v604, %v3498
        %v3809 = vadd.f32 %v605, %v3500
        %v3810 = vadd.f32 %v606, %v2796
        %v3811 = vadd.f32 %v607, %v2798
        %v3812 = vadd.f32 %v608, %v3502
        %v3813 = vadd.f32 %v609, %v3504
        %v3814 = vadd.f32 %v610, %v2802
        %v3815 = vadd.f32 %v611, %v2804
        %v3816 = vadd.f32 %v612, %v3508
        %v3817 = vadd.f32 %v613, %v3510
        %v3818 = vadd.f32 %v614, %v2806
        %v3819 = vadd.f32 %v615, %v2808
        %v3820 = vadd.f32 %v616, %v3512
        %v3821 = vadd.f32 %v617, %v3514
        %v3822 = vadd.f32 %v618, %v2812
        %v3823 = vadd.f32 %v619, %v2814
        %v3824 = vadd.f32 %v620, %v3518
        %v3825 = vadd.f32 %v621, %v3520
        %v3826 = vadd.f32 %v622, %v2816
        %v3827 = vadd.f32 %v623, %v2818
        %v3828 = vadd.f32 %v624, %v3522
        %v3829 = vadd.f32 %v625, %v3524
        %v3830 = vadd.f32 %v626, %v2822
        %v3831 = vadd.f32 %v627, %v2824
        %v3832 = vadd.f32 %v628, %v3528
        %v3833 = vadd.f32 %v629, %v3530
        %v3834 = vadd.f32 %v630, %v2826
        %v3835 = vadd.f32 %v631, %v2828
        %v3836 = vadd.f32 %v632, %v3532
        %v3837 = vadd.f32 %v633, %v3534
        %v3838 = vadd.f32 %v634, %v2832
        %v3839 = vadd.f32 %v635, %v2834
        %v3840 = vadd.f32 %v636, %v3538
        %v3841 = vadd.f32 %v637, %v3540
        %v3842 = vadd.f32 %v638, %v2836
        %v3843 = vadd.f32 %v639, %v2838
        %v3844 = vadd.f32 %v640, %v3542
        %v3845 = vadd.f32 %v641, %v3544
        %v3846 = vadd.f32 %v642, %v2842
        %v3847 = vadd.f32 %v643, %v2844
        %v3848 = vadd.f32 %v644, %v3548
        %v3849 = vadd.f32 %v645, %v3550
        %v3850 = vadd.f32 %v646, %v2846
        %v3851 = vadd.f32 %v647, %v2848
        %v3852 = vadd.f32 %v648, %v3552
        %v3853 = vadd.f32 %v649, %v3554
        %v3854 = vadd.f32 %v650, %v2852
        %v3855 = vadd.f32 %v651, %v2854
        %v3856 = vadd.f32 %v652, %v3558
        %v3857 = vadd.f32 %v653, %v3560
        %v3858 = vadd.f32 %v654, %v2856
        %v3859 = vadd.f32 %v655, %v2858
        %v3860 = vadd.f32 %v656, %v3562
        %v3861 = vadd.f32 %v657, %v3564
        %v3862 = vadd.f32 %v658, %v2862
        %v3863 = vadd.f32 %v659, %v2864
        %v3864 = vadd.f32 %v660, %v3568
        %v3865 = vadd.f32 %v661, %v3570
        %v3866 = vadd.f32 %v662, %v2866
        %v3867 = vadd.f32 %v663, %v2868
        %v3868 = vadd.f32 %v664, %v3572
        %v3869 = vadd.f32 %v665, %v3574
        %v3870 = vadd.f32 %v666, %v2872
        %v3871 = vadd.f32 %v667, %v2874
        %v3872 = vadd.f32 %v668, %v3578
        %v3873 = vadd.f32 %v669, %v3580
        %v3874 = vadd.f32 %v670, %v2876
        %v3875 = vadd.f32 %v671, %v2878
        %v3876 = vadd.f32 %v672, %v3582
        %v3877 = vadd.f32 %v673, %v3584
        %v3878 = vadd.f32 %v674, %v2882
        %v3879 = vadd.f32 %v675, %v2884
        %v3880 = vadd.f32 %v676, %v3588
        %v3881 = vadd.f32 %v677, %v3590
        %v3882 = vadd.f32 %v678, %v2886
        %v3883 = vadd.f32 %v679, %v2888
        %v3884 = vadd.f32 %v680, %v3592
        %v3885 = vadd.f32 %v681, %v3594
        %v3886 = vadd.f32 %v682, %v2892
        %v3887 = vadd.f32 %v683, %v2894
        %v3888 = vadd.f32 %v684, %v3598
        %v3889 = vadd.f32 %v685, %v3600
        %v3890 = vadd.f32 %v686, %v2896
        %v3891 = vadd.f32 %v687, %v2898
        %v3892 = vadd.f32 %v688, %v3602
        %v3893 = vadd.f32 %v689, %v3604
        %v3894 = vadd.f32 %v690, %v2902
        %v3895 = vadd.f32 %v691, %v2904
        %v3896 = vadd.f32 %v692, %v3608
        %v3897 = vadd.f32 %v693, %v3610
        %v3898 = vadd.f32 %v694, %v2906
        %v3899 = vadd.f32 %v695, %v2908
        %v3900 = vadd.f32 %v696, %v3612
        %v3901 = vadd.f32 %v697, %v3614
        %v3902 = vadd.f32 %v698, %v2912
        %v3903 = vadd.f32 %v699, %v2914
        %v3904 = vadd.f32 %v700, %v3618
        %v3905 = vadd.f32 %v701, %v3620
        %v3906 = vadd.f32 %v702, %v2916
        %v3907 = vadd.f32 %v703, %v2918
        %v3908 = vadd.f32 %v704, %v3622
        %v3909 = vadd.f32 %v705, %v3624
        %v3910 = vadd.f32 %v706, %v2922
        %v3911 = vadd.f32 %v707, %v2924
        %v3912 = vadd.f32 %v708, %v3628
        %v3913 = vadd.f32 %v709, %v3630
        %v3914 = vadd.f32 %v710, %v2926
        %v3915 = vadd.f32 %v711, %v2928
        %v3916 = vadd.f32 %v712, %v3632
        %v3917 = vadd.f32 %v713, %v3634
        %v3918 = vadd.f32 %v714, %v2932
        %v3919 = vadd.f32 %v715, %v2934
        %v3920 = vadd.f32 %v716, %v3638
        %v3921 = vadd.f32 %v717, %v3640
        %v3922 = vadd.f32 %v718, %v2936
        %v3923 = vadd.f32 %v719, %v2938
        %v3924 = vadd.f32 %v720, %v3642
        %v3925 = vadd.f32 %v721, %v3644
        %v3926 = vadd.f32 %v722, %v2942
        %v3927 = vadd.f32 %v723, %v2944
        %v3928 = vadd.f32 %v724, %v3648
        %v3929 = vadd.f32 %v725, %v3650
        %v3930 = vadd.f32 %v726, %v2946
        %v3931 = vadd.f32 %v727, %v2948
        %v3932 = vadd.f32 %v728, %v3652
        %v3933 = vadd.f32 %v729, %v3654
        %v3934 = vadd.f32 %v730, %v2952
        %v3935 = vadd.f32 %v731, %v2954
        %v3936 = vadd.f32 %v732, %v3658
        %v3937 = vadd.f32 %v733, %v3660
        %v3938 = vadd.f32 %v734, %v2956
        %v3939 = vadd.f32 %v735, %v2958
        %v3940 = vadd.f32 %v736, %v3662
        %v3941 = vadd.f32 %v737, %v3664
        %v3942 = vadd.f32 %v738, %v2962
        %v3943 = vadd.f32 %v739, %v2964
        %v3944 = vadd.f32 %v740, %v3668
        %v3945 = vadd.f32 %v741, %v3670
        %v3946 = vadd.f32 %v742, %v2966
        %v3947 = vadd.f32 %v743, %v2968
        %v3948 = vadd.f32 %v744, %v3672
        %v3949 = vadd.f32 %v745, %v3674
        %v3950 = vadd.f32 %v746, %v2972
        %v3951 = vadd.f32 %v747, %v2974
        %v3952 = vadd.f32 %v748, %v3678
        %v3953 = vadd.f32 %v749, %v3680
        %v3954 = vadd.f32 %v750, %v2976
        %v3955 = vadd.f32 %v751, %v2978
        %v3956 = vadd.f32 %v752, %v3682
        %v3957 = vadd.f32 %v753, %v3684
        %v3958 = vadd.f32 %v754, %v2982
        %v3959 = vadd.f32 %v755, %v2984
        %v3960 = vadd.f32 %v756, %v3688
        %v3961 = vadd.f32 %v757, %v3690
        %v3962 = vadd.f32 %v758, %v2986
        %v3963 = vadd.f32 %v759, %v2988
        %v3964 = vadd.f32 %v760, %v3692
        %v3965 = vadd.f32 %v761, %v3694
        %v3966 = vadd.f32 %v762, %v2992
        %v3967 = vadd.f32 %v763, %v2994
        %v3968 = vadd.f32 %v764, %v3698
        %v3969 = vadd.f32 %v765, %v3700
        %v3970 = vadd.f32 %v766, %v2996
        %v3971 = vadd.f32 %v767, %v2998
        %v3972 = vadd.f32 %v768, %v3702
        %v3973 = vadd.f32 %v769, %v3704
        %v3974 = vadd.f32 %v770, %v3002
        %v3975 = vadd.f32 %v771, %v3004
        %v3976 = vadd.f32 %v772, %v3708
        %v3977 = vadd.f32 %v773, %v3710
        %v3978 = vadd.f32 %v774, %v3006
        %v3979 = vadd.f32 %v775, %v3008
        %v3980 = vadd.f32 %v776, %v3712
        %v3981 = vadd.f32 %v777, %v3714
        %v3982 = vadd.f32 %v778, %v3012
        %v3983 = vadd.f32 %v779, %v3014
        %v3984 = vadd.f32 %v780, %v3718
        %v3985 = vadd.f32 %v781, %v3720
        %v3986 = vadd.f32 %v782, %v3016
        %v3987 = vadd.f32 %v783, %v3018
        %v3988 = vadd.f32 %v784, %v3722
        %v3989 = vadd.f32 %v785, %v3724
        %v3990 = vadd.f32 %v786, %v3022
        %v3991 = vadd.f32 %v787, %v3024
        %v3992 = vadd.f32 %v788, %v3728
        %v3993 = vadd.f32 %v789, %v3730
        %v3994 = vadd.f32 %v790, %v3026
        %v3995 = vadd.f32 %v791, %v3028
        %v3996 = vadd.f32 %v792, %v3732
        %v3997 = vadd.f32 %v793, %v3734
        %v3998 = vadd.f32 %v794, %v3032
        %v3999 = vadd.f32 %v795, %v3034
        %v4000 = vadd.f32 %v796, %v3738
        %v4001 = vadd.f32 %v797, %v3740
        %v4002 = vadd.f32 %v798, %v3036
        %v4003 = vadd.f32 %v799, %v3038
        %v4004 = vadd.f32 %v800, %v3742
        %v4005 = vadd.f32 %v801, %v3744
        %v4006 = vadd.f32 %v802, %v3042
        %v4007 = vadd.f32 %v803, %v3044
        %v4008 = vadd.f32 %v804, %v3748
        %v4009 = vadd.f32 %v805, %v3750
        %v4010 = vadd.f32 %v806, %v3046
        %v4011 = vadd.f32 %v807, %v3048
        %v4012 = vadd.f32 %v808, %v3752
        %v4013 = vadd.f32 %v809, %v3754
        %v4014 = vadd.f32 %v810, %v3052
        %v4015 = vadd.f32 %v811, %v3054
        %v4016 = vadd.f32 %v812, %v3758
        %v4017 = vadd.f32 %v813, %v3760
        %v4018 = vadd.f32 %v814, %v3056
        %v4019 = vadd.f32 %v815, %v3058
        %v4020 = vadd.f32 %v816, %v3762
        %v4021 = vadd.f32 %v817, %v3764
        %4022 = vst [vmem:[#allocation2] sm:$0xff] %v3766
        %4023 = vst [vmem:[#allocation2 + $0x8] sm:$0xff] %v3767
        %4024 = vst [vmem:[#allocation2 + $0x10] sm:$0xff] %v3768
        %4025 = vst [vmem:[#allocation2 + $0x18] sm:$0xff] %v3769
        %4026 = vst [vmem:[#allocation2 + $0x20] sm:$0xff] %v3770
        %4027 = vst [vmem:[#allocation2 + $0x28] sm:$0xff] %v3771
        %4028 = vst [vmem:[#allocation2 + $0x30] sm:$0xff] %v3772
        %4029 = vst [vmem:[#allocation2 + $0x38] sm:$0xff] %v3773
        %4030 = vst [vmem:[#allocation2 + $0x40] sm:$0xff] %v3774
        %4031 = vst [vmem:[#allocation2 + $0x48] sm:$0xff] %v3775
        %4032 = vst [vmem:[#allocation2 + $0x50] sm:$0xff] %v3776
        %4033 = vst [vmem:[#allocation2 + $0x58] sm:$0xff] %v3777
        %4034 = vst [vmem:[#allocation2 + $0x60] sm:$0xff] %v3778
        %4035 = vst [vmem:[#allocation2 + $0x68] sm:$0xff] %v3779
        %4036 = vst [vmem:[#allocation2 + $0x70] sm:$0xff] %v3780
        %4037 = vst [vmem:[#allocation2 + $0x78] sm:$0xff] %v3781
        %4038 = vst [vmem:[#allocation2 + $0x80] sm:$0xff] %v3782
        %4039 = vst [vmem:[#allocation2 + $0x88] sm:$0xff] %v3783
        %4040 = vst [vmem:[#allocation2 + $0x90] sm:$0xff] %v3784
        %4041 = vst [vmem:[#allocation2 + $0x98] sm:$0xff] %v3785
        %4042 = vst [vmem:[#allocation2 + $0xa0] sm:$0xff] %v3786
        %4043 = vst [vmem:[#allocation2 + $0xa8] sm:$0xff] %v3787
        %4044 = vst [vmem:[#allocation2 + $0xb0] sm:$0xff] %v3788
        %4045 = vst [vmem:[#allocation2 + $0xb8] sm:$0xff] %v3789
        %4046 = vst [vmem:[#allocation2 + $0xc0] sm:$0xff] %v3790
        %4047 = vst [vmem:[#allocation2 + $0xc8] sm:$0xff] %v3791
        %4048 = vst [vmem:[#allocation2 + $0xd0] sm:$0xff] %v3792
        %4049 = vst [vmem:[#allocation2 + $0xd8] sm:$0xff] %v3793
        %4050 = vst [vmem:[#allocation2 + $0xe0] sm:$0xff] %v3794
        %4051 = vst [vmem:[#allocation2 + $0xe8] sm:$0xff] %v3795
        %4052 = vst [vmem:[#allocation2 + $0xf0] sm:$0xff] %v3796
        %4053 = vst [vmem:[#allocation2 + $0xf8] sm:$0xff] %v3797
        %4054 = vst [vmem:[#allocation2 + $0x100] sm:$0xff] %v3798
        %4055 = vst [vmem:[#allocation2 + $0x108] sm:$0xff] %v3799
        %4056 = vst [vmem:[#allocation2 + $0x110] sm:$0xff] %v3800
        %4057 = vst [vmem:[#allocation2 + $0x118] sm:$0xff] %v3801
        %4058 = vst [vmem:[#allocation2 + $0x120] sm:$0xff] %v3802
        %4059 = vst [vmem:[#allocation2 + $0x128] sm:$0xff] %v3803
        %4060 = vst [vmem:[#allocation2 + $0x130] sm:$0xff] %v3804
        %4061 = vst [vmem:[#allocation2 + $0x138] sm:$0xff] %v3805
        %4062 = vst [vmem:[#allocation2 + $0x140] sm:$0xff] %v3806
        %4063 = vst [vmem:[#allocation2 + $0x148] sm:$0xff] %v3807
        %4064 = vst [vmem:[#allocation2 + $0x150] sm:$0xff] %v3808
        %4065 = vst [vmem:[#allocation2 + $0x158] sm:$0xff] %v3809
        %4066 = vst [vmem:[#allocation2 + $0x160] sm:$0xff] %v3810
        %4067 = vst [vmem:[#allocation2 + $0x168] sm:$0xff] %v3811
        %4068 = vst [vmem:[#allocation2 + $0x170] sm:$0xff] %v3812
        %4069 = vst [vmem:[#allocation2 + $0x178] sm:$0xff] %v3813
        %4070 = vst [vmem:[#allocation2 + $0x180] sm:$0xff] %v3814
        %4071 = vst [vmem:[#allocation2 + $0x188] sm:$0xff] %v3815
        %4072 = vst [vmem:[#allocation2 + $0x190] sm:$0xff] %v3816
        %4073 = vst [vmem:[#allocation2 + $0x198] sm:$0xff] %v3817
        %4074 = vst [vmem:[#allocation2 + $0x1a0] sm:$0xff] %v3818
        %4075 = vst [vmem:[#allocation2 + $0x1a8] sm:$0xff] %v3819
        %4076 = vst [vmem:[#allocation2 + $0x1b0] sm:$0xff] %v3820
        %4077 = vst [vmem:[#allocation2 + $0x1b8] sm:$0xff] %v3821
        %4078 = vst [vmem:[#allocation2 + $0x1c0] sm:$0xff] %v3822
        %4079 = vst [vmem:[#allocation2 + $0x1c8] sm:$0xff] %v3823
        %4080 = vst [vmem:[#allocation2 + $0x1d0] sm:$0xff] %v3824
        %4081 = vst [vmem:[#allocation2 + $0x1d8] sm:$0xff] %v3825
        %4082 = vst [vmem:[#allocation2 + $0x1e0] sm:$0xff] %v3826
        %4083 = vst [vmem:[#allocation2 + $0x1e8] sm:$0xff] %v3827
        %4084 = vst [vmem:[#allocation2 + $0x1f0] sm:$0xff] %v3828
        %4085 = vst [vmem:[#allocation2 + $0x1f8] sm:$0xff] %v3829
        %4086 = vst [vmem:[#allocation2 + $0x200] sm:$0xff] %v3830
        %4087 = vst [vmem:[#allocation2 + $0x208] sm:$0xff] %v3831
        %4088 = vst [vmem:[#allocation2 + $0x210] sm:$0xff] %v3832
        %4089 = vst [vmem:[#allocation2 + $0x218] sm:$0xff] %v3833
        %4090 = vst [vmem:[#allocation2 + $0x220] sm:$0xff] %v3834
        %4091 = vst [vmem:[#allocation2 + $0x228] sm:$0xff] %v3835
        %4092 = vst [vmem:[#allocation2 + $0x230] sm:$0xff] %v3836
        %4093 = vst [vmem:[#allocation2 + $0x238] sm:$0xff] %v3837
        %4094 = vst [vmem:[#allocation2 + $0x240] sm:$0xff] %v3838
        %4095 = vst [vmem:[#allocation2 + $0x248] sm:$0xff] %v3839
        %4096 = vst [vmem:[#allocation2 + $0x250] sm:$0xff] %v3840
        %4097 = vst [vmem:[#allocation2 + $0x258] sm:$0xff] %v3841
        %4098 = vst [vmem:[#allocation2 + $0x260] sm:$0xff] %v3842
        %4099 = vst [vmem:[#allocation2 + $0x268] sm:$0xff] %v3843
        %4100 = vst [vmem:[#allocation2 + $0x270] sm:$0xff] %v3844
        %4101 = vst [vmem:[#allocation2 + $0x278] sm:$0xff] %v3845
        %4102 = vst [vmem:[#allocation2 + $0x280] sm:$0xff] %v3846
        %4103 = vst [vmem:[#allocation2 + $0x288] sm:$0xff] %v3847
        %4104 = vst [vmem:[#allocation2 + $0x290] sm:$0xff] %v3848
        %4105 = vst [vmem:[#allocation2 + $0x298] sm:$0xff] %v3849
        %4106 = vst [vmem:[#allocation2 + $0x2a0] sm:$0xff] %v3850
        %4107 = vst [vmem:[#allocation2 + $0x2a8] sm:$0xff] %v3851
        %4108 = vst [vmem:[#allocation2 + $0x2b0] sm:$0xff] %v3852
        %4109 = vst [vmem:[#allocation2 + $0x2b8] sm:$0xff] %v3853
        %4110 = vst [vmem:[#allocation2 + $0x2c0] sm:$0xff] %v3854
        %4111 = vst [vmem:[#allocation2 + $0x2c8] sm:$0xff] %v3855
        %4112 = vst [vmem:[#allocation2 + $0x2d0] sm:$0xff] %v3856
        %4113 = vst [vmem:[#allocation2 + $0x2d8] sm:$0xff] %v3857
        %4114 = vst [vmem:[#allocation2 + $0x2e0] sm:$0xff] %v3858
        %4115 = vst [vmem:[#allocation2 + $0x2e8] sm:$0xff] %v3859
        %4116 = vst [vmem:[#allocation2 + $0x2f0] sm:$0xff] %v3860
        %4117 = vst [vmem:[#allocation2 + $0x2f8] sm:$0xff] %v3861
        %4118 = vst [vmem:[#allocation2 + $0x300] sm:$0xff] %v3862
        %4119 = vst [vmem:[#allocation2 + $0x308] sm:$0xff] %v3863
        %4120 = vst [vmem:[#allocation2 + $0x310] sm:$0xff] %v3864
        %4121 = vst [vmem:[#allocation2 + $0x318] sm:$0xff] %v3865
        %4122 = vst [vmem:[#allocation2 + $0x320] sm:$0xff] %v3866
        %4123 = vst [vmem:[#allocation2 + $0x328] sm:$0xff] %v3867
        %4124 = vst [vmem:[#allocation2 + $0x330] sm:$0xff] %v3868
        %4125 = vst [vmem:[#allocation2 + $0x338] sm:$0xff] %v3869
        %4126 = vst [vmem:[#allocation2 + $0x340] sm:$0xff] %v3870
        %4127 = vst [vmem:[#allocation2 + $0x348] sm:$0xff] %v3871
        %4128 = vst [vmem:[#allocation2 + $0x350] sm:$0xff] %v3872
        %4129 = vst [vmem:[#allocation2 + $0x358] sm:$0xff] %v3873
        %4130 = vst [vmem:[#allocation2 + $0x360] sm:$0xff] %v3874
        %4131 = vst [vmem:[#allocation2 + $0x368] sm:$0xff] %v3875
        %4132 = vst [vmem:[#allocation2 + $0x370] sm:$0xff] %v3876
        %4133 = vst [vmem:[#allocation2 + $0x378] sm:$0xff] %v3877
        %4134 = vst [vmem:[#allocation2 + $0x380] sm:$0xff] %v3878
        %4135 = vst [vmem:[#allocation2 + $0x388] sm:$0xff] %v3879
        %4136 = vst [vmem:[#allocation2 + $0x390] sm:$0xff] %v3880
        %4137 = vst [vmem:[#allocation2 + $0x398] sm:$0xff] %v3881
        %4138 = vst [vmem:[#allocation2 + $0x3a0] sm:$0xff] %v3882
        %4139 = vst [vmem:[#allocation2 + $0x3a8] sm:$0xff] %v3883
        %4140 = vst [vmem:[#allocation2 + $0x3b0] sm:$0xff] %v3884
        %4141 = vst [vmem:[#allocation2 + $0x3b8] sm:$0xff] %v3885
        %4142 = vst [vmem:[#allocation2 + $0x3c0] sm:$0xff] %v3886
        %4143 = vst [vmem:[#allocation2 + $0x3c8] sm:$0xff] %v3887
        %4144 = vst [vmem:[#allocation2 + $0x3d0] sm:$0xff] %v3888
        %4145 = vst [vmem:[#allocation2 + $0x3d8] sm:$0xff] %v3889
        %4146 = vst [vmem:[#allocation2 + $0x3e0] sm:$0xff] %v3890
        %4147 = vst [vmem:[#allocation2 + $0x3e8] sm:$0xff] %v3891
        %4148 = vst [vmem:[#allocation2 + $0x3f0] sm:$0xff] %v3892
        %4149 = vst [vmem:[#allocation2 + $0x3f8] sm:$0xff] %v3893
        %4150 = vst [vmem:[#allocation2 + $0x400] sm:$0xff] %v3894
        %4151 = vst [vmem:[#allocation2 + $0x408] sm:$0xff] %v3895
        %4152 = vst [vmem:[#allocation2 + $0x410] sm:$0xff] %v3896
        %4153 = vst [vmem:[#allocation2 + $0x418] sm:$0xff] %v3897
        %4154 = vst [vmem:[#allocation2 + $0x420] sm:$0xff] %v3898
        %4155 = vst [vmem:[#allocation2 + $0x428] sm:$0xff] %v3899
        %4156 = vst [vmem:[#allocation2 + $0x430] sm:$0xff] %v3900
        %4157 = vst [vmem:[#allocation2 + $0x438] sm:$0xff] %v3901
        %4158 = vst [vmem:[#allocation2 + $0x440] sm:$0xff] %v3902
        %4159 = vst [vmem:[#allocation2 + $0x448] sm:$0xff] %v3903
        %4160 = vst [vmem:[#allocation2 + $0x450] sm:$0xff] %v3904
        %4161 = vst [vmem:[#allocation2 + $0x458] sm:$0xff] %v3905
        %4162 = vst [vmem:[#allocation2 + $0x460] sm:$0xff] %v3906
        %4163 = vst [vmem:[#allocation2 + $0x468] sm:$0xff] %v3907
        %4164 = vst [vmem:[#allocation2 + $0x470] sm:$0xff] %v3908
        %4165 = vst [vmem:[#allocation2 + $0x478] sm:$0xff] %v3909
        %4166 = vst [vmem:[#allocation2 + $0x480] sm:$0xff] %v3910
        %4167 = vst [vmem:[#allocation2 + $0x488] sm:$0xff] %v3911
        %4168 = vst [vmem:[#allocation2 + $0x490] sm:$0xff] %v3912
        %4169 = vst [vmem:[#allocation2 + $0x498] sm:$0xff] %v3913
        %4170 = vst [vmem:[#allocation2 + $0x4a0] sm:$0xff] %v3914
        %4171 = vst [vmem:[#allocation2 + $0x4a8] sm:$0xff] %v3915
        %4172 = vst [vmem:[#allocation2 + $0x4b0] sm:$0xff] %v3916
        %4173 = vst [vmem:[#allocation2 + $0x4b8] sm:$0xff] %v3917
        %4174 = vst [vmem:[#allocation2 + $0x4c0] sm:$0xff] %v3918
        %4175 = vst [vmem:[#allocation2 + $0x4c8] sm:$0xff] %v3919
        %4176 = vst [vmem:[#allocation2 + $0x4d0] sm:$0xff] %v3920
        %4177 = vst [vmem:[#allocation2 + $0x4d8] sm:$0xff] %v3921
        %4178 = vst [vmem:[#allocation2 + $0x4e0] sm:$0xff] %v3922
        %4179 = vst [vmem:[#allocation2 + $0x4e8] sm:$0xff] %v3923
        %4180 = vst [vmem:[#allocation2 + $0x4f0] sm:$0xff] %v3924
        %4181 = vst [vmem:[#allocation2 + $0x4f8] sm:$0xff] %v3925
        %4182 = vst [vmem:[#allocation2 + $0x500] sm:$0xff] %v3926
        %4183 = vst [vmem:[#allocation2 + $0x508] sm:$0xff] %v3927
        %4184 = vst [vmem:[#allocation2 + $0x510] sm:$0xff] %v3928
        %4185 = vst [vmem:[#allocation2 + $0x518] sm:$0xff] %v3929
        %4186 = vst [vmem:[#allocation2 + $0x520] sm:$0xff] %v3930
        %4187 = vst [vmem:[#allocation2 + $0x528] sm:$0xff] %v3931
        %4188 = vst [vmem:[#allocation2 + $0x530] sm:$0xff] %v3932
        %4189 = vst [vmem:[#allocation2 + $0x538] sm:$0xff] %v3933
        %4190 = vst [vmem:[#allocation2 + $0x540] sm:$0xff] %v3934
        %4191 = vst [vmem:[#allocation2 + $0x548] sm:$0xff] %v3935
        %4192 = vst [vmem:[#allocation2 + $0x550] sm:$0xff] %v3936
        %4193 = vst [vmem:[#allocation2 + $0x558] sm:$0xff] %v3937
        %4194 = vst [vmem:[#allocation2 + $0x560] sm:$0xff] %v3938
        %4195 = vst [vmem:[#allocation2 + $0x568] sm:$0xff] %v3939
        %4196 = vst [vmem:[#allocation2 + $0x570] sm:$0xff] %v3940
        %4197 = vst [vmem:[#allocation2 + $0x578] sm:$0xff] %v3941
        %4198 = vst [vmem:[#allocation2 + $0x580] sm:$0xff] %v3942
        %4199 = vst [vmem:[#allocation2 + $0x588] sm:$0xff] %v3943
        %4200 = vst [vmem:[#allocation2 + $0x590] sm:$0xff] %v3944
        %4201 = vst [vmem:[#allocation2 + $0x598] sm:$0xff] %v3945
        %4202 = vst [vmem:[#allocation2 + $0x5a0] sm:$0xff] %v3946
        %4203 = vst [vmem:[#allocation2 + $0x5a8] sm:$0xff] %v3947
        %4204 = vst [vmem:[#allocation2 + $0x5b0] sm:$0xff] %v3948
        %4205 = vst [vmem:[#allocation2 + $0x5b8] sm:$0xff] %v3949
        %4206 = vst [vmem:[#allocation2 + $0x5c0] sm:$0xff] %v3950
        %4207 = vst [vmem:[#allocation2 + $0x5c8] sm:$0xff] %v3951
        %4208 = vst [vmem:[#allocation2 + $0x5d0] sm:$0xff] %v3952
        %4209 = vst [vmem:[#allocation2 + $0x5d8] sm:$0xff] %v3953
        %4210 = vst [vmem:[#allocation2 + $0x5e0] sm:$0xff] %v3954
        %4211 = vst [vmem:[#allocation2 + $0x5e8] sm:$0xff] %v3955
        %4212 = vst [vmem:[#allocation2 + $0x5f0] sm:$0xff] %v3956
        %4213 = vst [vmem:[#allocation2 + $0x5f8] sm:$0xff] %v3957
        %4214 = vst [vmem:[#allocation2 + $0x600] sm:$0xff] %v3958
        %4215 = vst [vmem:[#allocation2 + $0x608] sm:$0xff] %v3959
        %4216 = vst [vmem:[#allocation2 + $0x610] sm:$0xff] %v3960
        %4217 = vst [vmem:[#allocation2 + $0x618] sm:$0xff] %v3961
        %4218 = vst [vmem:[#allocation2 + $0x620] sm:$0xff] %v3962
        %4219 = vst [vmem:[#allocation2 + $0x628] sm:$0xff] %v3963
        %4220 = vst [vmem:[#allocation2 + $0x630] sm:$0xff] %v3964
        %4221 = vst [vmem:[#allocation2 + $0x638] sm:$0xff] %v3965
        %4222 = vst [vmem:[#allocation2 + $0x640] sm:$0xff] %v3966
        %4223 = vst [vmem:[#allocation2 + $0x648] sm:$0xff] %v3967
        %4224 = vst [vmem:[#allocation2 + $0x650] sm:$0xff] %v3968
        %4225 = vst [vmem:[#allocation2 + $0x658] sm:$0xff] %v3969
        %4226 = vst [vmem:[#allocation2 + $0x660] sm:$0xff] %v3970
        %4227 = vst [vmem:[#allocation2 + $0x668] sm:$0xff] %v3971
        %4228 = vst [vmem:[#allocation2 + $0x670] sm:$0xff] %v3972
        %4229 = vst [vmem:[#allocation2 + $0x678] sm:$0xff] %v3973
        %4230 = vst [vmem:[#allocation2 + $0x680] sm:$0xff] %v3974
        %4231 = vst [vmem:[#allocation2 + $0x688] sm:$0xff] %v3975
        %4232 = vst [vmem:[#allocation2 + $0x690] sm:$0xff] %v3976
        %4233 = vst [vmem:[#allocation2 + $0x698] sm:$0xff] %v3977
        %4234 = vst [vmem:[#allocation2 + $0x6a0] sm:$0xff] %v3978
        %4235 = vst [vmem:[#allocation2 + $0x6a8] sm:$0xff] %v3979
        %4236 = vst [vmem:[#allocation2 + $0x6b0] sm:$0xff] %v3980
        %4237 = vst [vmem:[#allocation2 + $0x6b8] sm:$0xff] %v3981
        %4238 = vst [vmem:[#allocation2 + $0x6c0] sm:$0xff] %v3982
        %4239 = vst [vmem:[#allocation2 + $0x6c8] sm:$0xff] %v3983
        %4240 = vst [vmem:[#allocation2 + $0x6d0] sm:$0xff] %v3984
        %4241 = vst [vmem:[#allocation2 + $0x6d8] sm:$0xff] %v3985
        %4242 = vst [vmem:[#allocation2 + $0x6e0] sm:$0xff] %v3986
        %4243 = vst [vmem:[#allocation2 + $0x6e8] sm:$0xff] %v3987
        %4244 = vst [vmem:[#allocation2 + $0x6f0] sm:$0xff] %v3988
        %4245 = vst [vmem:[#allocation2 + $0x6f8] sm:$0xff] %v3989
        %4246 = vst [vmem:[#allocation2 + $0x700] sm:$0xff] %v3990
        %4247 = vst [vmem:[#allocation2 + $0x708] sm:$0xff] %v3991
        %4248 = vst [vmem:[#allocation2 + $0x710] sm:$0xff] %v3992
        %4249 = vst [vmem:[#allocation2 + $0x718] sm:$0xff] %v3993
        %4250 = vst [vmem:[#allocation2 + $0x720] sm:$0xff] %v3994
        %4251 = vst [vmem:[#allocation2 + $0x728] sm:$0xff] %v3995
        %4252 = vst [vmem:[#allocation2 + $0x730] sm:$0xff] %v3996
        %4253 = vst [vmem:[#allocation2 + $0x738] sm:$0xff] %v3997
        %4254 = vst [vmem:[#allocation2 + $0x740] sm:$0xff] %v3998
        %4255 = vst [vmem:[#allocation2 + $0x748] sm:$0xff] %v3999
        %4256 = vst [vmem:[#allocation2 + $0x750] sm:$0xff] %v4000
        %4257 = vst [vmem:[#allocation2 + $0x758] sm:$0xff] %v4001
        %4258 = vst [vmem:[#allocation2 + $0x760] sm:$0xff] %v4002
        %4259 = vst [vmem:[#allocation2 + $0x768] sm:$0xff] %v4003
        %4260 = vst [vmem:[#allocation2 + $0x770] sm:$0xff] %v4004
        %4261 = vst [vmem:[#allocation2 + $0x778] sm:$0xff] %v4005
        %4262 = vst [vmem:[#allocation2 + $0x780] sm:$0xff] %v4006
        %4263 = vst [vmem:[#allocation2 + $0x788] sm:$0xff] %v4007
        %4264 = vst [vmem:[#allocation2 + $0x790] sm:$0xff] %v4008
        %4265 = vst [vmem:[#allocation2 + $0x798] sm:$0xff] %v4009
        %4266 = vst [vmem:[#allocation2 + $0x7a0] sm:$0xff] %v4010
        %4267 = vst [vmem:[#allocation2 + $0x7a8] sm:$0xff] %v4011
        %4268 = vst [vmem:[#allocation2 + $0x7b0] sm:$0xff] %v4012
        %4269 = vst [vmem:[#allocation2 + $0x7b8] sm:$0xff] %v4013
        %4270 = vst [vmem:[#allocation2 + $0x7c0] sm:$0xff] %v4014
        %4271 = vst [vmem:[#allocation2 + $0x7c8] sm:$0xff] %v4015
        %4272 = vst [vmem:[#allocation2 + $0x7d0] sm:$0xff] %v4016
        %4273 = vst [vmem:[#allocation2 + $0x7d8] sm:$0xff] %v4017
        %4274 = vst [vmem:[#allocation2 + $0x7e0] sm:$0xff] %v4018
        %4275 = vst [vmem:[#allocation2 + $0x7e8] sm:$0xff] %v4019
        %4276 = vst [vmem:[#allocation2 + $0x7f0] sm:$0xff] %v4020
        %4277 = vst [vmem:[#allocation2 + $0x7f8] sm:$0xff] %v4021
        // Predicated region
        $region49: #{tpu_custom_call.1} parent=31 // pred_check
          %p4278 = pneg %p302
        $region50: #{tpu_custom_call.1} parent=31 // pred_check_branch
          %4280 = sbr.rel (%p4278) target = $region52
        $region51: #{tpu_custom_call.1} parent=31 // pred_region
          %v4281 = vld [vmem:[#allocation2] sm:$0xff]
          %v4282 = vld [vmem:[#allocation2 + $0x8] sm:$0xff]
          %v4283 = vld [vmem:[#allocation2 + $0x10] sm:$0xff]
          %v4284 = vld [vmem:[#allocation2 + $0x18] sm:$0xff]
          %v4285 = vld [vmem:[#allocation2 + $0x20] sm:$0xff]
          %v4286 = vld [vmem:[#allocation2 + $0x28] sm:$0xff]
          %v4287 = vld [vmem:[#allocation2 + $0x30] sm:$0xff]
          %v4288 = vld [vmem:[#allocation2 + $0x38] sm:$0xff]
          %v4289 = vld [vmem:[#allocation2 + $0x40] sm:$0xff]
          %v4290 = vld [vmem:[#allocation2 + $0x48] sm:$0xff]
          %v4291 = vld [vmem:[#allocation2 + $0x50] sm:$0xff]
          %v4292 = vld [vmem:[#allocation2 + $0x58] sm:$0xff]
          %v4293 = vld [vmem:[#allocation2 + $0x60] sm:$0xff]
          %v4294 = vld [vmem:[#allocation2 + $0x68] sm:$0xff]
          %v4295 = vld [vmem:[#allocation2 + $0x70] sm:$0xff]
          %v4296 = vld [vmem:[#allocation2 + $0x78] sm:$0xff]
          %v4297 = vld [vmem:[#allocation2 + $0x80] sm:$0xff]
          %v4298 = vld [vmem:[#allocation2 + $0x88] sm:$0xff]
          %v4299 = vld [vmem:[#allocation2 + $0x90] sm:$0xff]
          %v4300 = vld [vmem:[#allocation2 + $0x98] sm:$0xff]
          %v4301 = vld [vmem:[#allocation2 + $0xa0] sm:$0xff]
          %v4302 = vld [vmem:[#allocation2 + $0xa8] sm:$0xff]
          %v4303 = vld [vmem:[#allocation2 + $0xb0] sm:$0xff]
          %v4304 = vld [vmem:[#allocation2 + $0xb8] sm:$0xff]
          %v4305 = vld [vmem:[#allocation2 + $0xc0] sm:$0xff]
          %v4306 = vld [vmem:[#allocation2 + $0xc8] sm:$0xff]
          %v4307 = vld [vmem:[#allocation2 + $0xd0] sm:$0xff]
          %v4308 = vld [vmem:[#allocation2 + $0xd8] sm:$0xff]
          %v4309 = vld [vmem:[#allocation2 + $0xe0] sm:$0xff]
          %v4310 = vld [vmem:[#allocation2 + $0xe8] sm:$0xff]
          %v4311 = vld [vmem:[#allocation2 + $0xf0] sm:$0xff]
          %v4312 = vld [vmem:[#allocation2 + $0xf8] sm:$0xff]
          %v4313 = vld [vmem:[#allocation2 + $0x100] sm:$0xff]
          %v4314 = vld [vmem:[#allocation2 + $0x108] sm:$0xff]
          %v4315 = vld [vmem:[#allocation2 + $0x110] sm:$0xff]
          %v4316 = vld [vmem:[#allocation2 + $0x118] sm:$0xff]
          %v4317 = vld [vmem:[#allocation2 + $0x120] sm:$0xff]
          %v4318 = vld [vmem:[#allocation2 + $0x128] sm:$0xff]
          %v4319 = vld [vmem:[#allocation2 + $0x130] sm:$0xff]
          %v4320 = vld [vmem:[#allocation2 + $0x138] sm:$0xff]
          %v4321 = vld [vmem:[#allocation2 + $0x140] sm:$0xff]
          %v4322 = vld [vmem:[#allocation2 + $0x148] sm:$0xff]
          %v4323 = vld [vmem:[#allocation2 + $0x150] sm:$0xff]
          %v4324 = vld [vmem:[#allocation2 + $0x158] sm:$0xff]
          %v4325 = vld [vmem:[#allocation2 + $0x160] sm:$0xff]
          %v4326 = vld [vmem:[#allocation2 + $0x168] sm:$0xff]
          %v4327 = vld [vmem:[#allocation2 + $0x170] sm:$0xff]
          %v4328 = vld [vmem:[#allocation2 + $0x178] sm:$0xff]
          %v4329 = vld [vmem:[#allocation2 + $0x180] sm:$0xff]
          %v4330 = vld [vmem:[#allocation2 + $0x188] sm:$0xff]
          %v4331 = vld [vmem:[#allocation2 + $0x190] sm:$0xff]
          %v4332 = vld [vmem:[#allocation2 + $0x198] sm:$0xff]
          %v4333 = vld [vmem:[#allocation2 + $0x1a0] sm:$0xff]
          %v4334 = vld [vmem:[#allocation2 + $0x1a8] sm:$0xff]
          %v4335 = vld [vmem:[#allocation2 + $0x1b0] sm:$0xff]
          %v4336 = vld [vmem:[#allocation2 + $0x1b8] sm:$0xff]
          %v4337 = vld [vmem:[#allocation2 + $0x1c0] sm:$0xff]
          %v4338 = vld [vmem:[#allocation2 + $0x1c8] sm:$0xff]
          %v4339 = vld [vmem:[#allocation2 + $0x1d0] sm:$0xff]
          %v4340 = vld [vmem:[#allocation2 + $0x1d8] sm:$0xff]
          %v4341 = vld [vmem:[#allocation2 + $0x1e0] sm:$0xff]
          %v4342 = vld [vmem:[#allocation2 + $0x1e8] sm:$0xff]
          %v4343 = vld [vmem:[#allocation2 + $0x1f0] sm:$0xff]
          %v4344 = vld [vmem:[#allocation2 + $0x1f8] sm:$0xff]
          %v4345 = vld [vmem:[#allocation2 + $0x200] sm:$0xff]
          %v4346 = vld [vmem:[#allocation2 + $0x208] sm:$0xff]
          %v4347 = vld [vmem:[#allocation2 + $0x210] sm:$0xff]
          %v4348 = vld [vmem:[#allocation2 + $0x218] sm:$0xff]
          %v4349 = vld [vmem:[#allocation2 + $0x220] sm:$0xff]
          %v4350 = vld [vmem:[#allocation2 + $0x228] sm:$0xff]
          %v4351 = vld [vmem:[#allocation2 + $0x230] sm:$0xff]
          %v4352 = vld [vmem:[#allocation2 + $0x238] sm:$0xff]
          %v4353 = vld [vmem:[#allocation2 + $0x240] sm:$0xff]
          %v4354 = vld [vmem:[#allocation2 + $0x248] sm:$0xff]
          %v4355 = vld [vmem:[#allocation2 + $0x250] sm:$0xff]
          %v4356 = vld [vmem:[#allocation2 + $0x258] sm:$0xff]
          %v4357 = vld [vmem:[#allocation2 + $0x260] sm:$0xff]
          %v4358 = vld [vmem:[#allocation2 + $0x268] sm:$0xff]
          %v4359 = vld [vmem:[#allocation2 + $0x270] sm:$0xff]
          %v4360 = vld [vmem:[#allocation2 + $0x278] sm:$0xff]
          %v4361 = vld [vmem:[#allocation2 + $0x280] sm:$0xff]
          %v4362 = vld [vmem:[#allocation2 + $0x288] sm:$0xff]
          %v4363 = vld [vmem:[#allocation2 + $0x290] sm:$0xff]
          %v4364 = vld [vmem:[#allocation2 + $0x298] sm:$0xff]
          %v4365 = vld [vmem:[#allocation2 + $0x2a0] sm:$0xff]
          %v4366 = vld [vmem:[#allocation2 + $0x2a8] sm:$0xff]
          %v4367 = vld [vmem:[#allocation2 + $0x2b0] sm:$0xff]
          %v4368 = vld [vmem:[#allocation2 + $0x2b8] sm:$0xff]
          %v4369 = vld [vmem:[#allocation2 + $0x2c0] sm:$0xff]
          %v4370 = vld [vmem:[#allocation2 + $0x2c8] sm:$0xff]
          %v4371 = vld [vmem:[#allocation2 + $0x2d0] sm:$0xff]
          %v4372 = vld [vmem:[#allocation2 + $0x2d8] sm:$0xff]
          %v4373 = vld [vmem:[#allocation2 + $0x2e0] sm:$0xff]
          %v4374 = vld [vmem:[#allocation2 + $0x2e8] sm:$0xff]
          %v4375 = vld [vmem:[#allocation2 + $0x2f0] sm:$0xff]
          %v4376 = vld [vmem:[#allocation2 + $0x2f8] sm:$0xff]
          %v4377 = vld [vmem:[#allocation2 + $0x300] sm:$0xff]
          %v4378 = vld [vmem:[#allocation2 + $0x308] sm:$0xff]
          %v4379 = vld [vmem:[#allocation2 + $0x310] sm:$0xff]
          %v4380 = vld [vmem:[#allocation2 + $0x318] sm:$0xff]
          %v4381 = vld [vmem:[#allocation2 + $0x320] sm:$0xff]
          %v4382 = vld [vmem:[#allocation2 + $0x328] sm:$0xff]
          %v4383 = vld [vmem:[#allocation2 + $0x330] sm:$0xff]
          %v4384 = vld [vmem:[#allocation2 + $0x338] sm:$0xff]
          %v4385 = vld [vmem:[#allocation2 + $0x340] sm:$0xff]
          %v4386 = vld [vmem:[#allocation2 + $0x348] sm:$0xff]
          %v4387 = vld [vmem:[#allocation2 + $0x350] sm:$0xff]
          %v4388 = vld [vmem:[#allocation2 + $0x358] sm:$0xff]
          %v4389 = vld [vmem:[#allocation2 + $0x360] sm:$0xff]
          %v4390 = vld [vmem:[#allocation2 + $0x368] sm:$0xff]
          %v4391 = vld [vmem:[#allocation2 + $0x370] sm:$0xff]
          %v4392 = vld [vmem:[#allocation2 + $0x378] sm:$0xff]
          %v4393 = vld [vmem:[#allocation2 + $0x380] sm:$0xff]
          %v4394 = vld [vmem:[#allocation2 + $0x388] sm:$0xff]
          %v4395 = vld [vmem:[#allocation2 + $0x390] sm:$0xff]
          %v4396 = vld [vmem:[#allocation2 + $0x398] sm:$0xff]
          %v4397 = vld [vmem:[#allocation2 + $0x3a0] sm:$0xff]
          %v4398 = vld [vmem:[#allocation2 + $0x3a8] sm:$0xff]
          %v4399 = vld [vmem:[#allocation2 + $0x3b0] sm:$0xff]
          %v4400 = vld [vmem:[#allocation2 + $0x3b8] sm:$0xff]
          %v4401 = vld [vmem:[#allocation2 + $0x3c0] sm:$0xff]
          %v4402 = vld [vmem:[#allocation2 + $0x3c8] sm:$0xff]
          %v4403 = vld [vmem:[#allocation2 + $0x3d0] sm:$0xff]
          %v4404 = vld [vmem:[#allocation2 + $0x3d8] sm:$0xff]
          %v4405 = vld [vmem:[#allocation2 + $0x3e0] sm:$0xff]
          %v4406 = vld [vmem:[#allocation2 + $0x3e8] sm:$0xff]
          %v4407 = vld [vmem:[#allocation2 + $0x3f0] sm:$0xff]
          %v4408 = vld [vmem:[#allocation2 + $0x3f8] sm:$0xff]
          %v4409 = vld [vmem:[#allocation2 + $0x400] sm:$0xff]
          %v4410 = vld [vmem:[#allocation2 + $0x408] sm:$0xff]
          %v4411 = vld [vmem:[#allocation2 + $0x410] sm:$0xff]
          %v4412 = vld [vmem:[#allocation2 + $0x418] sm:$0xff]
          %v4413 = vld [vmem:[#allocation2 + $0x420] sm:$0xff]
          %v4414 = vld [vmem:[#allocation2 + $0x428] sm:$0xff]
          %v4415 = vld [vmem:[#allocation2 + $0x430] sm:$0xff]
          %v4416 = vld [vmem:[#allocation2 + $0x438] sm:$0xff]
          %v4417 = vld [vmem:[#allocation2 + $0x440] sm:$0xff]
          %v4418 = vld [vmem:[#allocation2 + $0x448] sm:$0xff]
          %v4419 = vld [vmem:[#allocation2 + $0x450] sm:$0xff]
          %v4420 = vld [vmem:[#allocation2 + $0x458] sm:$0xff]
          %v4421 = vld [vmem:[#allocation2 + $0x460] sm:$0xff]
          %v4422 = vld [vmem:[#allocation2 + $0x468] sm:$0xff]
          %v4423 = vld [vmem:[#allocation2 + $0x470] sm:$0xff]
          %v4424 = vld [vmem:[#allocation2 + $0x478] sm:$0xff]
          %v4425 = vld [vmem:[#allocation2 + $0x480] sm:$0xff]
          %v4426 = vld [vmem:[#allocation2 + $0x488] sm:$0xff]
          %v4427 = vld [vmem:[#allocation2 + $0x490] sm:$0xff]
          %v4428 = vld [vmem:[#allocation2 + $0x498] sm:$0xff]
          %v4429 = vld [vmem:[#allocation2 + $0x4a0] sm:$0xff]
          %v4430 = vld [vmem:[#allocation2 + $0x4a8] sm:$0xff]
          %v4431 = vld [vmem:[#allocation2 + $0x4b0] sm:$0xff]
          %v4432 = vld [vmem:[#allocation2 + $0x4b8] sm:$0xff]
          %v4433 = vld [vmem:[#allocation2 + $0x4c0] sm:$0xff]
          %v4434 = vld [vmem:[#allocation2 + $0x4c8] sm:$0xff]
          %v4435 = vld [vmem:[#allocation2 + $0x4d0] sm:$0xff]
          %v4436 = vld [vmem:[#allocation2 + $0x4d8] sm:$0xff]
          %v4437 = vld [vmem:[#allocation2 + $0x4e0] sm:$0xff]
          %v4438 = vld [vmem:[#allocation2 + $0x4e8] sm:$0xff]
          %v4439 = vld [vmem:[#allocation2 + $0x4f0] sm:$0xff]
          %v4440 = vld [vmem:[#allocation2 + $0x4f8] sm:$0xff]
          %v4441 = vld [vmem:[#allocation2 + $0x500] sm:$0xff]
          %v4442 = vld [vmem:[#allocation2 + $0x508] sm:$0xff]
          %v4443 = vld [vmem:[#allocation2 + $0x510] sm:$0xff]
          %v4444 = vld [vmem:[#allocation2 + $0x518] sm:$0xff]
          %v4445 = vld [vmem:[#allocation2 + $0x520] sm:$0xff]
          %v4446 = vld [vmem:[#allocation2 + $0x528] sm:$0xff]
          %v4447 = vld [vmem:[#allocation2 + $0x530] sm:$0xff]
          %v4448 = vld [vmem:[#allocation2 + $0x538] sm:$0xff]
          %v4449 = vld [vmem:[#allocation2 + $0x540] sm:$0xff]
          %v4450 = vld [vmem:[#allocation2 + $0x548] sm:$0xff]
          %v4451 = vld [vmem:[#allocation2 + $0x550] sm:$0xff]
          %v4452 = vld [vmem:[#allocation2 + $0x558] sm:$0xff]
          %v4453 = vld [vmem:[#allocation2 + $0x560] sm:$0xff]
          %v4454 = vld [vmem:[#allocation2 + $0x568] sm:$0xff]
          %v4455 = vld [vmem:[#allocation2 + $0x570] sm:$0xff]
          %v4456 = vld [vmem:[#allocation2 + $0x578] sm:$0xff]
          %v4457 = vld [vmem:[#allocation2 + $0x580] sm:$0xff]
          %v4458 = vld [vmem:[#allocation2 + $0x588] sm:$0xff]
          %v4459 = vld [vmem:[#allocation2 + $0x590] sm:$0xff]
          %v4460 = vld [vmem:[#allocation2 + $0x598] sm:$0xff]
          %v4461 = vld [vmem:[#allocation2 + $0x5a0] sm:$0xff]
          %v4462 = vld [vmem:[#allocation2 + $0x5a8] sm:$0xff]
          %v4463 = vld [vmem:[#allocation2 + $0x5b0] sm:$0xff]
          %v4464 = vld [vmem:[#allocation2 + $0x5b8] sm:$0xff]
          %v4465 = vld [vmem:[#allocation2 + $0x5c0] sm:$0xff]
          %v4466 = vld [vmem:[#allocation2 + $0x5c8] sm:$0xff]
          %v4467 = vld [vmem:[#allocation2 + $0x5d0] sm:$0xff]
          %v4468 = vld [vmem:[#allocation2 + $0x5d8] sm:$0xff]
          %v4469 = vld [vmem:[#allocation2 + $0x5e0] sm:$0xff]
          %v4470 = vld [vmem:[#allocation2 + $0x5e8] sm:$0xff]
          %v4471 = vld [vmem:[#allocation2 + $0x5f0] sm:$0xff]
          %v4472 = vld [vmem:[#allocation2 + $0x5f8] sm:$0xff]
          %v4473 = vld [vmem:[#allocation2 + $0x600] sm:$0xff]
          %v4474 = vld [vmem:[#allocation2 + $0x608] sm:$0xff]
          %v4475 = vld [vmem:[#allocation2 + $0x610] sm:$0xff]
          %v4476 = vld [vmem:[#allocation2 + $0x618] sm:$0xff]
          %v4477 = vld [vmem:[#allocation2 + $0x620] sm:$0xff]
          %v4478 = vld [vmem:[#allocation2 + $0x628] sm:$0xff]
          %v4479 = vld [vmem:[#allocation2 + $0x630] sm:$0xff]
          %v4480 = vld [vmem:[#allocation2 + $0x638] sm:$0xff]
          %v4481 = vld [vmem:[#allocation2 + $0x640] sm:$0xff]
          %v4482 = vld [vmem:[#allocation2 + $0x648] sm:$0xff]
          %v4483 = vld [vmem:[#allocation2 + $0x650] sm:$0xff]
          %v4484 = vld [vmem:[#allocation2 + $0x658] sm:$0xff]
          %v4485 = vld [vmem:[#allocation2 + $0x660] sm:$0xff]
          %v4486 = vld [vmem:[#allocation2 + $0x668] sm:$0xff]
          %v4487 = vld [vmem:[#allocation2 + $0x670] sm:$0xff]
          %v4488 = vld [vmem:[#allocation2 + $0x678] sm:$0xff]
          %v4489 = vld [vmem:[#allocation2 + $0x680] sm:$0xff]
          %v4490 = vld [vmem:[#allocation2 + $0x688] sm:$0xff]
          %v4491 = vld [vmem:[#allocation2 + $0x690] sm:$0xff]
          %v4492 = vld [vmem:[#allocation2 + $0x698] sm:$0xff]
          %v4493 = vld [vmem:[#allocation2 + $0x6a0] sm:$0xff]
          %v4494 = vld [vmem:[#allocation2 + $0x6a8] sm:$0xff]
          %v4495 = vld [vmem:[#allocation2 + $0x6b0] sm:$0xff]
          %v4496 = vld [vmem:[#allocation2 + $0x6b8] sm:$0xff]
          %v4497 = vld [vmem:[#allocation2 + $0x6c0] sm:$0xff]
          %v4498 = vld [vmem:[#allocation2 + $0x6c8] sm:$0xff]
          %v4499 = vld [vmem:[#allocation2 + $0x6d0] sm:$0xff]
          %v4500 = vld [vmem:[#allocation2 + $0x6d8] sm:$0xff]
          %v4501 = vld [vmem:[#allocation2 + $0x6e0] sm:$0xff]
          %v4502 = vld [vmem:[#allocation2 + $0x6e8] sm:$0xff]
          %v4503 = vld [vmem:[#allocation2 + $0x6f0] sm:$0xff]
          %v4504 = vld [vmem:[#allocation2 + $0x6f8] sm:$0xff]
          %v4505 = vld [vmem:[#allocation2 + $0x700] sm:$0xff]
          %v4506 = vld [vmem:[#allocation2 + $0x708] sm:$0xff]
          %v4507 = vld [vmem:[#allocation2 + $0x710] sm:$0xff]
          %v4508 = vld [vmem:[#allocation2 + $0x718] sm:$0xff]
          %v4509 = vld [vmem:[#allocation2 + $0x720] sm:$0xff]
          %v4510 = vld [vmem:[#allocation2 + $0x728] sm:$0xff]
          %v4511 = vld [vmem:[#allocation2 + $0x730] sm:$0xff]
          %v4512 = vld [vmem:[#allocation2 + $0x738] sm:$0xff]
          %v4513 = vld [vmem:[#allocation2 + $0x740] sm:$0xff]
          %v4514 = vld [vmem:[#allocation2 + $0x748] sm:$0xff]
          %v4515 = vld [vmem:[#allocation2 + $0x750] sm:$0xff]
          %v4516 = vld [vmem:[#allocation2 + $0x758] sm:$0xff]
          %v4517 = vld [vmem:[#allocation2 + $0x760] sm:$0xff]
          %v4518 = vld [vmem:[#allocation2 + $0x768] sm:$0xff]
          %v4519 = vld [vmem:[#allocation2 + $0x770] sm:$0xff]
          %v4520 = vld [vmem:[#allocation2 + $0x778] sm:$0xff]
          %v4521 = vld [vmem:[#allocation2 + $0x780] sm:$0xff]
          %v4522 = vld [vmem:[#allocation2 + $0x788] sm:$0xff]
          %v4523 = vld [vmem:[#allocation2 + $0x790] sm:$0xff]
          %v4524 = vld [vmem:[#allocation2 + $0x798] sm:$0xff]
          %v4525 = vld [vmem:[#allocation2 + $0x7a0] sm:$0xff]
          %v4526 = vld [vmem:[#allocation2 + $0x7a8] sm:$0xff]
          %v4527 = vld [vmem:[#allocation2 + $0x7b0] sm:$0xff]
          %v4528 = vld [vmem:[#allocation2 + $0x7b8] sm:$0xff]
          %v4529 = vld [vmem:[#allocation2 + $0x7c0] sm:$0xff]
          %v4530 = vld [vmem:[#allocation2 + $0x7c8] sm:$0xff]
          %v4531 = vld [vmem:[#allocation2 + $0x7d0] sm:$0xff]
          %v4532 = vld [vmem:[#allocation2 + $0x7d8] sm:$0xff]
          %v4533 = vld [vmem:[#allocation2 + $0x7e0] sm:$0xff]
          %v4534 = vld [vmem:[#allocation2 + $0x7e8] sm:$0xff]
          %v4535 = vld [vmem:[#allocation2 + $0x7f0] sm:$0xff]
          %v4536 = vld [vmem:[#allocation2 + $0x7f8] sm:$0xff]
          %v4537 = vld [vmem:[%s262] sm:$0xf]
          %v4539 = vlaneseq
          %v4540 = vshrl.u32 %v4539, 7
          %v4541 = vsub.s32 0, %v4540
          %v4542 = vrot.slane %v4537, %v4541
          %v4543 = vlaneseq
          %v4544 = vshrl.u32 %v4543, 7
          %v4545 = vsub.s32 1, %v4544
          %v4546 = vrot.slane %v4537, %v4545
          %v4547 = vlaneseq
          %v4548 = vshrl.u32 %v4547, 7
          %v4549 = vsub.s32 2, %v4548
          %v4550 = vrot.slane %v4537, %v4549
          %v4551 = vlaneseq
          %v4552 = vshrl.u32 %v4551, 7
          %v4553 = vsub.s32 3, %v4552
          %v4554 = vrot.slane %v4537, %v4553
          %v4559 = vadd.f32 %v4281, %v4542
          %v4560 = vadd.f32 %v4282, %v4546
          %v4561 = vadd.f32 %v4283, %v4550
          %v4562 = vadd.f32 %v4284, %v4554
          %v4563 = vadd.f32 %v4285, %v4542
          %v4564 = vadd.f32 %v4286, %v4546
          %v4565 = vadd.f32 %v4287, %v4550
          %v4566 = vadd.f32 %v4288, %v4554
          %v4567 = vadd.f32 %v4289, %v4542
          %v4568 = vadd.f32 %v4290, %v4546
          %v4569 = vadd.f32 %v4291, %v4550
          %v4570 = vadd.f32 %v4292, %v4554
          %v4571 = vadd.f32 %v4293, %v4542
          %v4572 = vadd.f32 %v4294, %v4546
          %v4573 = vadd.f32 %v4295, %v4550
          %v4574 = vadd.f32 %v4296, %v4554
          %v4575 = vadd.f32 %v4297, %v4542
          %v4576 = vadd.f32 %v4298, %v4546
          %v4577 = vadd.f32 %v4299, %v4550
          %v4578 = vadd.f32 %v4300, %v4554
          %v4579 = vadd.f32 %v4301, %v4542
          %v4580 = vadd.f32 %v4302, %v4546
          %v4581 = vadd.f32 %v4303, %v4550
          %v4582 = vadd.f32 %v4304, %v4554
          %v4583 = vadd.f32 %v4305, %v4542
          %v4584 = vadd.f32 %v4306, %v4546
          %v4585 = vadd.f32 %v4307, %v4550
          %v4586 = vadd.f32 %v4308, %v4554
          %v4587 = vadd.f32 %v4309, %v4542
          %v4588 = vadd.f32 %v4310, %v4546
          %v4589 = vadd.f32 %v4311, %v4550
          %v4590 = vadd.f32 %v4312, %v4554
          %v4591 = vadd.f32 %v4313, %v4542
          %v4592 = vadd.f32 %v4314, %v4546
          %v4593 = vadd.f32 %v4315, %v4550
          %v4594 = vadd.f32 %v4316, %v4554
          %v4595 = vadd.f32 %v4317, %v4542
          %v4596 = vadd.f32 %v4318, %v4546
          %v4597 = vadd.f32 %v4319, %v4550
          %v4598 = vadd.f32 %v4320, %v4554
          %v4599 = vadd.f32 %v4321, %v4542
          %v4600 = vadd.f32 %v4322, %v4546
          %v4601 = vadd.f32 %v4323, %v4550
          %v4602 = vadd.f32 %v4324, %v4554
          %v4603 = vadd.f32 %v4325, %v4542
          %v4604 = vadd.f32 %v4326, %v4546
          %v4605 = vadd.f32 %v4327, %v4550
          %v4606 = vadd.f32 %v4328, %v4554
          %v4607 = vadd.f32 %v4329, %v4542
          %v4608 = vadd.f32 %v4330, %v4546
          %v4609 = vadd.f32 %v4331, %v4550
          %v4610 = vadd.f32 %v4332, %v4554
          %v4611 = vadd.f32 %v4333, %v4542
          %v4612 = vadd.f32 %v4334, %v4546
          %v4613 = vadd.f32 %v4335, %v4550
          %v4614 = vadd.f32 %v4336, %v4554
          %v4615 = vadd.f32 %v4337, %v4542
          %v4616 = vadd.f32 %v4338, %v4546
          %v4617 = vadd.f32 %v4339, %v4550
          %v4618 = vadd.f32 %v4340, %v4554
          %v4619 = vadd.f32 %v4341, %v4542
          %v4620 = vadd.f32 %v4342, %v4546
          %v4621 = vadd.f32 %v4343, %v4550
          %v4622 = vadd.f32 %v4344, %v4554
          %v4623 = vadd.f32 %v4345, %v4542
          %v4624 = vadd.f32 %v4346, %v4546
          %v4625 = vadd.f32 %v4347, %v4550
          %v4626 = vadd.f32 %v4348, %v4554
          %v4627 = vadd.f32 %v4349, %v4542
          %v4628 = vadd.f32 %v4350, %v4546
          %v4629 = vadd.f32 %v4351, %v4550
          %v4630 = vadd.f32 %v4352, %v4554
          %v4631 = vadd.f32 %v4353, %v4542
          %v4632 = vadd.f32 %v4354, %v4546
          %v4633 = vadd.f32 %v4355, %v4550
          %v4634 = vadd.f32 %v4356, %v4554
          %v4635 = vadd.f32 %v4357, %v4542
          %v4636 = vadd.f32 %v4358, %v4546
          %v4637 = vadd.f32 %v4359, %v4550
          %v4638 = vadd.f32 %v4360, %v4554
          %v4639 = vadd.f32 %v4361, %v4542
          %v4640 = vadd.f32 %v4362, %v4546
          %v4641 = vadd.f32 %v4363, %v4550
          %v4642 = vadd.f32 %v4364, %v4554
          %v4643 = vadd.f32 %v4365, %v4542
          %v4644 = vadd.f32 %v4366, %v4546
          %v4645 = vadd.f32 %v4367, %v4550
          %v4646 = vadd.f32 %v4368, %v4554
          %v4647 = vadd.f32 %v4369, %v4542
          %v4648 = vadd.f32 %v4370, %v4546
          %v4649 = vadd.f32 %v4371, %v4550
          %v4650 = vadd.f32 %v4372, %v4554
          %v4651 = vadd.f32 %v4373, %v4542
          %v4652 = vadd.f32 %v4374, %v4546
          %v4653 = vadd.f32 %v4375, %v4550
          %v4654 = vadd.f32 %v4376, %v4554
          %v4655 = vadd.f32 %v4377, %v4542
          %v4656 = vadd.f32 %v4378, %v4546
          %v4657 = vadd.f32 %v4379, %v4550
          %v4658 = vadd.f32 %v4380, %v4554
          %v4659 = vadd.f32 %v4381, %v4542
          %v4660 = vadd.f32 %v4382, %v4546
          %v4661 = vadd.f32 %v4383, %v4550
          %v4662 = vadd.f32 %v4384, %v4554
          %v4663 = vadd.f32 %v4385, %v4542
          %v4664 = vadd.f32 %v4386, %v4546
          %v4665 = vadd.f32 %v4387, %v4550
          %v4666 = vadd.f32 %v4388, %v4554
          %v4667 = vadd.f32 %v4389, %v4542
          %v4668 = vadd.f32 %v4390, %v4546
          %v4669 = vadd.f32 %v4391, %v4550
          %v4670 = vadd.f32 %v4392, %v4554
          %v4671 = vadd.f32 %v4393, %v4542
          %v4672 = vadd.f32 %v4394, %v4546
          %v4673 = vadd.f32 %v4395, %v4550
          %v4674 = vadd.f32 %v4396, %v4554
          %v4675 = vadd.f32 %v4397, %v4542
          %v4676 = vadd.f32 %v4398, %v4546
          %v4677 = vadd.f32 %v4399, %v4550
          %v4678 = vadd.f32 %v4400, %v4554
          %v4679 = vadd.f32 %v4401, %v4542
          %v4680 = vadd.f32 %v4402, %v4546
          %v4681 = vadd.f32 %v4403, %v4550
          %v4682 = vadd.f32 %v4404, %v4554
          %v4683 = vadd.f32 %v4405, %v4542
          %v4684 = vadd.f32 %v4406, %v4546
          %v4685 = vadd.f32 %v4407, %v4550
          %v4686 = vadd.f32 %v4408, %v4554
          %v4687 = vadd.f32 %v4409, %v4542
          %v4688 = vadd.f32 %v4410, %v4546
          %v4689 = vadd.f32 %v4411, %v4550
          %v4690 = vadd.f32 %v4412, %v4554
          %v4691 = vadd.f32 %v4413, %v4542
          %v4692 = vadd.f32 %v4414, %v4546
          %v4693 = vadd.f32 %v4415, %v4550
          %v4694 = vadd.f32 %v4416, %v4554
          %v4695 = vadd.f32 %v4417, %v4542
          %v4696 = vadd.f32 %v4418, %v4546
          %v4697 = vadd.f32 %v4419, %v4550
          %v4698 = vadd.f32 %v4420, %v4554
          %v4699 = vadd.f32 %v4421, %v4542
          %v4700 = vadd.f32 %v4422, %v4546
          %v4701 = vadd.f32 %v4423, %v4550
          %v4702 = vadd.f32 %v4424, %v4554
          %v4703 = vadd.f32 %v4425, %v4542
          %v4704 = vadd.f32 %v4426, %v4546
          %v4705 = vadd.f32 %v4427, %v4550
          %v4706 = vadd.f32 %v4428, %v4554
          %v4707 = vadd.f32 %v4429, %v4542
          %v4708 = vadd.f32 %v4430, %v4546
          %v4709 = vadd.f32 %v4431, %v4550
          %v4710 = vadd.f32 %v4432, %v4554
          %v4711 = vadd.f32 %v4433, %v4542
          %v4712 = vadd.f32 %v4434, %v4546
          %v4713 = vadd.f32 %v4435, %v4550
          %v4714 = vadd.f32 %v4436, %v4554
          %v4715 = vadd.f32 %v4437, %v4542
          %v4716 = vadd.f32 %v4438, %v4546
          %v4717 = vadd.f32 %v4439, %v4550
          %v4718 = vadd.f32 %v4440, %v4554
          %v4719 = vadd.f32 %v4441, %v4542
          %v4720 = vadd.f32 %v4442, %v4546
          %v4721 = vadd.f32 %v4443, %v4550
          %v4722 = vadd.f32 %v4444, %v4554
          %v4723 = vadd.f32 %v4445, %v4542
          %v4724 = vadd.f32 %v4446, %v4546
          %v4725 = vadd.f32 %v4447, %v4550
          %v4726 = vadd.f32 %v4448, %v4554
          %v4727 = vadd.f32 %v4449, %v4542
          %v4728 = vadd.f32 %v4450, %v4546
          %v4729 = vadd.f32 %v4451, %v4550
          %v4730 = vadd.f32 %v4452, %v4554
          %v4731 = vadd.f32 %v4453, %v4542
          %v4732 = vadd.f32 %v4454, %v4546
          %v4733 = vadd.f32 %v4455, %v4550
          %v4734 = vadd.f32 %v4456, %v4554
          %v4735 = vadd.f32 %v4457, %v4542
          %v4736 = vadd.f32 %v4458, %v4546
          %v4737 = vadd.f32 %v4459, %v4550
          %v4738 = vadd.f32 %v4460, %v4554
          %v4739 = vadd.f32 %v4461, %v4542
          %v4740 = vadd.f32 %v4462, %v4546
          %v4741 = vadd.f32 %v4463, %v4550
          %v4742 = vadd.f32 %v4464, %v4554
          %v4743 = vadd.f32 %v4465, %v4542
          %v4744 = vadd.f32 %v4466, %v4546
          %v4745 = vadd.f32 %v4467, %v4550
          %v4746 = vadd.f32 %v4468, %v4554
          %v4747 = vadd.f32 %v4469, %v4542
          %v4748 = vadd.f32 %v4470, %v4546
          %v4749 = vadd.f32 %v4471, %v4550
          %v4750 = vadd.f32 %v4472, %v4554
          %v4751 = vadd.f32 %v4473, %v4542
          %v4752 = vadd.f32 %v4474, %v4546
          %v4753 = vadd.f32 %v4475, %v4550
          %v4754 = vadd.f32 %v4476, %v4554
          %v4755 = vadd.f32 %v4477, %v4542
          %v4756 = vadd.f32 %v4478, %v4546
          %v4757 = vadd.f32 %v4479, %v4550
          %v4758 = vadd.f32 %v4480, %v4554
          %v4759 = vadd.f32 %v4481, %v4542
          %v4760 = vadd.f32 %v4482, %v4546
          %v4761 = vadd.f32 %v4483, %v4550
          %v4762 = vadd.f32 %v4484, %v4554
          %v4763 = vadd.f32 %v4485, %v4542
          %v4764 = vadd.f32 %v4486, %v4546
          %v4765 = vadd.f32 %v4487, %v4550
          %v4766 = vadd.f32 %v4488, %v4554
          %v4767 = vadd.f32 %v4489, %v4542
          %v4768 = vadd.f32 %v4490, %v4546
          %v4769 = vadd.f32 %v4491, %v4550
          %v4770 = vadd.f32 %v4492, %v4554
          %v4771 = vadd.f32 %v4493, %v4542
          %v4772 = vadd.f32 %v4494, %v4546
          %v4773 = vadd.f32 %v4495, %v4550
          %v4774 = vadd.f32 %v4496, %v4554
          %v4775 = vadd.f32 %v4497, %v4542
          %v4776 = vadd.f32 %v4498, %v4546
          %v4777 = vadd.f32 %v4499, %v4550
          %v4778 = vadd.f32 %v4500, %v4554
          %v4779 = vadd.f32 %v4501, %v4542
          %v4780 = vadd.f32 %v4502, %v4546
          %v4781 = vadd.f32 %v4503, %v4550
          %v4782 = vadd.f32 %v4504, %v4554
          %v4783 = vadd.f32 %v4505, %v4542
          %v4784 = vadd.f32 %v4506, %v4546
          %v4785 = vadd.f32 %v4507, %v4550
          %v4786 = vadd.f32 %v4508, %v4554
          %v4787 = vadd.f32 %v4509, %v4542
          %v4788 = vadd.f32 %v4510, %v4546
          %v4789 = vadd.f32 %v4511, %v4550
          %v4790 = vadd.f32 %v4512, %v4554
          %v4791 = vadd.f32 %v4513, %v4542
          %v4792 = vadd.f32 %v4514, %v4546
          %v4793 = vadd.f32 %v4515, %v4550
          %v4794 = vadd.f32 %v4516, %v4554
          %v4795 = vadd.f32 %v4517, %v4542
          %v4796 = vadd.f32 %v4518, %v4546
          %v4797 = vadd.f32 %v4519, %v4550
          %v4798 = vadd.f32 %v4520, %v4554
          %v4799 = vadd.f32 %v4521, %v4542
          %v4800 = vadd.f32 %v4522, %v4546
          %v4801 = vadd.f32 %v4523, %v4550
          %v4802 = vadd.f32 %v4524, %v4554
          %v4803 = vadd.f32 %v4525, %v4542
          %v4804 = vadd.f32 %v4526, %v4546
          %v4805 = vadd.f32 %v4527, %v4550
          %v4806 = vadd.f32 %v4528, %v4554
          %v4807 = vadd.f32 %v4529, %v4542
          %v4808 = vadd.f32 %v4530, %v4546
          %v4809 = vadd.f32 %v4531, %v4550
          %v4810 = vadd.f32 %v4532, %v4554
          %v4811 = vadd.f32 %v4533, %v4542
          %v4812 = vadd.f32 %v4534, %v4546
          %v4813 = vadd.f32 %v4535, %v4550
          %v4814 = vadd.f32 %v4536, %v4554
          %v4815 = vpack.c.bf16 %v4563, %v4559
          %v4816 = vpack.c.bf16 %v4564, %v4560
          %v4817 = vpack.c.bf16 %v4565, %v4561
          %v4818 = vpack.c.bf16 %v4566, %v4562
          %v4819 = vpack.c.bf16 %v4571, %v4567
          %v4820 = vpack.c.bf16 %v4572, %v4568
          %v4821 = vpack.c.bf16 %v4573, %v4569
          %v4822 = vpack.c.bf16 %v4574, %v4570
          %v4823 = vpack.c.bf16 %v4579, %v4575
          %v4824 = vpack.c.bf16 %v4580, %v4576
          %v4825 = vpack.c.bf16 %v4581, %v4577
          %v4826 = vpack.c.bf16 %v4582, %v4578
          %v4827 = vpack.c.bf16 %v4587, %v4583
          %v4828 = vpack.c.bf16 %v4588, %v4584
          %v4829 = vpack.c.bf16 %v4589, %v4585
          %v4830 = vpack.c.bf16 %v4590, %v4586
          %v4831 = vpack.c.bf16 %v4595, %v4591
          %v4832 = vpack.c.bf16 %v4596, %v4592
          %v4833 = vpack.c.bf16 %v4597, %v4593
          %v4834 = vpack.c.bf16 %v4598, %v4594
          %v4835 = vpack.c.bf16 %v4603, %v4599
          %v4836 = vpack.c.bf16 %v4604, %v4600
          %v4837 = vpack.c.bf16 %v4605, %v4601
          %v4838 = vpack.c.bf16 %v4606, %v4602
          %v4839 = vpack.c.bf16 %v4611, %v4607
          %v4840 = vpack.c.bf16 %v4612, %v4608
          %v4841 = vpack.c.bf16 %v4613, %v4609
          %v4842 = vpack.c.bf16 %v4614, %v4610
          %v4843 = vpack.c.bf16 %v4619, %v4615
          %v4844 = vpack.c.bf16 %v4620, %v4616
          %v4845 = vpack.c.bf16 %v4621, %v4617
          %v4846 = vpack.c.bf16 %v4622, %v4618
          %v4847 = vpack.c.bf16 %v4627, %v4623
          %v4848 = vpack.c.bf16 %v4628, %v4624
          %v4849 = vpack.c.bf16 %v4629, %v4625
          %v4850 = vpack.c.bf16 %v4630, %v4626
          %v4851 = vpack.c.bf16 %v4635, %v4631
          %v4852 = vpack.c.bf16 %v4636, %v4632
          %v4853 = vpack.c.bf16 %v4637, %v4633
          %v4854 = vpack.c.bf16 %v4638, %v4634
          %v4855 = vpack.c.bf16 %v4643, %v4639
          %v4856 = vpack.c.bf16 %v4644, %v4640
          %v4857 = vpack.c.bf16 %v4645, %v4641
          %v4858 = vpack.c.bf16 %v4646, %v4642
          %v4859 = vpack.c.bf16 %v4651, %v4647
          %v4860 = vpack.c.bf16 %v4652, %v4648
          %v4861 = vpack.c.bf16 %v4653, %v4649
          %v4862 = vpack.c.bf16 %v4654, %v4650
          %v4863 = vpack.c.bf16 %v4659, %v4655
          %v4864 = vpack.c.bf16 %v4660, %v4656
          %v4865 = vpack.c.bf16 %v4661, %v4657
          %v4866 = vpack.c.bf16 %v4662, %v4658
          %v4867 = vpack.c.bf16 %v4667, %v4663
          %v4868 = vpack.c.bf16 %v4668, %v4664
          %v4869 = vpack.c.bf16 %v4669, %v4665
          %v4870 = vpack.c.bf16 %v4670, %v4666
          %v4871 = vpack.c.bf16 %v4675, %v4671
          %v4872 = vpack.c.bf16 %v4676, %v4672
          %v4873 = vpack.c.bf16 %v4677, %v4673
          %v4874 = vpack.c.bf16 %v4678, %v4674
          %v4875 = vpack.c.bf16 %v4683, %v4679
          %v4876 = vpack.c.bf16 %v4684, %v4680
          %v4877 = vpack.c.bf16 %v4685, %v4681
          %v4878 = vpack.c.bf16 %v4686, %v4682
          %v4879 = vpack.c.bf16 %v4691, %v4687
          %v4880 = vpack.c.bf16 %v4692, %v4688
          %v4881 = vpack.c.bf16 %v4693, %v4689
          %v4882 = vpack.c.bf16 %v4694, %v4690
          %v4883 = vpack.c.bf16 %v4699, %v4695
          %v4884 = vpack.c.bf16 %v4700, %v4696
          %v4885 = vpack.c.bf16 %v4701, %v4697
          %v4886 = vpack.c.bf16 %v4702, %v4698
          %v4887 = vpack.c.bf16 %v4707, %v4703
          %v4888 = vpack.c.bf16 %v4708, %v4704
          %v4889 = vpack.c.bf16 %v4709, %v4705
          %v4890 = vpack.c.bf16 %v4710, %v4706
          %v4891 = vpack.c.bf16 %v4715, %v4711
          %v4892 = vpack.c.bf16 %v4716, %v4712
          %v4893 = vpack.c.bf16 %v4717, %v4713
          %v4894 = vpack.c.bf16 %v4718, %v4714
          %v4895 = vpack.c.bf16 %v4723, %v4719
          %v4896 = vpack.c.bf16 %v4724, %v4720
          %v4897 = vpack.c.bf16 %v4725, %v4721
          %v4898 = vpack.c.bf16 %v4726, %v4722
          %v4899 = vpack.c.bf16 %v4731, %v4727
          %v4900 = vpack.c.bf16 %v4732, %v4728
          %v4901 = vpack.c.bf16 %v4733, %v4729
          %v4902 = vpack.c.bf16 %v4734, %v4730
          %v4903 = vpack.c.bf16 %v4739, %v4735
          %v4904 = vpack.c.bf16 %v4740, %v4736
          %v4905 = vpack.c.bf16 %v4741, %v4737
          %v4906 = vpack.c.bf16 %v4742, %v4738
          %v4907 = vpack.c.bf16 %v4747, %v4743
          %v4908 = vpack.c.bf16 %v4748, %v4744
          %v4909 = vpack.c.bf16 %v4749, %v4745
          %v4910 = vpack.c.bf16 %v4750, %v4746
          %v4911 = vpack.c.bf16 %v4755, %v4751
          %v4912 = vpack.c.bf16 %v4756, %v4752
          %v4913 = vpack.c.bf16 %v4757, %v4753
          %v4914 = vpack.c.bf16 %v4758, %v4754
          %v4915 = vpack.c.bf16 %v4763, %v4759
          %v4916 = vpack.c.bf16 %v4764, %v4760
          %v4917 = vpack.c.bf16 %v4765, %v4761
          %v4918 = vpack.c.bf16 %v4766, %v4762
          %v4919 = vpack.c.bf16 %v4771, %v4767
          %v4920 = vpack.c.bf16 %v4772, %v4768
          %v4921 = vpack.c.bf16 %v4773, %v4769
          %v4922 = vpack.c.bf16 %v4774, %v4770
          %v4923 = vpack.c.bf16 %v4779, %v4775
          %v4924 = vpack.c.bf16 %v4780, %v4776
          %v4925 = vpack.c.bf16 %v4781, %v4777
          %v4926 = vpack.c.bf16 %v4782, %v4778
          %v4927 = vpack.c.bf16 %v4787, %v4783
          %v4928 = vpack.c.bf16 %v4788, %v4784
          %v4929 = vpack.c.bf16 %v4789, %v4785
          %v4930 = vpack.c.bf16 %v4790, %v4786
          %v4931 = vpack.c.bf16 %v4795, %v4791
          %v4932 = vpack.c.bf16 %v4796, %v4792
          %v4933 = vpack.c.bf16 %v4797, %v4793
          %v4934 = vpack.c.bf16 %v4798, %v4794
          %v4935 = vpack.c.bf16 %v4803, %v4799
          %v4936 = vpack.c.bf16 %v4804, %v4800
          %v4937 = vpack.c.bf16 %v4805, %v4801
          %v4938 = vpack.c.bf16 %v4806, %v4802
          %v4939 = vpack.c.bf16 %v4811, %v4807
          %v4940 = vpack.c.bf16 %v4812, %v4808
          %v4941 = vpack.c.bf16 %v4813, %v4809
          %v4942 = vpack.c.bf16 %v4814, %v4810
          %v5071 = vunpack.c.l.b16 %v4815
          %v5072 = vunpack.c.l.b16 %v4816
          %v5073 = vunpack.c.l.b16 %v4817
          %v5074 = vunpack.c.l.b16 %v4818
          %v5075 = vunpack.c.h.b16 %v4815
          %v5076 = vunpack.c.h.b16 %v4816
          %v5077 = vunpack.c.h.b16 %v4817
          %v5078 = vunpack.c.h.b16 %v4818
          %v5079 = vunpack.c.l.b16 %v4819
          %v5080 = vunpack.c.l.b16 %v4820
          %v5081 = vunpack.c.l.b16 %v4821
          %v5082 = vunpack.c.l.b16 %v4822
          %v5083 = vunpack.c.h.b16 %v4819
          %v5084 = vunpack.c.h.b16 %v4820
          %v5085 = vunpack.c.h.b16 %v4821
          %v5086 = vunpack.c.h.b16 %v4822
          %v5087 = vunpack.c.l.b16 %v4823
          %v5088 = vunpack.c.l.b16 %v4824
          %v5089 = vunpack.c.l.b16 %v4825
          %v5090 = vunpack.c.l.b16 %v4826
          %v5091 = vunpack.c.h.b16 %v4823
          %v5092 = vunpack.c.h.b16 %v4824
          %v5093 = vunpack.c.h.b16 %v4825
          %v5094 = vunpack.c.h.b16 %v4826
          %v5095 = vunpack.c.l.b16 %v4827
          %v5096 = vunpack.c.l.b16 %v4828
          %v5097 = vunpack.c.l.b16 %v4829
          %v5098 = vunpack.c.l.b16 %v4830
          %v5099 = vunpack.c.h.b16 %v4827
          %v5100 = vunpack.c.h.b16 %v4828
          %v5101 = vunpack.c.h.b16 %v4829
          %v5102 = vunpack.c.h.b16 %v4830
          %v5103 = vunpack.c.l.b16 %v4831
          %v5104 = vunpack.c.l.b16 %v4832
          %v5105 = vunpack.c.l.b16 %v4833
          %v5106 = vunpack.c.l.b16 %v4834
          %v5107 = vunpack.c.h.b16 %v4831
          %v5108 = vunpack.c.h.b16 %v4832
          %v5109 = vunpack.c.h.b16 %v4833
          %v5110 = vunpack.c.h.b16 %v4834
          %v5111 = vunpack.c.l.b16 %v4835
          %v5112 = vunpack.c.l.b16 %v4836
          %v5113 = vunpack.c.l.b16 %v4837
          %v5114 = vunpack.c.l.b16 %v4838
          %v5115 = vunpack.c.h.b16 %v4835
          %v5116 = vunpack.c.h.b16 %v4836
          %v5117 = vunpack.c.h.b16 %v4837
          %v5118 = vunpack.c.h.b16 %v4838
          %v5119 = vunpack.c.l.b16 %v4839
          %v5120 = vunpack.c.l.b16 %v4840
          %v5121 = vunpack.c.l.b16 %v4841
          %v5122 = vunpack.c.l.b16 %v4842
          %v5123 = vunpack.c.h.b16 %v4839
          %v5124 = vunpack.c.h.b16 %v4840
          %v5125 = vunpack.c.h.b16 %v4841
          %v5126 = vunpack.c.h.b16 %v4842
          %v5127 = vunpack.c.l.b16 %v4843
          %v5128 = vunpack.c.l.b16 %v4844
          %v5129 = vunpack.c.l.b16 %v4845
          %v5130 = vunpack.c.l.b16 %v4846
          %v5131 = vunpack.c.h.b16 %v4843
          %v5132 = vunpack.c.h.b16 %v4844
          %v5133 = vunpack.c.h.b16 %v4845
          %v5134 = vunpack.c.h.b16 %v4846
          %v5135 = vunpack.c.l.b16 %v4847
          %v5136 = vunpack.c.l.b16 %v4848
          %v5137 = vunpack.c.l.b16 %v4849
          %v5138 = vunpack.c.l.b16 %v4850
          %v5139 = vunpack.c.h.b16 %v4847
          %v5140 = vunpack.c.h.b16 %v4848
          %v5141 = vunpack.c.h.b16 %v4849
          %v5142 = vunpack.c.h.b16 %v4850
          %v5143 = vunpack.c.l.b16 %v4851
          %v5144 = vunpack.c.l.b16 %v4852
          %v5145 = vunpack.c.l.b16 %v4853
          %v5146 = vunpack.c.l.b16 %v4854
          %v5147 = vunpack.c.h.b16 %v4851
          %v5148 = vunpack.c.h.b16 %v4852
          %v5149 = vunpack.c.h.b16 %v4853
          %v5150 = vunpack.c.h.b16 %v4854
          %v5151 = vunpack.c.l.b16 %v4855
          %v5152 = vunpack.c.l.b16 %v4856
          %v5153 = vunpack.c.l.b16 %v4857
          %v5154 = vunpack.c.l.b16 %v4858
          %v5155 = vunpack.c.h.b16 %v4855
          %v5156 = vunpack.c.h.b16 %v4856
          %v5157 = vunpack.c.h.b16 %v4857
          %v5158 = vunpack.c.h.b16 %v4858
          %v5159 = vunpack.c.l.b16 %v4859
          %v5160 = vunpack.c.l.b16 %v4860
          %v5161 = vunpack.c.l.b16 %v4861
          %v5162 = vunpack.c.l.b16 %v4862
          %v5163 = vunpack.c.h.b16 %v4859
          %v5164 = vunpack.c.h.b16 %v4860
          %v5165 = vunpack.c.h.b16 %v4861
          %v5166 = vunpack.c.h.b16 %v4862
          %v5167 = vunpack.c.l.b16 %v4863
          %v5168 = vunpack.c.l.b16 %v4864
          %v5169 = vunpack.c.l.b16 %v4865
          %v5170 = vunpack.c.l.b16 %v4866
          %v5171 = vunpack.c.h.b16 %v4863
          %v5172 = vunpack.c.h.b16 %v4864
          %v5173 = vunpack.c.h.b16 %v4865
          %v5174 = vunpack.c.h.b16 %v4866
          %v5175 = vunpack.c.l.b16 %v4867
          %v5176 = vunpack.c.l.b16 %v4868
          %v5177 = vunpack.c.l.b16 %v4869
          %v5178 = vunpack.c.l.b16 %v4870
          %v5179 = vunpack.c.h.b16 %v4867
          %v5180 = vunpack.c.h.b16 %v4868
          %v5181 = vunpack.c.h.b16 %v4869
          %v5182 = vunpack.c.h.b16 %v4870
          %v5183 = vunpack.c.l.b16 %v4871
          %v5184 = vunpack.c.l.b16 %v4872
          %v5185 = vunpack.c.l.b16 %v4873
          %v5186 = vunpack.c.l.b16 %v4874
          %v5187 = vunpack.c.h.b16 %v4871
          %v5188 = vunpack.c.h.b16 %v4872
          %v5189 = vunpack.c.h.b16 %v4873
          %v5190 = vunpack.c.h.b16 %v4874
          %v5191 = vunpack.c.l.b16 %v4875
          %v5192 = vunpack.c.l.b16 %v4876
          %v5193 = vunpack.c.l.b16 %v4877
          %v5194 = vunpack.c.l.b16 %v4878
          %v5195 = vunpack.c.h.b16 %v4875
          %v5196 = vunpack.c.h.b16 %v4876
          %v5197 = vunpack.c.h.b16 %v4877
          %v5198 = vunpack.c.h.b16 %v4878
          %v5199 = vunpack.c.l.b16 %v4879
          %v5200 = vunpack.c.l.b16 %v4880
          %v5201 = vunpack.c.l.b16 %v4881
          %v5202 = vunpack.c.l.b16 %v4882
          %v5203 = vunpack.c.h.b16 %v4879
          %v5204 = vunpack.c.h.b16 %v4880
          %v5205 = vunpack.c.h.b16 %v4881
          %v5206 = vunpack.c.h.b16 %v4882
          %v5207 = vunpack.c.l.b16 %v4883
          %v5208 = vunpack.c.l.b16 %v4884
          %v5209 = vunpack.c.l.b16 %v4885
          %v5210 = vunpack.c.l.b16 %v4886
          %v5211 = vunpack.c.h.b16 %v4883
          %v5212 = vunpack.c.h.b16 %v4884
          %v5213 = vunpack.c.h.b16 %v4885
          %v5214 = vunpack.c.h.b16 %v4886
          %v5215 = vunpack.c.l.b16 %v4887
          %v5216 = vunpack.c.l.b16 %v4888
          %v5217 = vunpack.c.l.b16 %v4889
          %v5218 = vunpack.c.l.b16 %v4890
          %v5219 = vunpack.c.h.b16 %v4887
          %v5220 = vunpack.c.h.b16 %v4888
          %v5221 = vunpack.c.h.b16 %v4889
          %v5222 = vunpack.c.h.b16 %v4890
          %v5223 = vunpack.c.l.b16 %v4891
          %v5224 = vunpack.c.l.b16 %v4892
          %v5225 = vunpack.c.l.b16 %v4893
          %v5226 = vunpack.c.l.b16 %v4894
          %v5227 = vunpack.c.h.b16 %v4891
          %v5228 = vunpack.c.h.b16 %v4892
          %v5229 = vunpack.c.h.b16 %v4893
          %v5230 = vunpack.c.h.b16 %v4894
          %v5231 = vunpack.c.l.b16 %v4895
          %v5232 = vunpack.c.l.b16 %v4896
          %v5233 = vunpack.c.l.b16 %v4897
          %v5234 = vunpack.c.l.b16 %v4898
          %v5235 = vunpack.c.h.b16 %v4895
          %v5236 = vunpack.c.h.b16 %v4896
          %v5237 = vunpack.c.h.b16 %v4897
          %v5238 = vunpack.c.h.b16 %v4898
          %v5239 = vunpack.c.l.b16 %v4899
          %v5240 = vunpack.c.l.b16 %v4900
          %v5241 = vunpack.c.l.b16 %v4901
          %v5242 = vunpack.c.l.b16 %v4902
          %v5243 = vunpack.c.h.b16 %v4899
          %v5244 = vunpack.c.h.b16 %v4900
          %v5245 = vunpack.c.h.b16 %v4901
          %v5246 = vunpack.c.h.b16 %v4902
          %v5247 = vunpack.c.l.b16 %v4903
          %v5248 = vunpack.c.l.b16 %v4904
          %v5249 = vunpack.c.l.b16 %v4905
          %v5250 = vunpack.c.l.b16 %v4906
          %v5251 = vunpack.c.h.b16 %v4903
          %v5252 = vunpack.c.h.b16 %v4904
          %v5253 = vunpack.c.h.b16 %v4905
          %v5254 = vunpack.c.h.b16 %v4906
          %v5255 = vunpack.c.l.b16 %v4907
          %v5256 = vunpack.c.l.b16 %v4908
          %v5257 = vunpack.c.l.b16 %v4909
          %v5258 = vunpack.c.l.b16 %v4910
          %v5259 = vunpack.c.h.b16 %v4907
          %v5260 = vunpack.c.h.b16 %v4908
          %v5261 = vunpack.c.h.b16 %v4909
          %v5262 = vunpack.c.h.b16 %v4910
          %v5263 = vunpack.c.l.b16 %v4911
          %v5264 = vunpack.c.l.b16 %v4912
          %v5265 = vunpack.c.l.b16 %v4913
          %v5266 = vunpack.c.l.b16 %v4914
          %v5267 = vunpack.c.h.b16 %v4911
          %v5268 = vunpack.c.h.b16 %v4912
          %v5269 = vunpack.c.h.b16 %v4913
          %v5270 = vunpack.c.h.b16 %v4914
          %v5271 = vunpack.c.l.b16 %v4915
          %v5272 = vunpack.c.l.b16 %v4916
          %v5273 = vunpack.c.l.b16 %v4917
          %v5274 = vunpack.c.l.b16 %v4918
          %v5275 = vunpack.c.h.b16 %v4915
          %v5276 = vunpack.c.h.b16 %v4916
          %v5277 = vunpack.c.h.b16 %v4917
          %v5278 = vunpack.c.h.b16 %v4918
          %v5279 = vunpack.c.l.b16 %v4919
          %v5280 = vunpack.c.l.b16 %v4920
          %v5281 = vunpack.c.l.b16 %v4921
          %v5282 = vunpack.c.l.b16 %v4922
          %v5283 = vunpack.c.h.b16 %v4919
          %v5284 = vunpack.c.h.b16 %v4920
          %v5285 = vunpack.c.h.b16 %v4921
          %v5286 = vunpack.c.h.b16 %v4922
          %v5287 = vunpack.c.l.b16 %v4923
          %v5288 = vunpack.c.l.b16 %v4924
          %v5289 = vunpack.c.l.b16 %v4925
          %v5290 = vunpack.c.l.b16 %v4926
          %v5291 = vunpack.c.h.b16 %v4923
          %v5292 = vunpack.c.h.b16 %v4924
          %v5293 = vunpack.c.h.b16 %v4925
          %v5294 = vunpack.c.h.b16 %v4926
          %v5295 = vunpack.c.l.b16 %v4927
          %v5296 = vunpack.c.l.b16 %v4928
          %v5297 = vunpack.c.l.b16 %v4929
          %v5298 = vunpack.c.l.b16 %v4930
          %v5299 = vunpack.c.h.b16 %v4927
          %v5300 = vunpack.c.h.b16 %v4928
          %v5301 = vunpack.c.h.b16 %v4929
          %v5302 = vunpack.c.h.b16 %v4930
          %v5303 = vunpack.c.l.b16 %v4931
          %v5304 = vunpack.c.l.b16 %v4932
          %v5305 = vunpack.c.l.b16 %v4933
          %v5306 = vunpack.c.l.b16 %v4934
          %v5307 = vunpack.c.h.b16 %v4931
          %v5308 = vunpack.c.h.b16 %v4932
          %v5309 = vunpack.c.h.b16 %v4933
          %v5310 = vunpack.c.h.b16 %v4934
          %v5311 = vunpack.c.l.b16 %v4935
          %v5312 = vunpack.c.l.b16 %v4936
          %v5313 = vunpack.c.l.b16 %v4937
          %v5314 = vunpack.c.l.b16 %v4938
          %v5315 = vunpack.c.h.b16 %v4935
          %v5316 = vunpack.c.h.b16 %v4936
          %v5317 = vunpack.c.h.b16 %v4937
          %v5318 = vunpack.c.h.b16 %v4938
          %v5319 = vunpack.c.l.b16 %v4939
          %v5320 = vunpack.c.l.b16 %v4940
          %v5321 = vunpack.c.l.b16 %v4941
          %v5322 = vunpack.c.l.b16 %v4942
          %v5323 = vunpack.c.h.b16 %v4939
          %v5324 = vunpack.c.h.b16 %v4940
          %v5325 = vunpack.c.h.b16 %v4941
          %v5326 = vunpack.c.h.b16 %v4942
          %v5327 = vpack.c.b16 %v5072, %v5071
          %v5328 = vpack.c.b16 %v5074, %v5073
          %v5329 = vpack.c.b16 %v5076, %v5075
          %v5330 = vpack.c.b16 %v5078, %v5077
          %v5331 = vpack.c.b16 %v5080, %v5079
          %v5332 = vpack.c.b16 %v5082, %v5081
          %v5333 = vpack.c.b16 %v5084, %v5083
          %v5334 = vpack.c.b16 %v5086, %v5085
          %v5335 = vpack.c.b16 %v5088, %v5087
          %v5336 = vpack.c.b16 %v5090, %v5089
          %v5337 = vpack.c.b16 %v5092, %v5091
          %v5338 = vpack.c.b16 %v5094, %v5093
          %v5339 = vpack.c.b16 %v5096, %v5095
          %v5340 = vpack.c.b16 %v5098, %v5097
          %v5341 = vpack.c.b16 %v5100, %v5099
          %v5342 = vpack.c.b16 %v5102, %v5101
          %v5343 = vpack.c.b16 %v5104, %v5103
          %v5344 = vpack.c.b16 %v5106, %v5105
          %v5345 = vpack.c.b16 %v5108, %v5107
          %v5346 = vpack.c.b16 %v5110, %v5109
          %v5347 = vpack.c.b16 %v5112, %v5111
          %v5348 = vpack.c.b16 %v5114, %v5113
          %v5349 = vpack.c.b16 %v5116, %v5115
          %v5350 = vpack.c.b16 %v5118, %v5117
          %v5351 = vpack.c.b16 %v5120, %v5119
          %v5352 = vpack.c.b16 %v5122, %v5121
          %v5353 = vpack.c.b16 %v5124, %v5123
          %v5354 = vpack.c.b16 %v5126, %v5125
          %v5355 = vpack.c.b16 %v5128, %v5127
          %v5356 = vpack.c.b16 %v5130, %v5129
          %v5357 = vpack.c.b16 %v5132, %v5131
          %v5358 = vpack.c.b16 %v5134, %v5133
          %v5359 = vpack.c.b16 %v5136, %v5135
          %v5360 = vpack.c.b16 %v5138, %v5137
          %v5361 = vpack.c.b16 %v5140, %v5139
          %v5362 = vpack.c.b16 %v5142, %v5141
          %v5363 = vpack.c.b16 %v5144, %v5143
          %v5364 = vpack.c.b16 %v5146, %v5145
          %v5365 = vpack.c.b16 %v5148, %v5147
          %v5366 = vpack.c.b16 %v5150, %v5149
          %v5367 = vpack.c.b16 %v5152, %v5151
          %v5368 = vpack.c.b16 %v5154, %v5153
          %v5369 = vpack.c.b16 %v5156, %v5155
          %v5370 = vpack.c.b16 %v5158, %v5157
          %v5371 = vpack.c.b16 %v5160, %v5159
          %v5372 = vpack.c.b16 %v5162, %v5161
          %v5373 = vpack.c.b16 %v5164, %v5163
          %v5374 = vpack.c.b16 %v5166, %v5165
          %v5375 = vpack.c.b16 %v5168, %v5167
          %v5376 = vpack.c.b16 %v5170, %v5169
          %v5377 = vpack.c.b16 %v5172, %v5171
          %v5378 = vpack.c.b16 %v5174, %v5173
          %v5379 = vpack.c.b16 %v5176, %v5175
          %v5380 = vpack.c.b16 %v5178, %v5177
          %v5381 = vpack.c.b16 %v5180, %v5179
          %v5382 = vpack.c.b16 %v5182, %v5181
          %v5383 = vpack.c.b16 %v5184, %v5183
          %v5384 = vpack.c.b16 %v5186, %v5185
          %v5385 = vpack.c.b16 %v5188, %v5187
          %v5386 = vpack.c.b16 %v5190, %v5189
          %v5387 = vpack.c.b16 %v5192, %v5191
          %v5388 = vpack.c.b16 %v5194, %v5193
          %v5389 = vpack.c.b16 %v5196, %v5195
          %v5390 = vpack.c.b16 %v5198, %v5197
          %v5391 = vpack.c.b16 %v5200, %v5199
          %v5392 = vpack.c.b16 %v5202, %v5201
          %v5393 = vpack.c.b16 %v5204, %v5203
          %v5394 = vpack.c.b16 %v5206, %v5205
          %v5395 = vpack.c.b16 %v5208, %v5207
          %v5396 = vpack.c.b16 %v5210, %v5209
          %v5397 = vpack.c.b16 %v5212, %v5211
          %v5398 = vpack.c.b16 %v5214, %v5213
          %v5399 = vpack.c.b16 %v5216, %v5215
          %v5400 = vpack.c.b16 %v5218, %v5217
          %v5401 = vpack.c.b16 %v5220, %v5219
          %v5402 = vpack.c.b16 %v5222, %v5221
          %v5403 = vpack.c.b16 %v5224, %v5223
          %v5404 = vpack.c.b16 %v5226, %v5225
          %v5405 = vpack.c.b16 %v5228, %v5227
          %v5406 = vpack.c.b16 %v5230, %v5229
          %v5407 = vpack.c.b16 %v5232, %v5231
          %v5408 = vpack.c.b16 %v5234, %v5233
          %v5409 = vpack.c.b16 %v5236, %v5235
          %v5410 = vpack.c.b16 %v5238, %v5237
          %v5411 = vpack.c.b16 %v5240, %v5239
          %v5412 = vpack.c.b16 %v5242, %v5241
          %v5413 = vpack.c.b16 %v5244, %v5243
          %v5414 = vpack.c.b16 %v5246, %v5245
          %v5415 = vpack.c.b16 %v5248, %v5247
          %v5416 = vpack.c.b16 %v5250, %v5249
          %v5417 = vpack.c.b16 %v5252, %v5251
          %v5418 = vpack.c.b16 %v5254, %v5253
          %v5419 = vpack.c.b16 %v5256, %v5255
          %v5420 = vpack.c.b16 %v5258, %v5257
          %v5421 = vpack.c.b16 %v5260, %v5259
          %v5422 = vpack.c.b16 %v5262, %v5261
          %v5423 = vpack.c.b16 %v5264, %v5263
          %v5424 = vpack.c.b16 %v5266, %v5265
          %v5425 = vpack.c.b16 %v5268, %v5267
          %v5426 = vpack.c.b16 %v5270, %v5269
          %v5427 = vpack.c.b16 %v5272, %v5271
          %v5428 = vpack.c.b16 %v5274, %v5273
          %v5429 = vpack.c.b16 %v5276, %v5275
          %v5430 = vpack.c.b16 %v5278, %v5277
          %v5431 = vpack.c.b16 %v5280, %v5279
          %v5432 = vpack.c.b16 %v5282, %v5281
          %v5433 = vpack.c.b16 %v5284, %v5283
          %v5434 = vpack.c.b16 %v5286, %v5285
          %v5435 = vpack.c.b16 %v5288, %v5287
          %v5436 = vpack.c.b16 %v5290, %v5289
          %v5437 = vpack.c.b16 %v5292, %v5291
          %v5438 = vpack.c.b16 %v5294, %v5293
          %v5439 = vpack.c.b16 %v5296, %v5295
          %v5440 = vpack.c.b16 %v5298, %v5297
          %v5441 = vpack.c.b16 %v5300, %v5299
          %v5442 = vpack.c.b16 %v5302, %v5301
          %v5443 = vpack.c.b16 %v5304, %v5303
          %v5444 = vpack.c.b16 %v5306, %v5305
          %v5445 = vpack.c.b16 %v5308, %v5307
          %v5446 = vpack.c.b16 %v5310, %v5309
          %v5447 = vpack.c.b16 %v5312, %v5311
          %v5448 = vpack.c.b16 %v5314, %v5313
          %v5449 = vpack.c.b16 %v5316, %v5315
          %v5450 = vpack.c.b16 %v5318, %v5317
          %v5451 = vpack.c.b16 %v5320, %v5319
          %v5452 = vpack.c.b16 %v5322, %v5321
          %v5453 = vpack.c.b16 %v5324, %v5323
          %v5454 = vpack.c.b16 %v5326, %v5325
          %5583 = vst [vmem:[%s294] sm:$0xff] %v5327
          %5584 = vst [vmem:[%s294 + $0x8] sm:$0xff] %v5328
          %5585 = vst [vmem:[%s294 + $0x10] sm:$0xff] %v5329
          %5586 = vst [vmem:[%s294 + $0x18] sm:$0xff] %v5330
          %5587 = vst [vmem:[%s294 + $0x20] sm:$0xff] %v5331
          %5588 = vst [vmem:[%s294 + $0x28] sm:$0xff] %v5332
          %5589 = vst [vmem:[%s294 + $0x30] sm:$0xff] %v5333
          %5590 = vst [vmem:[%s294 + $0x38] sm:$0xff] %v5334
          %5591 = vst [vmem:[%s294 + $0x40] sm:$0xff] %v5335
          %5592 = vst [vmem:[%s294 + $0x48] sm:$0xff] %v5336
          %5593 = vst [vmem:[%s294 + $0x50] sm:$0xff] %v5337
          %5594 = vst [vmem:[%s294 + $0x58] sm:$0xff] %v5338
          %5595 = vst [vmem:[%s294 + $0x60] sm:$0xff] %v5339
          %5596 = vst [vmem:[%s294 + $0x68] sm:$0xff] %v5340
          %5597 = vst [vmem:[%s294 + $0x70] sm:$0xff] %v5341
          %5598 = vst [vmem:[%s294 + $0x78] sm:$0xff] %v5342
          %5599 = vst [vmem:[%s294 + $0x80] sm:$0xff] %v5343
          %5600 = vst [vmem:[%s294 + $0x88] sm:$0xff] %v5344
          %5601 = vst [vmem:[%s294 + $0x90] sm:$0xff] %v5345
          %5602 = vst [vmem:[%s294 + $0x98] sm:$0xff] %v5346
          %5603 = vst [vmem:[%s294 + $0xa0] sm:$0xff] %v5347
          %5604 = vst [vmem:[%s294 + $0xa8] sm:$0xff] %v5348
          %5605 = vst [vmem:[%s294 + $0xb0] sm:$0xff] %v5349
          %5606 = vst [vmem:[%s294 + $0xb8] sm:$0xff] %v5350
          %5607 = vst [vmem:[%s294 + $0xc0] sm:$0xff] %v5351
          %5608 = vst [vmem:[%s294 + $0xc8] sm:$0xff] %v5352
          %5609 = vst [vmem:[%s294 + $0xd0] sm:$0xff] %v5353
          %5610 = vst [vmem:[%s294 + $0xd8] sm:$0xff] %v5354
          %5611 = vst [vmem:[%s294 + $0xe0] sm:$0xff] %v5355
          %5612 = vst [vmem:[%s294 + $0xe8] sm:$0xff] %v5356
          %5613 = vst [vmem:[%s294 + $0xf0] sm:$0xff] %v5357
          %5614 = vst [vmem:[%s294 + $0xf8] sm:$0xff] %v5358
          %5615 = vst [vmem:[%s294 + $0x100] sm:$0xff] %v5359
          %5616 = vst [vmem:[%s294 + $0x108] sm:$0xff] %v5360
          %5617 = vst [vmem:[%s294 + $0x110] sm:$0xff] %v5361
          %5618 = vst [vmem:[%s294 + $0x118] sm:$0xff] %v5362
          %5619 = vst [vmem:[%s294 + $0x120] sm:$0xff] %v5363
          %5620 = vst [vmem:[%s294 + $0x128] sm:$0xff] %v5364
          %5621 = vst [vmem:[%s294 + $0x130] sm:$0xff] %v5365
          %5622 = vst [vmem:[%s294 + $0x138] sm:$0xff] %v5366
          %5623 = vst [vmem:[%s294 + $0x140] sm:$0xff] %v5367
          %5624 = vst [vmem:[%s294 + $0x148] sm:$0xff] %v5368
          %5625 = vst [vmem:[%s294 + $0x150] sm:$0xff] %v5369
          %5626 = vst [vmem:[%s294 + $0x158] sm:$0xff] %v5370
          %5627 = vst [vmem:[%s294 + $0x160] sm:$0xff] %v5371
          %5628 = vst [vmem:[%s294 + $0x168] sm:$0xff] %v5372
          %5629 = vst [vmem:[%s294 + $0x170] sm:$0xff] %v5373
          %5630 = vst [vmem:[%s294 + $0x178] sm:$0xff] %v5374
          %5631 = vst [vmem:[%s294 + $0x180] sm:$0xff] %v5375
          %5632 = vst [vmem:[%s294 + $0x188] sm:$0xff] %v5376
          %5633 = vst [vmem:[%s294 + $0x190] sm:$0xff] %v5377
          %5634 = vst [vmem:[%s294 + $0x198] sm:$0xff] %v5378
          %5635 = vst [vmem:[%s294 + $0x1a0] sm:$0xff] %v5379
          %5636 = vst [vmem:[%s294 + $0x1a8] sm:$0xff] %v5380
          %5637 = vst [vmem:[%s294 + $0x1b0] sm:$0xff] %v5381
          %5638 = vst [vmem:[%s294 + $0x1b8] sm:$0xff] %v5382
          %5639 = vst [vmem:[%s294 + $0x1c0] sm:$0xff] %v5383
          %5640 = vst [vmem:[%s294 + $0x1c8] sm:$0xff] %v5384
          %5641 = vst [vmem:[%s294 + $0x1d0] sm:$0xff] %v5385
          %5642 = vst [vmem:[%s294 + $0x1d8] sm:$0xff] %v5386
          %5643 = vst [vmem:[%s294 + $0x1e0] sm:$0xff] %v5387
          %5644 = vst [vmem:[%s294 + $0x1e8] sm:$0xff] %v5388
          %5645 = vst [vmem:[%s294 + $0x1f0] sm:$0xff] %v5389
          %5646 = vst [vmem:[%s294 + $0x1f8] sm:$0xff] %v5390
          %5647 = vst [vmem:[%s294 + $0x200] sm:$0xff] %v5391
          %5648 = vst [vmem:[%s294 + $0x208] sm:$0xff] %v5392
          %5649 = vst [vmem:[%s294 + $0x210] sm:$0xff] %v5393
          %5650 = vst [vmem:[%s294 + $0x218] sm:$0xff] %v5394
          %5651 = vst [vmem:[%s294 + $0x220] sm:$0xff] %v5395
          %5652 = vst [vmem:[%s294 + $0x228] sm:$0xff] %v5396
          %5653 = vst [vmem:[%s294 + $0x230] sm:$0xff] %v5397
          %5654 = vst [vmem:[%s294 + $0x238] sm:$0xff] %v5398
          %5655 = vst [vmem:[%s294 + $0x240] sm:$0xff] %v5399
          %5656 = vst [vmem:[%s294 + $0x248] sm:$0xff] %v5400
          %5657 = vst [vmem:[%s294 + $0x250] sm:$0xff] %v5401
          %5658 = vst [vmem:[%s294 + $0x258] sm:$0xff] %v5402
          %5659 = vst [vmem:[%s294 + $0x260] sm:$0xff] %v5403
          %5660 = vst [vmem:[%s294 + $0x268] sm:$0xff] %v5404
          %5661 = vst [vmem:[%s294 + $0x270] sm:$0xff] %v5405
          %5662 = vst [vmem:[%s294 + $0x278] sm:$0xff] %v5406
          %5663 = vst [vmem:[%s294 + $0x280] sm:$0xff] %v5407
          %5664 = vst [vmem:[%s294 + $0x288] sm:$0xff] %v5408
          %5665 = vst [vmem:[%s294 + $0x290] sm:$0xff] %v5409
          %5666 = vst [vmem:[%s294 + $0x298] sm:$0xff] %v5410
          %5667 = vst [vmem:[%s294 + $0x2a0] sm:$0xff] %v5411
          %5668 = vst [vmem:[%s294 + $0x2a8] sm:$0xff] %v5412
          %5669 = vst [vmem:[%s294 + $0x2b0] sm:$0xff] %v5413
          %5670 = vst [vmem:[%s294 + $0x2b8] sm:$0xff] %v5414
          %5671 = vst [vmem:[%s294 + $0x2c0] sm:$0xff] %v5415
          %5672 = vst [vmem:[%s294 + $0x2c8] sm:$0xff] %v5416
          %5673 = vst [vmem:[%s294 + $0x2d0] sm:$0xff] %v5417
          %5674 = vst [vmem:[%s294 + $0x2d8] sm:$0xff] %v5418
          %5675 = vst [vmem:[%s294 + $0x2e0] sm:$0xff] %v5419
          %5676 = vst [vmem:[%s294 + $0x2e8] sm:$0xff] %v5420
          %5677 = vst [vmem:[%s294 + $0x2f0] sm:$0xff] %v5421
          %5678 = vst [vmem:[%s294 + $0x2f8] sm:$0xff] %v5422
          %5679 = vst [vmem:[%s294 + $0x300] sm:$0xff] %v5423
          %5680 = vst [vmem:[%s294 + $0x308] sm:$0xff] %v5424
          %5681 = vst [vmem:[%s294 + $0x310] sm:$0xff] %v5425
          %5682 = vst [vmem:[%s294 + $0x318] sm:$0xff] %v5426
          %5683 = vst [vmem:[%s294 + $0x320] sm:$0xff] %v5427
          %5684 = vst [vmem:[%s294 + $0x328] sm:$0xff] %v5428
          %5685 = vst [vmem:[%s294 + $0x330] sm:$0xff] %v5429
          %5686 = vst [vmem:[%s294 + $0x338] sm:$0xff] %v5430
          %5687 = vst [vmem:[%s294 + $0x340] sm:$0xff] %v5431
          %5688 = vst [vmem:[%s294 + $0x348] sm:$0xff] %v5432
          %5689 = vst [vmem:[%s294 + $0x350] sm:$0xff] %v5433
          %5690 = vst [vmem:[%s294 + $0x358] sm:$0xff] %v5434
          %5691 = vst [vmem:[%s294 + $0x360] sm:$0xff] %v5435
          %5692 = vst [vmem:[%s294 + $0x368] sm:$0xff] %v5436
          %5693 = vst [vmem:[%s294 + $0x370] sm:$0xff] %v5437
          %5694 = vst [vmem:[%s294 + $0x378] sm:$0xff] %v5438
          %5695 = vst [vmem:[%s294 + $0x380] sm:$0xff] %v5439
          %5696 = vst [vmem:[%s294 + $0x388] sm:$0xff] %v5440
          %5697 = vst [vmem:[%s294 + $0x390] sm:$0xff] %v5441
          %5698 = vst [vmem:[%s294 + $0x398] sm:$0xff] %v5442
          %5699 = vst [vmem:[%s294 + $0x3a0] sm:$0xff] %v5443
          %5700 = vst [vmem:[%s294 + $0x3a8] sm:$0xff] %v5444
          %5701 = vst [vmem:[%s294 + $0x3b0] sm:$0xff] %v5445
          %5702 = vst [vmem:[%s294 + $0x3b8] sm:$0xff] %v5446
          %5703 = vst [vmem:[%s294 + $0x3c0] sm:$0xff] %v5447
          %5704 = vst [vmem:[%s294 + $0x3c8] sm:$0xff] %v5448
          %5705 = vst [vmem:[%s294 + $0x3d0] sm:$0xff] %v5449
          %5706 = vst [vmem:[%s294 + $0x3d8] sm:$0xff] %v5450
          %5707 = vst [vmem:[%s294 + $0x3e0] sm:$0xff] %v5451
          %5708 = vst [vmem:[%s294 + $0x3e8] sm:$0xff] %v5452
          %5709 = vst [vmem:[%s294 + $0x3f0] sm:$0xff] %v5453
          %5710 = vst [vmem:[%s294 + $0x3f8] sm:$0xff] %v5454
        $region52: #{tpu_custom_call.1} parent=31 // pred_fallthru
          _
        %s5711 = sand.u32 %s134, 1
        %s5712 = scalar_lea.sflag [#allocation5], %s5711
        %s5713 = sand.u32 %s134, 1
        %s5714 = smul.addr %s5713, 1024
        %s5715 = scalar_lea.vmem [#allocation9], %s5714
        // Predicated region
        $region53: #{tpu_custom_call.1} parent=31 // pred_check
          %p5716 = pneg %p144
        $region54: #{tpu_custom_call.1} parent=31 // pred_check_branch
          %5718 = sbr.rel (%p5716) target = $region56
        $region55: #{tpu_custom_call.1} parent=31 // pred_region
          %s5719 = smul.u32 64, %s28
          %s5720 = smul.u32 4, %s29
          %s5722 = ssub.s32 16384, 16384
          %5723 = vsyncadd %s5712, %s5722
          %s5724 = smul.addr %s5719, 8
          %s5725 = sadd.s32 %s5720, %s5724
          %s5726 = smul.addr %s5725, 64
          %s5727 = scalar_lea.hbm %s3, %s5726
          %s5728 = sshll.u32 %s5715, 4
          %s5729 = int_to_ptr.vmem [resolvable:$true] %s5728
          %5734 = dma.vmem_to_hbm [thread:$0]  %s5729, 16384, %s5727, %s5712, 256, 512, 16
        $region56: #{tpu_custom_call.1} parent=31 // pred_fallthru
          _
      $region32: #{tpu_custom_call.1} parent=5 // pred_fallthru
        _
      %p5735 = scmp.le.s32.totalorder 2, %s18
      // Predicated region
      $region57: #{tpu_custom_call.1} parent=5 // pred_check
        %p5736 = pneg %p5735
      $region58: #{tpu_custom_call.1} parent=5 // pred_check_branch
        %5738 = sbr.rel (%p5736) target = $region60
      $region59: #{tpu_custom_call.1} parent=5 // pred_region
        %s5739 = ssub.s32 %s18, 2
        // Predicated region
        $region61: #{tpu_custom_call.1} parent=59 // pred_check
          %p5740 = pneg %p150
        $region62: #{tpu_custom_call.1} parent=59 // pred_check_branch
          %5742 = sbr.rel (%p5740) target = $region64
        $region63: #{tpu_custom_call.1} parent=59 // pred_region
          %s5743 = sand.u32 %s135, 1
          %s5744 = scalar_lea.sflag [#allocation5], %s5743
          %s5745 = sand.u32 %s135, 1
          %s5746 = smul.addr %s5745, 1024
          %s5747 = scalar_lea.vmem [#allocation9], %s5746
          %5748 = dma.done %s5744, 16384
        $region64: #{tpu_custom_call.1} parent=59 // pred_fallthru
          _
      $region60: #{tpu_custom_call.1} parent=5 // pred_fallthru
        _
    $region6: #{tpu_custom_call.1} parent=1 // loop_footer
      %s22 = sadd.s32 1, %s18
    $region7: #{tpu_custom_call.1} parent=1 // loop_footer_branch
      %17 = sbr.rel target = $region3
    $region8: #{tpu_custom_call.1} parent=1 // loop_exit
      _
    %5749 = vsyncpa [#allocation4], 1
    %s5750 = scalar_lea.sflag [#allocation4], 1
    %5751 = vsyncpa %s5750, 1
    %5752 = vsyncpa [#allocation7], 1
    %s5753 = scalar_lea.sflag [#allocation7], 1
    %5754 = vsyncpa %s5753, 1
    %5755 = vsyncpa [#allocation5], 1
    %s5756 = scalar_lea.sflag [#allocation5], 1
    %5757 = vsyncpa %s5756, 1

</llo_original>
